<compile_context>
chip_gen: v5e
topology: v5e:2x2
jax: 0.10.0
libtpu: 0.0.40
codegen_flags: <defaults>
</compile_context>

<pallas_src>
import functools

import jax
import jax.numpy as jnp
from jax.experimental import pallas as pl
from jax.experimental.pallas import tpu as pltpu


# ------------------------------ configuration ------------------------------ #

class Config:
    vocab_size = 64
    dim = 32
    n_heads = 4
    head_dim = 8            # dim // n_heads
    inter_dim = 64
    n_layers = 2
    num_mtp_modules = 1
    layers_per_mtp = 1
    mtp_loss_factor = 0.1
    rope_base = 10000.0
    norm_eps = 1e-6


# ------------------------------ kernel helpers ------------------------------ #

def _rmsnorm(x, w, eps):
    """x: (S, D) f32, w: (1, D) f32."""
    var = jnp.mean(x * x, axis=-1, keepdims=True)
    return (x * jax.lax.rsqrt(var + eps)) * w


def _layer_body(x, cos, sin, amask, an, fn, wqkv, wo, w13, w2,
                *, n_heads, head_dim, eps):
    """One pre-norm transformer layer on an (S, D) f32 residual."""
    f32, bf16 = jnp.float32, jnp.bfloat16
    S, D = x.shape
    H, Dh = n_heads, head_dim

    # ---- attention branch: RMSNorm fused with the QKV matmul ----
    xn = _rmsnorm(x, an.astype(f32), eps)
    qkv = jnp.dot(xn.astype(bf16), wqkv, preferred_element_type=f32)   # (S, 5D)
    # RoPE: rotate-half folded into weight columns D:2D / 3D:4D, so the
    # rotation is elementwise cos/sin math here.
    q = qkv[:, 0 * D:1 * D] * cos + qkv[:, 1 * D:2 * D] * sin
    k = qkv[:, 2 * D:3 * D] * cos + qkv[:, 3 * D:4 * D] * sin
    v = qkv[:, 4 * D:5 * D]

    scale = 1.0 / (Dh ** 0.5)
    head_outs = []
    for h in range(H):                                    # static, unrolled
        lo, hi = h * Dh, (h + 1) * Dh
        qh = q[:, lo:hi].astype(bf16)
        kh = k[:, lo:hi].astype(bf16)
        vh = v[:, lo:hi].astype(bf16)
        s = jax.lax.dot_general(qh, kh, (((1,), (1,)), ((), ())),
                                preferred_element_type=f32) * scale
        s = s + amask                                     # additive causal mask
        m = jnp.max(s, axis=-1, keepdims=True)
        p = jnp.exp(s - m)
        p = p * pl.reciprocal(jnp.sum(p, axis=-1, keepdims=True), approx=True)
        head_outs.append(jnp.dot(p.astype(bf16), vh, preferred_element_type=f32))
    # heads land in disjoint lane ranges -> ONE (S,D)@(D,D) Wo matmul.
    attn = jnp.concatenate(head_outs, axis=-1)            # (S, D)
    x = x + jnp.dot(attn.astype(bf16), wo, preferred_element_type=f32)

    # ---- FFN branch: RMSNorm fused with gate/up matmul, SwiGLU, down proj ----
    xn2 = _rmsnorm(x, fn.astype(f32), eps)
    gu = jnp.dot(xn2.astype(bf16), w13, preferred_element_type=f32)    # (S, 2F)
    F_ = gu.shape[-1] // 2
    g, u = gu[:, :F_], gu[:, F_:]
    hmid = (g * jax.nn.sigmoid(g)) * u                    # SwiGLU in f32 vregs
    x = x + jnp.dot(hmid.astype(bf16), w2, preferred_element_type=f32)
    return x


def _norm_head_ce(x, nw, head_w, tgt, eps):
    """Shared RMSNorm -> head matmul -> per-batch mean cross entropy.

    x: (S, D) f32, nw: (1, D) f32, head_w: (D, V) bf16, tgt: (S, 1) int32.
    Returns (logits (S,V) f32, loss (1,1) f32).
    """
    f32, bf16 = jnp.float32, jnp.bfloat16
    hn = _rmsnorm(x, nw.astype(f32), eps)
    logits = jnp.dot(hn.astype(bf16), head_w, preferred_element_type=f32)
    m = jnp.max(logits, axis=-1, keepdims=True)
    lse = m + jnp.log(jnp.sum(jnp.exp(logits - m), axis=-1, keepdims=True))
    col = jax.lax.broadcasted_iota(jnp.int32, logits.shape, 1)
    tgt_logit = jnp.sum(jnp.where(col == tgt, logits, 0.0),
                        axis=-1, keepdims=True)
    loss = jnp.mean(lse - tgt_logit, axis=0, keepdims=True)   # (1, 1)
    return logits, loss


# ------------------------------ fused kernels ------------------------------- #

def _fused_base_kernel(x_ref, cos_ref, sin_ref, mask_ref, tgt_ref,
                       an_ref, fn_ref, wqkv_ref, wo_ref, w13_ref, w2_ref,
                       nw_ref, head_ref,
                       hid_ref, logits_ref, loss_ref,
                       resid_ref,
                       *, n_heads, head_dim, eps):
    """Whole base model for one batch element; grid = (B, n_layers)."""
    f32, bf16 = jnp.float32, jnp.bfloat16
    l = pl.program_id(1)
    n_layers = pl.num_programs(1)

    # Residual stream persists in VMEM scratch across the layer grid axis.
    @pl.when(l == 0)
    def _init():
        resid_ref[...] = x_ref[0].astype(f32)

    x = _layer_body(resid_ref[...], cos_ref[...], sin_ref[...], mask_ref[...],
                    an_ref[0], fn_ref[0], wqkv_ref[0], wo_ref[0],
                    w13_ref[0], w2_ref[0],
                    n_heads=n_heads, head_dim=head_dim, eps=eps)
    resid_ref[...] = x

    @pl.when(l == n_layers - 1)
    def _final():
        hid_ref[0] = x.astype(bf16)
        logits, loss = _norm_head_ce(x, nw_ref[...], head_ref[...],
                                     tgt_ref[0], eps)
        logits_ref[0] = logits.astype(bf16)      # bf16 writeback (loss is f32)
        loss_ref[0] = loss                       # per-batch scalar loss


def _fused_mtp_kernel(h_ref, e_ref, cos_ref, sin_ref, mask_ref, tgt_ref,
                      hn_ref, en_ref, wph_ref, wpe_ref,
                      an_ref, fn_ref, wqkv_ref, wo_ref, w13_ref, w2_ref,
                      nw_ref, head_ref,
                      hid_ref, loss_ref,
                      resid_ref,
                      *, n_heads, head_dim, eps):
    """One MTP module (combiner + layers + loss-only head); grid = (B, L_mtp)."""
    f32, bf16 = jnp.float32, jnp.bfloat16
    l = pl.program_id(1)
    n_layers = pl.num_programs(1)

    # MTP combiner fused into the first layer step:
    #   resid = norm(hidden) @ proj_h + norm(embed) @ proj_e
    @pl.when(l == 0)
    def _init():
        h = h_ref[0].astype(f32)
        e = e_ref[0].astype(f32)
        hn = _rmsnorm(h, hn_ref[...].astype(f32), eps)
        en = _rmsnorm(e, en_ref[...].astype(f32), eps)
        resid_ref[...] = (
            jnp.dot(hn.astype(bf16), wph_ref[...], preferred_element_type=f32)
            + jnp.dot(en.astype(bf16), wpe_ref[...], preferred_element_type=f32))

    x = _layer_body(resid_ref[...], cos_ref[...], sin_ref[...], mask_ref[...],
                    an_ref[0], fn_ref[0], wqkv_ref[0], wo_ref[0],
                    w13_ref[0], w2_ref[0],
                    n_heads=n_heads, head_dim=head_dim, eps=eps)
    resid_ref[...] = x

    # Loss-only shared head fused into the last layer step: no logits written.
    @pl.when(l == n_layers - 1)
    def _final():
        hid_ref[0] = x.astype(bf16)
        _, loss = _norm_head_ce(x, nw_ref[...], head_ref[...], tgt_ref[0], eps)
        loss_ref[0] = loss


# ------------------------------ kernel wrappers ----------------------------- #

# B axis "parallel" (v7x megacore sharding), layer axis "arbitrary" (sequential,
# residual carried in VMEM scratch).  On v5e/v6e the B axis is a cheap serial
# loop of 2 steps; all layer-loop launch overhead is gone either way.
_DIMSEM = pltpu.CompilerParams(dimension_semantics=("parallel", "arbitrary"))


def pallas_base_forward(params, x_emb, tgt3, cos, sin, amask, cfg):
    """Full base model in one pallas_call.  Returns (hidden bf16, logits bf16,
    mean CE loss)."""
    B, S, D = x_emb.shape
    V, F, L = cfg.vocab_size, cfg.inter_dim, cfg.n_layers
    ls = params["layers"]
    kernel = functools.partial(_fused_base_kernel, n_heads=cfg.n_heads,
                               head_dim=cfg.head_dim, eps=cfg.norm_eps)
    hidden, logits, loss = pl.pallas_call(
        kernel,
        out_shape=(jax.ShapeDtypeStruct((B, S, D), jnp.bfloat16),
                   jax.ShapeDtypeStruct((B, S, V), jnp.bfloat16),
                   jax.ShapeDtypeStruct((B, 1, 1), jnp.float32)),
        grid=(B, L),
        in_specs=[
            pl.BlockSpec((1, S, D), lambda b, l: (b, 0, 0)),       # embeddings
            pl.BlockSpec((S, D), lambda b, l: (0, 0)),             # cos
            pl.BlockSpec((S, D), lambda b, l: (0, 0)),             # sin
            pl.BlockSpec((S, S), lambda b, l: (0, 0)),             # causal mask
            pl.BlockSpec((1, S, 1), lambda b, l: (b, 0, 0)),       # targets
            pl.BlockSpec((1, 1, D), lambda b, l: (l, 0, 0)),       # attn_norm[l]
            pl.BlockSpec((1, 1, D), lambda b, l: (l, 0, 0)),       # ffn_norm[l]
            pl.BlockSpec((1, D, 5 * D), lambda b, l: (l, 0, 0)),   # wqkv[l]
            pl.BlockSpec((1, D, D), lambda b, l: (l, 0, 0)),       # wo[l]
            pl.BlockSpec((1, D, 2 * F), lambda b, l: (l, 0, 0)),   # w13[l]
            pl.BlockSpec((1, F, D), lambda b, l: (l, 0, 0)),       # w2[l]
            pl.BlockSpec((1, D), lambda b, l: (0, 0)),             # shared norm
            pl.BlockSpec((D, V), lambda b, l: (0, 0)),             # shared head
        ],
        out_specs=(pl.BlockSpec((1, S, D), lambda b, l: (b, 0, 0)),
                   pl.BlockSpec((1, S, V), lambda b, l: (b, 0, 0)),
                   pl.BlockSpec((1, 1, 1), lambda b, l: (b, 0, 0))),
        scratch_shapes=[pltpu.VMEM((S, D), jnp.float32)],          # residual
        compiler_params=_DIMSEM,
    )(x_emb, cos, sin, amask, tgt3,
      ls["attn_norm"], ls["ffn_norm"], ls["wqkv"], ls["wo"], ls["w13"], ls["w2"],
      params["norm"], params["head"])
    return hidden, logits, jnp.mean(loss)


def pallas_mtp_module(params, mp, h_prev, emb_k, tgt3, cos, sin, amask, cfg):
    """One MTP module in one pallas_call.  Returns (hidden bf16, mean CE loss)."""
    B, Sk, D = h_prev.shape
    V, F, L = cfg.vocab_size, cfg.inter_dim, cfg.layers_per_mtp
    ls = mp["layers"]
    kernel = functools.partial(_fused_mtp_kernel, n_heads=cfg.n_heads,
                               head_dim=cfg.head_dim, eps=cfg.norm_eps)
    hidden, loss = pl.pallas_call(
        kernel,
        out_shape=(jax.ShapeDtypeStruct((B, Sk, D), jnp.bfloat16),
                   jax.ShapeDtypeStruct((B, 1, 1), jnp.float32)),
        grid=(B, L),
        in_specs=[
            pl.BlockSpec((1, Sk, D), lambda b, l: (b, 0, 0)),      # prev hidden
            pl.BlockSpec((1, Sk, D), lambda b, l: (b, 0, 0)),      # shifted embed
            pl.BlockSpec((Sk, D), lambda b, l: (0, 0)),            # cos
            pl.BlockSpec((Sk, D), lambda b, l: (0, 0)),            # sin
            pl.BlockSpec((Sk, Sk), lambda b, l: (0, 0)),           # causal mask
            pl.BlockSpec((1, Sk, 1), lambda b, l: (b, 0, 0)),      # targets
            pl.BlockSpec((1, D), lambda b, l: (0, 0)),             # hnorm
            pl.BlockSpec((1, D), lambda b, l: (0, 0)),             # enorm
            pl.BlockSpec((D, D), lambda b, l: (0, 0)),             # proj_h
            pl.BlockSpec((D, D), lambda b, l: (0, 0)),             # proj_e
            pl.BlockSpec((1, 1, D), lambda b, l: (l, 0, 0)),       # attn_norm[l]
            pl.BlockSpec((1, 1, D), lambda b, l: (l, 0, 0)),       # ffn_norm[l]
            pl.BlockSpec((1, D, 5 * D), lambda b, l: (l, 0, 0)),   # wqkv[l]
            pl.BlockSpec((1, D, D), lambda b, l: (l, 0, 0)),       # wo[l]
            pl.BlockSpec((1, D, 2 * F), lambda b, l: (l, 0, 0)),   # w13[l]
            pl.BlockSpec((1, F, D), lambda b, l: (l, 0, 0)),       # w2[l]
            pl.BlockSpec((1, D), lambda b, l: (0, 0)),             # shared norm
            pl.BlockSpec((D, V), lambda b, l: (0, 0)),             # shared head
        ],
        out_specs=(pl.BlockSpec((1, Sk, D), lambda b, l: (b, 0, 0)),
                   pl.BlockSpec((1, 1, 1), lambda b, l: (b, 0, 0))),
        scratch_shapes=[pltpu.VMEM((Sk, D), jnp.float32)],
        compiler_params=_DIMSEM,
    )(h_prev, emb_k, cos, sin, amask, tgt3,
      mp["hnorm"], mp["enorm"], mp["proj_h"], mp["proj_e"],
      ls["attn_norm"], ls["ffn_norm"], ls["wqkv"], ls["wo"], ls["w13"], ls["w2"],
      params["norm"], params["head"])
    return hidden, jnp.mean(loss)


# ------------------------------- model params ------------------------------- #

def rotate_half_matrix(Dh):
    """R such that x @ R == rotate_half(x) (= concat(-x[half:], x[:half]))."""
    half = Dh // 2
    z = jnp.zeros((half, half), jnp.float32)
    eye = jnp.eye(half, dtype=jnp.float32)
    top = jnp.concatenate([z, eye], axis=1)
    bot = jnp.concatenate([-eye, z], axis=1)
    return jnp.concatenate([top, bot], axis=0)


def rope_tables(S, Dh, H, base):
    """cos/sin tables tiled per head: shape (S, H*Dh), f32."""
    half = Dh // 2
    inv = 1.0 / (base ** (jnp.arange(half, dtype=jnp.float32) / half))
    ang = jnp.outer(jnp.arange(S, dtype=jnp.float32), inv)            # (S, half)
    cos = jnp.concatenate([jnp.cos(ang), jnp.cos(ang)], axis=-1)      # (S, Dh)
    sin = jnp.concatenate([jnp.sin(ang), jnp.sin(ang)], axis=-1)
    return jnp.tile(cos, (1, H)), jnp.tile(sin, (1, H))


def causal_additive_mask(S):
    """(S, S) f32: 0 on/below the diagonal, -1e30 above (== -inf triu(1))."""
    row = jnp.arange(S, dtype=jnp.int32)[:, None]
    col = jnp.arange(S, dtype=jnp.int32)[None, :]
    return jnp.where(row >= col, 0.0, -1e30).astype(jnp.float32)


def init_layer_params(key, cfg):
    ks = jax.random.split(key, 7)
    s = 0.02
    D, F, H, Dh = cfg.dim, cfg.inter_dim, cfg.n_heads, cfg.head_dim
    wq = s * jax.random.normal(ks[0], (D, D), jnp.float32)
    wk = s * jax.random.normal(ks[1], (D, D), jnp.float32)
    wv = s * jax.random.normal(ks[2], (D, D), jnp.float32)
    wo = s * jax.random.normal(ks[3], (D, D), jnp.float32)
    w1 = s * jax.random.normal(ks[4], (D, F), jnp.float32)
    w3 = s * jax.random.normal(ks[5], (D, F), jnp.float32)
    w2 = s * jax.random.normal(ks[6], (F, D), jnp.float32)
    # fold per-head rotate-half into extra weight columns so RoPE is elementwise
    R = jnp.kron(jnp.eye(H, dtype=jnp.float32), rotate_half_matrix(Dh))
    wqkv = jnp.concatenate([wq, wq @ R, wk, wk @ R, wv], axis=1)      # (D, 5D)
    return {
        "attn_norm": jnp.ones((1, D), jnp.float32),
        "ffn_norm": jnp.ones((1, D), jnp.float32),
        "wqkv": wqkv.astype(jnp.bfloat16),
        "wo": wo.astype(jnp.bfloat16),
        "w13": jnp.concatenate([w1, w3], axis=1).astype(jnp.bfloat16),
        "w2": w2.astype(jnp.bfloat16),
    }


def stack_layer_params(key, cfg, n_layers):
    """Stack per-layer weights along a leading axis (indexed by the layer grid)."""
    per = [init_layer_params(k, cfg) for k in jax.random.split(key, n_layers)]
    return {name: jnp.stack([p[name] for p in per], axis=0) for name in per[0]}


def init_params(key, cfg):
    kE, kH, kL, kM = jax.random.split(key, 4)
    s = 0.02
    D, V = cfg.dim, cfg.vocab_size
    params = {
        "embed": (s * jax.random.normal(kE, (V, D), jnp.float32)).astype(jnp.bfloat16),
        "norm": jnp.ones((1, D), jnp.float32),                       # shared norm
        "head": (s * jax.random.normal(kH, (D, V), jnp.float32)).astype(jnp.bfloat16),
        "layers": stack_layer_params(kL, cfg, cfg.n_layers),
        "mtp": [],
    }
    for mk in jax.random.split(kM, cfg.num_mtp_modules):
        m1, m2 = jax.random.split(mk)
        proj = s * jax.random.normal(m1, (2 * D, D), jnp.float32)
        params["mtp"].append({
            "hnorm": jnp.ones((1, D), jnp.float32),
            "enorm": jnp.ones((1, D), jnp.float32),
            "proj_h": proj[:D].astype(jnp.bfloat16),
            "proj_e": proj[D:].astype(jnp.bfloat16),
            "layers": stack_layer_params(m2, cfg, cfg.layers_per_mtp),
        })
    return params


# --------------------------------- forward ---------------------------------- #

def deepseek_trainable_mtp_forward(params, input_ids, targets, cfg, use_mtp=True):
    """Training-mode forward: returns (base_logits, (total_loss, mtp_loss))."""
    B, S = input_ids.shape
    emb = jnp.take(params["embed"], input_ids, axis=0)                # (B,S,D) bf16
    cos, sin = rope_tables(S, cfg.head_dim, cfg.n_heads, cfg.rope_base)
    amask = causal_additive_mask(S)
    tgt3 = targets.reshape(B, S, 1).astype(jnp.int32)

    # ---- base model: ONE fused pallas_call (layers + norm + head + CE) ----
    hidden, logits_bf16, base_loss = pallas_base_forward(
        params, emb, tgt3, cos, sin, amask, cfg)
    base_logits = logits_bf16.astype(jnp.float32)

    if not use_mtp:
        return base_logits, base_loss

    # ---- MTP head: ONE fused pallas_call per MTP module (loss-only CE) ----
    h_prev = hidden
    losses = []
    for k in range(1, cfg.num_mtp_modules + 1):
        mp = params["mtp"][k - 1]
        Sk = S - k
        emb_k = jnp.take(params["embed"], input_ids[:, k:], axis=0)   # shared embed
        tgt_k = targets[:, k:].reshape(B, Sk, 1).astype(jnp.int32)
        cos_k, sin_k = rope_tables(Sk, cfg.head_dim, cfg.n_heads, cfg.rope_base)
        amask_k = causal_additive_mask(Sk)
        h_new, loss_k = pallas_mtp_module(
            params, mp, h_prev[:, :Sk], emb_k, tgt_k, cos_k, sin_k, amask_k, cfg)
        losses.append(loss_k)
        h_prev = h_new
    mtp_loss = cfg.mtp_loss_factor * jnp.mean(jnp.stack(losses))
    total_loss = base_loss + mtp_loss
    return base_logits, (total_loss, mtp_loss)


# ----------------------------------- main ------------------------------------ #

if __name__ == "__main__":
    cfg = Config()
    key = jax.random.PRNGKey(0)
    kp, ki, kt = jax.random.split(key, 3)

    params = init_params(kp, cfg)

    B, S = 2, 8
    input_ids = jax.random.randint(ki, (B, S), 0, cfg.vocab_size, dtype=jnp.int32)
    targets = jax.random.randint(kt, (B, S), 0, cfg.vocab_size, dtype=jnp.int32)

    fwd = jax.jit(functools.partial(deepseek_trainable_mtp_forward,
                                    cfg=cfg, use_mtp=True))
    base_logits, (total_loss, mtp_loss) = fwd(params, input_ids, targets)

    jax.block_until_ready((base_logits, total_loss, mtp_loss))
    assert base_logits.shape == (B, S, cfg.vocab_size)
    assert bool(jnp.isfinite(total_loss)) and bool(jnp.isfinite(mtp_loss))
    print("KERNEL_OK")
</pallas_src>

<mosaic_0001>
module attributes {stable_mosaic.version = 11 : i64} {
  func.func @_fused_base_kernel(%arg0: i32, %arg1: i32, %arg2: memref<1x8x32xbf16, #tpu.memory_space<vmem>>, %arg3: memref<8x32xf32, #tpu.memory_space<vmem>>, %arg4: memref<8x32xf32, #tpu.memory_space<vmem>>, %arg5: memref<8x8xf32, #tpu.memory_space<vmem>>, %arg6: memref<1x8x1xi32, #tpu.memory_space<vmem>>, %arg7: memref<1x1x32xf32, #tpu.memory_space<vmem>>, %arg8: memref<1x1x32xf32, #tpu.memory_space<vmem>>, %arg9: memref<1x32x160xbf16, #tpu.memory_space<vmem>>, %arg10: memref<1x32x32xbf16, #tpu.memory_space<vmem>>, %arg11: memref<1x32x128xbf16, #tpu.memory_space<vmem>>, %arg12: memref<1x64x32xbf16, #tpu.memory_space<vmem>>, %arg13: memref<1x32xf32, #tpu.memory_space<vmem>>, %arg14: memref<32x64xbf16, #tpu.memory_space<vmem>>, %arg15: memref<1x8x32xbf16, #tpu.memory_space<vmem>>, %arg16: memref<1x8x64xbf16, #tpu.memory_space<vmem>>, %arg17: memref<1x1x1xf32, #tpu.memory_space<vmem>>, %arg18: memref<8x32xf32, #tpu.memory_space<vmem>>) attributes {dimension_semantics = [#tpu.dimension_semantics<parallel>, #tpu.dimension_semantics<arbitrary>], iteration_bounds = array<i64: 2, 2>, scalar_prefetch = 0 : i64, scratch_operands = 1 : i64, tpu.core_type = #tpu.core_type<tc>, window_params = [{transform_indices = @transform_0, window_bounds = array<i64: 1, 8, 32>}, {pipeline_mode = #tpu.pipeline_mode<synchronous>, transform_indices = @transform_1, window_bounds = array<i64: 8, 32>}, {pipeline_mode = #tpu.pipeline_mode<synchronous>, transform_indices = @transform_2, window_bounds = array<i64: 8, 32>}, {pipeline_mode = #tpu.pipeline_mode<synchronous>, transform_indices = @transform_3, window_bounds = array<i64: 8, 8>}, {transform_indices = @transform_4, window_bounds = array<i64: 1, 8, 1>}, {transform_indices = @transform_5, window_bounds = array<i64: 1, 1, 32>}, {transform_indices = @transform_6, window_bounds = array<i64: 1, 1, 32>}, {transform_indices = @transform_7, window_bounds = array<i64: 1, 32, 160>}, {transform_indices = @transform_8, window_bounds = array<i64: 1, 32, 32>}, {transform_indices = @transform_9, window_bounds = array<i64: 1, 32, 128>}, {transform_indices = @transform_10, window_bounds = array<i64: 1, 64, 32>}, {pipeline_mode = #tpu.pipeline_mode<synchronous>, transform_indices = @transform_11, window_bounds = array<i64: 1, 32>}, {pipeline_mode = #tpu.pipeline_mode<synchronous>, transform_indices = @transform_12, window_bounds = array<i64: 32, 64>}, {transform_indices = @transform_13, window_bounds = array<i64: 1, 8, 32>}, {transform_indices = @transform_14, window_bounds = array<i64: 1, 8, 64>}, {transform_indices = @transform_15, window_bounds = array<i64: 1, 1, 1>}]} {
    %c0_i32 = arith.constant 0 : i32
    %0 = arith.cmpi eq, %arg1, %c0_i32 : i32
    %1 = arith.extui %0 : i1 to i32
    %c0_i32_0 = arith.constant 0 : i32
    %2 = arith.cmpi ne, %1, %c0_i32_0 : i32
    scf.if %2 {
      %c0_59 = arith.constant 0 : index
      %c0_60 = arith.constant 0 : index
      %c0_61 = arith.constant 0 : index
      %166 = vector.load %arg2[%c0_59, %c0_60, %c0_61] : memref<1x8x32xbf16, #tpu.memory_space<vmem>>, vector<1x8x32xbf16>
      %167 = vector.shape_cast %166 : vector<1x8x32xbf16> to vector<8x32xbf16>
      %168 = arith.extf %167 : vector<8x32xbf16> to vector<8x32xf32>
      %c0_62 = arith.constant 0 : index
      %c0_63 = arith.constant 0 : index
      %169 = vector.load %arg18[%c0_62, %c0_63] : memref<8x32xf32, #tpu.memory_space<vmem>>, vector<8x32xf32>
      tpu.vector_store %arg18[%c0_62, %c0_63], %168 {strides = array<i32>} : memref<8x32xf32, #tpu.memory_space<vmem>>, vector<8x32xf32>,
    } else {
    }
    %c0 = arith.constant 0 : index
    %c0_1 = arith.constant 0 : index
    %3 = vector.load %arg18[%c0, %c0_1] : memref<8x32xf32, #tpu.memory_space<vmem>>, vector<8x32xf32>
    %c0_2 = arith.constant 0 : index
    %c0_3 = arith.constant 0 : index
    %4 = vector.load %arg3[%c0_2, %c0_3] : memref<8x32xf32, #tpu.memory_space<vmem>>, vector<8x32xf32>
    %c0_4 = arith.constant 0 : index
    %c0_5 = arith.constant 0 : index
    %5 = vector.load %arg4[%c0_4, %c0_5] : memref<8x32xf32, #tpu.memory_space<vmem>>, vector<8x32xf32>
    %c0_6 = arith.constant 0 : index
    %c0_7 = arith.constant 0 : index
    %6 = vector.load %arg5[%c0_6, %c0_7] : memref<8x8xf32, #tpu.memory_space<vmem>>, vector<8x8xf32>
    %c0_8 = arith.constant 0 : index
    %c0_9 = arith.constant 0 : index
    %c0_10 = arith.constant 0 : index
    %7 = vector.load %arg7[%c0_8, %c0_9, %c0_10] : memref<1x1x32xf32, #tpu.memory_space<vmem>>, vector<1x1x32xf32>
    %8 = vector.shape_cast %7 : vector<1x1x32xf32> to vector<1x32xf32>
    %c0_11 = arith.constant 0 : index
    %c0_12 = arith.constant 0 : index
    %c0_13 = arith.constant 0 : index
    %9 = vector.load %arg8[%c0_11, %c0_12, %c0_13] : memref<1x1x32xf32, #tpu.memory_space<vmem>>, vector<1x1x32xf32>
    %10 = vector.shape_cast %9 : vector<1x1x32xf32> to vector<1x32xf32>
    %c0_14 = arith.constant 0 : index
    %c0_15 = arith.constant 0 : index
    %c0_16 = arith.constant 0 : index
    %11 = vector.load %arg9[%c0_14, %c0_15, %c0_16] : memref<1x32x160xbf16, #tpu.memory_space<vmem>>, vector<1x32x160xbf16>
    %12 = vector.shape_cast %11 : vector<1x32x160xbf16> to vector<32x160xbf16>
    %c0_17 = arith.constant 0 : index
    %c0_18 = arith.constant 0 : index
    %c0_19 = arith.constant 0 : index
    %13 = vector.load %arg10[%c0_17, %c0_18, %c0_19] : memref<1x32x32xbf16, #tpu.memory_space<vmem>>, vector<1x32x32xbf16>
    %14 = vector.shape_cast %13 : vector<1x32x32xbf16> to vector<32x32xbf16>
    %c0_20 = arith.constant 0 : index
    %c0_21 = arith.constant 0 : index
    %c0_22 = arith.constant 0 : index
    %15 = vector.load %arg11[%c0_20, %c0_21, %c0_22] : memref<1x32x128xbf16, #tpu.memory_space<vmem>>, vector<1x32x128xbf16>
    %16 = vector.shape_cast %15 : vector<1x32x128xbf16> to vector<32x128xbf16>
    %c0_23 = arith.constant 0 : index
    %c0_24 = arith.constant 0 : index
    %c0_25 = arith.constant 0 : index
    %17 = vector.load %arg12[%c0_23, %c0_24, %c0_25] : memref<1x64x32xbf16, #tpu.memory_space<vmem>>, vector<1x64x32xbf16>
    %18 = vector.shape_cast %17 : vector<1x64x32xbf16> to vector<64x32xbf16>
    %19 = arith.mulf %3, %3 : vector<8x32xf32>
    %cst = arith.constant dense<0.000000e+00> : vector<8xf32>
    %20 = vector.multi_reduction <add>, %19, %cst [1] : vector<8x32xf32> to vector<8xf32>
    %21 = vector.shape_cast %20 : vector<8xf32> to vector<8x1xf32>
    %cst_26 = arith.constant 3.200000e+01 : f32
    %22 = vector.broadcast %cst_26 : f32 to vector<8x1xf32>
    %23 = arith.divf %21, %22 : vector<8x1xf32>
    %cst_27 = arith.constant 9.99999997E-7 : f32
    %24 = vector.broadcast %cst_27 : f32 to vector<8x1xf32>
    %25 = arith.addf %23, %24 : vector<8x1xf32>
    %26 = math.rsqrt %25 : vector<8x1xf32>
    %27 = vector.broadcast %26 : vector<8x1xf32> to vector<8x32xf32>
    %28 = arith.mulf %3, %27 : vector<8x32xf32>
    %29 = vector.broadcast %8 : vector<1x32xf32> to vector<8x32xf32>
    %30 = arith.mulf %28, %29 : vector<8x32xf32>
    %31 = arith.truncf %30 : vector<8x32xf32> to vector<8x32xbf16>
    %cst_28 = arith.constant dense<0.000000e+00> : vector<8x160xf32>
    %32 = tpu.matmul %31, %12, %cst_28 {dimension_numbers = #tpu.dot_dimension_numbers<[1], [0], [0], [1], [0, 0, 1, 1], [], []>} : vector<8x32xbf16>, vector<32x160xbf16>, vector<8x160xf32> -> vector<8x160xf32>
    %33 = vector.extract_strided_slice %32 {offsets = [0, 0], sizes = [8, 32], strides = [1, 1]} : vector<8x160xf32> to vector<8x32xf32>
    %34 = arith.mulf %33, %4 : vector<8x32xf32>
    %35 = vector.extract_strided_slice %32 {offsets = [0, 32], sizes = [8, 32], strides = [1, 1]} : vector<8x160xf32> to vector<8x32xf32>
    %36 = arith.mulf %35, %5 : vector<8x32xf32>
    %37 = arith.addf %34, %36 : vector<8x32xf32>
    %38 = vector.extract_strided_slice %32 {offsets = [0, 64], sizes = [8, 32], strides = [1, 1]} : vector<8x160xf32> to vector<8x32xf32>
    %39 = arith.mulf %38, %4 : vector<8x32xf32>
    %40 = vector.extract_strided_slice %32 {offsets = [0, 96], sizes = [8, 32], strides = [1, 1]} : vector<8x160xf32> to vector<8x32xf32>
    %41 = arith.mulf %40, %5 : vector<8x32xf32>
    %42 = arith.addf %39, %41 : vector<8x32xf32>
    %43 = vector.extract_strided_slice %32 {offsets = [0, 128], sizes = [8, 32], strides = [1, 1]} : vector<8x160xf32> to vector<8x32xf32>
    %44 = vector.extract_strided_slice %37 {offsets = [0, 0], sizes = [8, 8], strides = [1, 1]} : vector<8x32xf32> to vector<8x8xf32>
    %45 = arith.truncf %44 : vector<8x8xf32> to vector<8x8xbf16>
    %46 = vector.extract_strided_slice %42 {offsets = [0, 0], sizes = [8, 8], strides = [1, 1]} : vector<8x32xf32> to vector<8x8xf32>
    %47 = arith.truncf %46 : vector<8x8xf32> to vector<8x8xbf16>
    %48 = vector.extract_strided_slice %43 {offsets = [0, 0], sizes = [8, 8], strides = [1, 1]} : vector<8x32xf32> to vector<8x8xf32>
    %49 = arith.truncf %48 : vector<8x8xf32> to vector<8x8xbf16>
    %cst_29 = arith.constant dense<0.000000e+00> : vector<8x8xf32>
    %50 = tpu.matmul %45, %47, %cst_29 {dimension_numbers = #tpu.dot_dimension_numbers<[1], [1], [0], [0], [0, 0, 1, 0], [], []>} : vector<8x8xbf16>, vector<8x8xbf16>, vector<8x8xf32> -> vector<8x8xf32>
    %cst_30 = arith.constant 0.353553385 : f32
    %51 = vector.broadcast %cst_30 : f32 to vector<8x8xf32>
    %52 = arith.mulf %50, %51 : vector<8x8xf32>
    %53 = arith.addf %52, %6 : vector<8x8xf32>
    %cst_31 = arith.constant dense<0xFF800000> : vector<8xf32>
    %54 = vector.multi_reduction <maximumf>, %53, %cst_31 [1] : vector<8x8xf32> to vector<8xf32>
    %55 = vector.shape_cast %54 : vector<8xf32> to vector<8x1xf32>
    %56 = vector.broadcast %55 : vector<8x1xf32> to vector<8x8xf32>
    %57 = arith.subf %53, %56 : vector<8x8xf32>
    %58 = math.exp %57 : vector<8x8xf32>
    %cst_32 = arith.constant dense<0.000000e+00> : vector<8xf32>
    %59 = vector.multi_reduction <add>, %58, %cst_32 [1] : vector<8x8xf32> to vector<8xf32>
    %60 = vector.shape_cast %59 : vector<8xf32> to vector<8x1xf32>
    %61 = tpu.reciprocal %60 {approx = true} : vector<8x1xf32> -> vector<8x1xf32>
    %62 = vector.broadcast %61 : vector<8x1xf32> to vector<8x8xf32>
    %63 = arith.mulf %58, %62 : vector<8x8xf32>
    %64 = arith.truncf %63 : vector<8x8xf32> to vector<8x8xbf16>
    %cst_33 = arith.constant dense<0.000000e+00> : vector<8x8xf32>
    %65 = tpu.matmul %64, %49, %cst_33 {dimension_numbers = #tpu.dot_dimension_numbers<[1], [0], [0], [1], [0, 0, 1, 1], [], []>} : vector<8x8xbf16>, vector<8x8xbf16>, vector<8x8xf32> -> vector<8x8xf32>
    %66 = vector.extract_strided_slice %37 {offsets = [0, 8], sizes = [8, 8], strides = [1, 1]} : vector<8x32xf32> to vector<8x8xf32>
    %67 = arith.truncf %66 : vector<8x8xf32> to vector<8x8xbf16>
    %68 = vector.extract_strided_slice %42 {offsets = [0, 8], sizes = [8, 8], strides = [1, 1]} : vector<8x32xf32> to vector<8x8xf32>
    %69 = arith.truncf %68 : vector<8x8xf32> to vector<8x8xbf16>
    %70 = vector.extract_strided_slice %43 {offsets = [0, 8], sizes = [8, 8], strides = [1, 1]} : vector<8x32xf32> to vector<8x8xf32>
    %71 = arith.truncf %70 : vector<8x8xf32> to vector<8x8xbf16>
    %cst_34 = arith.constant dense<0.000000e+00> : vector<8x8xf32>
    %72 = tpu.matmul %67, %69, %cst_34 {dimension_numbers = #tpu.dot_dimension_numbers<[1], [1], [0], [0], [0, 0, 1, 0], [], []>} : vector<8x8xbf16>, vector<8x8xbf16>, vector<8x8xf32> -> vector<8x8xf32>
    %cst_35 = arith.constant 0.353553385 : f32
    %73 = vector.broadcast %cst_35 : f32 to vector<8x8xf32>
    %74 = arith.mulf %72, %73 : vector<8x8xf32>
    %75 = arith.addf %74, %6 : vector<8x8xf32>
    %cst_36 = arith.constant dense<0xFF800000> : vector<8xf32>
    %76 = vector.multi_reduction <maximumf>, %75, %cst_36 [1] : vector<8x8xf32> to vector<8xf32>
    %77 = vector.shape_cast %76 : vector<8xf32> to vector<8x1xf32>
    %78 = vector.broadcast %77 : vector<8x1xf32> to vector<8x8xf32>
    %79 = arith.subf %75, %78 : vector<8x8xf32>
    %80 = math.exp %79 : vector<8x8xf32>
    %cst_37 = arith.constant dense<0.000000e+00> : vector<8xf32>
    %81 = vector.multi_reduction <add>, %80, %cst_37 [1] : vector<8x8xf32> to vector<8xf32>
    %82 = vector.shape_cast %81 : vector<8xf32> to vector<8x1xf32>
    %83 = tpu.reciprocal %82 {approx = true} : vector<8x1xf32> -> vector<8x1xf32>
    %84 = vector.broadcast %83 : vector<8x1xf32> to vector<8x8xf32>
    %85 = arith.mulf %80, %84 : vector<8x8xf32>
    %86 = arith.truncf %85 : vector<8x8xf32> to vector<8x8xbf16>
    %cst_38 = arith.constant dense<0.000000e+00> : vector<8x8xf32>
    %87 = tpu.matmul %86, %71, %cst_38 {dimension_numbers = #tpu.dot_dimension_numbers<[1], [0], [0], [1], [0, 0, 1, 1], [], []>} : vector<8x8xbf16>, vector<8x8xbf16>, vector<8x8xf32> -> vector<8x8xf32>
    %88 = vector.extract_strided_slice %37 {offsets = [0, 16], sizes = [8, 8], strides = [1, 1]} : vector<8x32xf32> to vector<8x8xf32>
    %89 = arith.truncf %88 : vector<8x8xf32> to vector<8x8xbf16>
    %90 = vector.extract_strided_slice %42 {offsets = [0, 16], sizes = [8, 8], strides = [1, 1]} : vector<8x32xf32> to vector<8x8xf32>
    %91 = arith.truncf %90 : vector<8x8xf32> to vector<8x8xbf16>
    %92 = vector.extract_strided_slice %43 {offsets = [0, 16], sizes = [8, 8], strides = [1, 1]} : vector<8x32xf32> to vector<8x8xf32>
    %93 = arith.truncf %92 : vector<8x8xf32> to vector<8x8xbf16>
    %cst_39 = arith.constant dense<0.000000e+00> : vector<8x8xf32>
    %94 = tpu.matmul %89, %91, %cst_39 {dimension_numbers = #tpu.dot_dimension_numbers<[1], [1], [0], [0], [0, 0, 1, 0], [], []>} : vector<8x8xbf16>, vector<8x8xbf16>, vector<8x8xf32> -> vector<8x8xf32>
    %cst_40 = arith.constant 0.353553385 : f32
    %95 = vector.broadcast %cst_40 : f32 to vector<8x8xf32>
    %96 = arith.mulf %94, %95 : vector<8x8xf32>
    %97 = arith.addf %96, %6 : vector<8x8xf32>
    %cst_41 = arith.constant dense<0xFF800000> : vector<8xf32>
    %98 = vector.multi_reduction <maximumf>, %97, %cst_41 [1] : vector<8x8xf32> to vector<8xf32>
    %99 = vector.shape_cast %98 : vector<8xf32> to vector<8x1xf32>
    %100 = vector.broadcast %99 : vector<8x1xf32> to vector<8x8xf32>
    %101 = arith.subf %97, %100 : vector<8x8xf32>
    %102 = math.exp %101 : vector<8x8xf32>
    %cst_42 = arith.constant dense<0.000000e+00> : vector<8xf32>
    %103 = vector.multi_reduction <add>, %102, %cst_42 [1] : vector<8x8xf32> to vector<8xf32>
    %104 = vector.shape_cast %103 : vector<8xf32> to vector<8x1xf32>
    %105 = tpu.reciprocal %104 {approx = true} : vector<8x1xf32> -> vector<8x1xf32>
    %106 = vector.broadcast %105 : vector<8x1xf32> to vector<8x8xf32>
    %107 = arith.mulf %102, %106 : vector<8x8xf32>
    %108 = arith.truncf %107 : vector<8x8xf32> to vector<8x8xbf16>
    %cst_43 = arith.constant dense<0.000000e+00> : vector<8x8xf32>
    %109 = tpu.matmul %108, %93, %cst_43 {dimension_numbers = #tpu.dot_dimension_numbers<[1], [0], [0], [1], [0, 0, 1, 1], [], []>} : vector<8x8xbf16>, vector<8x8xbf16>, vector<8x8xf32> -> vector<8x8xf32>
    %110 = vector.extract_strided_slice %37 {offsets = [0, 24], sizes = [8, 8], strides = [1, 1]} : vector<8x32xf32> to vector<8x8xf32>
    %111 = arith.truncf %110 : vector<8x8xf32> to vector<8x8xbf16>
    %112 = vector.extract_strided_slice %42 {offsets = [0, 24], sizes = [8, 8], strides = [1, 1]} : vector<8x32xf32> to vector<8x8xf32>
    %113 = arith.truncf %112 : vector<8x8xf32> to vector<8x8xbf16>
    %114 = vector.extract_strided_slice %43 {offsets = [0, 24], sizes = [8, 8], strides = [1, 1]} : vector<8x32xf32> to vector<8x8xf32>
    %115 = arith.truncf %114 : vector<8x8xf32> to vector<8x8xbf16>
    %cst_44 = arith.constant dense<0.000000e+00> : vector<8x8xf32>
    %116 = tpu.matmul %111, %113, %cst_44 {dimension_numbers = #tpu.dot_dimension_numbers<[1], [1], [0], [0], [0, 0, 1, 0], [], []>} : vector<8x8xbf16>, vector<8x8xbf16>, vector<8x8xf32> -> vector<8x8xf32>
    %cst_45 = arith.constant 0.353553385 : f32
    %117 = vector.broadcast %cst_45 : f32 to vector<8x8xf32>
    %118 = arith.mulf %116, %117 : vector<8x8xf32>
    %119 = arith.addf %118, %6 : vector<8x8xf32>
    %cst_46 = arith.constant dense<0xFF800000> : vector<8xf32>
    %120 = vector.multi_reduction <maximumf>, %119, %cst_46 [1] : vector<8x8xf32> to vector<8xf32>
    %121 = vector.shape_cast %120 : vector<8xf32> to vector<8x1xf32>
    %122 = vector.broadcast %121 : vector<8x1xf32> to vector<8x8xf32>
    %123 = arith.subf %119, %122 : vector<8x8xf32>
    %124 = math.exp %123 : vector<8x8xf32>
    %cst_47 = arith.constant dense<0.000000e+00> : vector<8xf32>
    %125 = vector.multi_reduction <add>, %124, %cst_47 [1] : vector<8x8xf32> to vector<8xf32>
    %126 = vector.shape_cast %125 : vector<8xf32> to vector<8x1xf32>
    %127 = tpu.reciprocal %126 {approx = true} : vector<8x1xf32> -> vector<8x1xf32>
    %128 = vector.broadcast %127 : vector<8x1xf32> to vector<8x8xf32>
    %129 = arith.mulf %124, %128 : vector<8x8xf32>
    %130 = arith.truncf %129 : vector<8x8xf32> to vector<8x8xbf16>
    %cst_48 = arith.constant dense<0.000000e+00> : vector<8x8xf32>
    %131 = tpu.matmul %130, %115, %cst_48 {dimension_numbers = #tpu.dot_dimension_numbers<[1], [0], [0], [1], [0, 0, 1, 1], [], []>} : vector<8x8xbf16>, vector<8x8xbf16>, vector<8x8xf32> -> vector<8x8xf32>
    %132 = tpu.concatenate %65, %87, %109, %131 in 1 : vector<8x8xf32>, vector<8x8xf32>, vector<8x8xf32>, vector<8x8xf32> -> vector<8x32xf32>
    %133 = arith.truncf %132 : vector<8x32xf32> to vector<8x32xbf16>
    %cst_49 = arith.constant dense<0.000000e+00> : vector<8x32xf32>
    %134 = tpu.matmul %133, %14, %cst_49 {dimension_numbers = #tpu.dot_dimension_numbers<[1], [0], [0], [1], [0, 0, 1, 1], [], []>} : vector<8x32xbf16>, vector<32x32xbf16>, vector<8x32xf32> -> vector<8x32xf32>
    %135 = arith.addf %3, %134 : vector<8x32xf32>
    %136 = arith.mulf %135, %135 : vector<8x32xf32>
    %cst_50 = arith.constant dense<0.000000e+00> : vector<8xf32>
    %137 = vector.multi_reduction <add>, %136, %cst_50 [1] : vector<8x32xf32> to vector<8xf32>
    %138 = vector.shape_cast %137 : vector<8xf32> to vector<8x1xf32>
    %cst_51 = arith.constant 3.200000e+01 : f32
    %139 = vector.broadcast %cst_51 : f32 to vector<8x1xf32>
    %140 = arith.divf %138, %139 : vector<8x1xf32>
    %cst_52 = arith.constant 9.99999997E-7 : f32
    %141 = vector.broadcast %cst_52 : f32 to vector<8x1xf32>
    %142 = arith.addf %140, %141 : vector<8x1xf32>
    %143 = math.rsqrt %142 : vector<8x1xf32>
    %144 = vector.broadcast %143 : vector<8x1xf32> to vector<8x32xf32>
    %145 = arith.mulf %135, %144 : vector<8x32xf32>
    %146 = vector.broadcast %10 : vector<1x32xf32> to vector<8x32xf32>
    %147 = arith.mulf %145, %146 : vector<8x32xf32>
    %148 = arith.truncf %147 : vector<8x32xf32> to vector<8x32xbf16>
    %cst_53 = arith.constant dense<0.000000e+00> : vector<8x128xf32>
    %149 = tpu.matmul %148, %16, %cst_53 {dimension_numbers = #tpu.dot_dimension_numbers<[1], [0], [0], [1], [0, 0, 1, 1], [], []>} : vector<8x32xbf16>, vector<32x128xbf16>, vector<8x128xf32> -> vector<8x128xf32>
    %150 = vector.extract_strided_slice %149 {offsets = [0, 0], sizes = [8, 64], strides = [1, 1]} : vector<8x128xf32> to vector<8x64xf32>
    %151 = vector.extract_strided_slice %149 {offsets = [0, 64], sizes = [8, 64], strides = [1, 1]} : vector<8x128xf32> to vector<8x64xf32>
    %152 = arith.negf %150 : vector<8x64xf32>
    %153 = math.exp %152 : vector<8x64xf32>
    %cst_54 = arith.constant 1.000000e+00 : f32
    %154 = vector.broadcast %cst_54 : f32 to vector<8x64xf32>
    %155 = arith.addf %154, %153 : vector<8x64xf32>
    %156 = arith.divf %154, %155 : vector<8x64xf32>
    %157 = arith.mulf %150, %156 : vector<8x64xf32>
    %158 = arith.mulf %157, %151 : vector<8x64xf32>
    %159 = arith.truncf %158 : vector<8x64xf32> to vector<8x64xbf16>
    %cst_55 = arith.constant dense<0.000000e+00> : vector<8x32xf32>
    %160 = tpu.matmul %159, %18, %cst_55 {dimension_numbers = #tpu.dot_dimension_numbers<[1], [0], [0], [1], [0, 0, 1, 1], [], []>} : vector<8x64xbf16>, vector<64x32xbf16>, vector<8x32xf32> -> vector<8x32xf32>
    %161 = arith.addf %135, %160 : vector<8x32xf32>
    %c0_56 = arith.constant 0 : index
    %c0_57 = arith.constant 0 : index
    %162 = vector.load %arg18[%c0_56, %c0_57] : memref<8x32xf32, #tpu.memory_space<vmem>>, vector<8x32xf32>
    tpu.vector_store %arg18[%c0_56, %c0_57], %161 {strides = array<i32>} : memref<8x32xf32, #tpu.memory_space<vmem>>, vector<8x32xf32>,
    %c1_i32 = arith.constant 1 : i32
    %163 = arith.cmpi eq, %arg1, %c1_i32 : i32
    %164 = arith.extui %163 : i1 to i32
    %c0_i32_58 = arith.constant 0 : i32
    %165 = arith.cmpi ne, %164, %c0_i32_58 : i32
    scf.if %165 {
      %166 = arith.truncf %161 : vector<8x32xf32> to vector<8x32xbf16>
      %c0_59 = arith.constant 0 : index
      %c0_60 = arith.constant 0 : index
      %c0_61 = arith.constant 0 : index
      %167 = vector.load %arg15[%c0_59, %c0_60, %c0_61] : memref<1x8x32xbf16, #tpu.memory_space<vmem>>, vector<1x8x32xbf16>
      %168 = vector.shape_cast %167 : vector<1x8x32xbf16> to vector<8x32xbf16>
      %169 = vector.shape_cast %166 : vector<8x32xbf16> to vector<1x8x32xbf16>
      tpu.vector_store %arg15[%c0_59, %c0_60, %c0_61], %169 {strides = array<i32>} : memref<1x8x32xbf16, #tpu.memory_space<vmem>>, vector<1x8x32xbf16>,
      %c0_62 = arith.constant 0 : index
      %c0_63 = arith.constant 0 : index
      %170 = vector.load %arg13[%c0_62, %c0_63] : memref<1x32xf32, #tpu.memory_space<vmem>>, vector<1x32xf32>
      %c0_64 = arith.constant 0 : index
      %c0_65 = arith.constant 0 : index
      %171 = vector.load %arg14[%c0_64, %c0_65] : memref<32x64xbf16, #tpu.memory_space<vmem>>, vector<32x64xbf16>
      %c0_66 = arith.constant 0 : index
      %c0_67 = arith.constant 0 : index
      %c0_68 = arith.constant 0 : index
      %172 = vector.load %arg6[%c0_66, %c0_67, %c0_68] : memref<1x8x1xi32, #tpu.memory_space<vmem>>, vector<1x8x1xi32>
      %173 = vector.shape_cast %172 : vector<1x8x1xi32> to vector<8x1xi32>
      %174 = arith.mulf %161, %161 : vector<8x32xf32>
      %cst_69 = arith.constant dense<0.000000e+00> : vector<8xf32>
      %175 = vector.multi_reduction <add>, %174, %cst_69 [1] : vector<8x32xf32> to vector<8xf32>
      %176 = vector.shape_cast %175 : vector<8xf32> to vector<8x1xf32>
      %cst_70 = arith.constant 3.200000e+01 : f32
      %177 = vector.broadcast %cst_70 : f32 to vector<8x1xf32>
      %178 = arith.divf %176, %177 : vector<8x1xf32>
      %cst_71 = arith.constant 9.99999997E-7 : f32
      %179 = vector.broadcast %cst_71 : f32 to vector<8x1xf32>
      %180 = arith.addf %178, %179 : vector<8x1xf32>
      %181 = math.rsqrt %180 : vector<8x1xf32>
      %182 = vector.broadcast %181 : vector<8x1xf32> to vector<8x32xf32>
      %183 = arith.mulf %161, %182 : vector<8x32xf32>
      %184 = vector.broadcast %170 : vector<1x32xf32> to vector<8x32xf32>
      %185 = arith.mulf %183, %184 : vector<8x32xf32>
      %186 = arith.truncf %185 : vector<8x32xf32> to vector<8x32xbf16>
      %cst_72 = arith.constant dense<0.000000e+00> : vector<8x64xf32>
      %187 = tpu.matmul %186, %171, %cst_72 {dimension_numbers = #tpu.dot_dimension_numbers<[1], [0], [0], [1], [0, 0, 1, 1], [], []>} : vector<8x32xbf16>, vector<32x64xbf16>, vector<8x64xf32> -> vector<8x64xf32>
      %cst_73 = arith.constant dense<0xFF800000> : vector<8xf32>
      %188 = vector.multi_reduction <maximumf>, %187, %cst_73 [1] : vector<8x64xf32> to vector<8xf32>
      %189 = vector.shape_cast %188 : vector<8xf32> to vector<8x1xf32>
      %190 = vector.broadcast %189 : vector<8x1xf32> to vector<8x64xf32>
      %191 = arith.subf %187, %190 : vector<8x64xf32>
      %192 = math.exp %191 : vector<8x64xf32>
      %cst_74 = arith.constant dense<0.000000e+00> : vector<8xf32>
      %193 = vector.multi_reduction <add>, %192, %cst_74 [1] : vector<8x64xf32> to vector<8xf32>
      %194 = vector.shape_cast %193 : vector<8xf32> to vector<8x1xf32>
      %195 = math.log %194 : vector<8x1xf32>
      %196 = arith.addf %189, %195 : vector<8x1xf32>
      %197 = tpu.iota {dimensions = array<i32: 1>} : vector<8x64xi32>
      %198 = vector.broadcast %173 : vector<8x1xi32> to vector<8x64xi32>
      %199 = arith.cmpi eq, %197, %198 : vector<8x64xi32>
      %cst_75 = arith.constant 0.000000e+00 : f32
      %200 = vector.broadcast %cst_75 : f32 to vector<8x64xf32>
      %201 = arith.select %199, %187, %200 : vector<8x64xi1>, vector<8x64xf32>
      %cst_76 = arith.constant dense<0.000000e+00> : vector<8xf32>
      %202 = vector.multi_reduction <add>, %201, %cst_76 [1] : vector<8x64xf32> to vector<8xf32>
      %203 = vector.shape_cast %202 : vector<8xf32> to vector<8x1xf32>
      %204 = arith.subf %196, %203 : vector<8x1xf32>
      %cst_77 = arith.constant dense<0.000000e+00> : vector<1xf32>
      %205 = vector.multi_reduction <add>, %204, %cst_77 [0] : vector<8x1xf32> to vector<1xf32>
      %206 = vector.shape_cast %205 : vector<1xf32> to vector<1x1xf32>
      %cst_78 = arith.constant 8.000000e+00 : f32
      %207 = vector.broadcast %cst_78 : f32 to vector<1x1xf32>
      %208 = arith.divf %206, %207 : vector<1x1xf32>
      %209 = arith.truncf %187 : vector<8x64xf32> to vector<8x64xbf16>
      %c0_79 = arith.constant 0 : index
      %c0_80 = arith.constant 0 : index
      %c0_81 = arith.constant 0 : index
      %210 = vector.load %arg16[%c0_79, %c0_80, %c0_81] : memref<1x8x64xbf16, #tpu.memory_space<vmem>>, vector<1x8x64xbf16>
      %211 = vector.shape_cast %210 : vector<1x8x64xbf16> to vector<8x64xbf16>
      %212 = vector.shape_cast %209 : vector<8x64xbf16> to vector<1x8x64xbf16>
      tpu.vector_store %arg16[%c0_79, %c0_80, %c0_81], %212 {strides = array<i32>} : memref<1x8x64xbf16, #tpu.memory_space<vmem>>, vector<1x8x64xbf16>,
      %c0_82 = arith.constant 0 : index
      %c0_83 = arith.constant 0 : index
      %c0_84 = arith.constant 0 : index
      %213 = vector.load %arg17[%c0_82, %c0_83, %c0_84] : memref<1x1x1xf32, #tpu.memory_space<vmem>>, vector<1x1x1xf32>
      %214 = vector.shape_cast %213 : vector<1x1x1xf32> to vector<1x1xf32>
      %215 = vector.shape_cast %208 : vector<1x1xf32> to vector<1x1x1xf32>
      tpu.vector_store %arg17[%c0_82, %c0_83, %c0_84], %215 {strides = array<i32>} : memref<1x1x1xf32, #tpu.memory_space<vmem>>, vector<1x1x1xf32>,
    } else {
    }
    return
  }
  func.func @transform_0(%arg0: i32, %arg1: i32) -> (i32, i32, i32) {
    %c0_i32 = arith.constant 0 : i32
    %c0_i32_0 = arith.constant 0 : i32
    %c0_i32_1 = arith.constant 0 : i32
    return %arg0, %c0_i32, %c0_i32_0 : i32, i32, i32
  }
  func.func @transform_1(%arg0: i32, %arg1: i32) -> (i32, i32) {
    %c0_i32 = arith.constant 0 : i32
    %c0_i32_0 = arith.constant 0 : i32
    %c0_i32_1 = arith.constant 0 : i32
    return %c0_i32, %c0_i32_0 : i32, i32
  }
  func.func @transform_2(%arg0: i32, %arg1: i32) -> (i32, i32) {
    %c0_i32 = arith.constant 0 : i32
    %c0_i32_0 = arith.constant 0 : i32
    %c0_i32_1 = arith.constant 0 : i32
    return %c0_i32, %c0_i32_0 : i32, i32
  }
  func.func @transform_3(%arg0: i32, %arg1: i32) -> (i32, i32) {
    %c0_i32 = arith.constant 0 : i32
    %c0_i32_0 = arith.constant 0 : i32
    %c0_i32_1 = arith.constant 0 : i32
    return %c0_i32, %c0_i32_0 : i32, i32
  }
  func.func @transform_4(%arg0: i32, %arg1: i32) -> (i32, i32, i32) {
    %c0_i32 = arith.constant 0 : i32
    %c0_i32_0 = arith.constant 0 : i32
    %c0_i32_1 = arith.constant 0 : i32
    return %arg0, %c0_i32, %c0_i32_0 : i32, i32, i32
  }
  func.func @transform_5(%arg0: i32, %arg1: i32) -> (i32, i32, i32) {
    %c0_i32 = arith.constant 0 : i32
    %c0_i32_0 = arith.constant 0 : i32
    %c0_i32_1 = arith.constant 0 : i32
    return %arg1, %c0_i32, %c0_i32_0 : i32, i32, i32
  }
  func.func @transform_6(%arg0: i32, %arg1: i32) -> (i32, i32, i32) {
    %c0_i32 = arith.constant 0 : i32
    %c0_i32_0 = arith.constant 0 : i32
    %c0_i32_1 = arith.constant 0 : i32
    return %arg1, %c0_i32, %c0_i32_0 : i32, i32, i32
  }
  func.func @transform_7(%arg0: i32, %arg1: i32) -> (i32, i32, i32) {
    %c0_i32 = arith.constant 0 : i32
    %c0_i32_0 = arith.constant 0 : i32
    %c0_i32_1 = arith.constant 0 : i32
    return %arg1, %c0_i32, %c0_i32_0 : i32, i32, i32
  }
  func.func @transform_8(%arg0: i32, %arg1: i32) -> (i32, i32, i32) {
    %c0_i32 = arith.constant 0 : i32
    %c0_i32_0 = arith.constant 0 : i32
    %c0_i32_1 = arith.constant 0 : i32
    return %arg1, %c0_i32, %c0_i32_0 : i32, i32, i32
  }
  func.func @transform_9(%arg0: i32, %arg1: i32) -> (i32, i32, i32) {
    %c0_i32 = arith.constant 0 : i32
    %c0_i32_0 = arith.constant 0 : i32
    %c0_i32_1 = arith.constant 0 : i32
    return %arg1, %c0_i32, %c0_i32_0 : i32, i32, i32
  }
  func.func @transform_10(%arg0: i32, %arg1: i32) -> (i32, i32, i32) {
    %c0_i32 = arith.constant 0 : i32
    %c0_i32_0 = arith.constant 0 : i32
    %c0_i32_1 = arith.constant 0 : i32
    return %arg1, %c0_i32, %c0_i32_0 : i32, i32, i32
  }
  func.func @transform_11(%arg0: i32, %arg1: i32) -> (i32, i32) {
    %c0_i32 = arith.constant 0 : i32
    %c0_i32_0 = arith.constant 0 : i32
    %c0_i32_1 = arith.constant 0 : i32
    return %c0_i32, %c0_i32_0 : i32, i32
  }
  func.func @transform_12(%arg0: i32, %arg1: i32) -> (i32, i32) {
    %c0_i32 = arith.constant 0 : i32
    %c0_i32_0 = arith.constant 0 : i32
    %c0_i32_1 = arith.constant 0 : i32
    return %c0_i32, %c0_i32_0 : i32, i32
  }
  func.func @transform_13(%arg0: i32, %arg1: i32) -> (i32, i32, i32) {
    %c0_i32 = arith.constant 0 : i32
    %c0_i32_0 = arith.constant 0 : i32
    %c0_i32_1 = arith.constant 0 : i32
    return %arg0, %c0_i32, %c0_i32_0 : i32, i32, i32
  }
  func.func @transform_14(%arg0: i32, %arg1: i32) -> (i32, i32, i32) {
    %c0_i32 = arith.constant 0 : i32
    %c0_i32_0 = arith.constant 0 : i32
    %c0_i32_1 = arith.constant 0 : i32
    return %arg0, %c0_i32, %c0_i32_0 : i32, i32, i32
  }
  func.func @transform_15(%arg0: i32, %arg1: i32) -> (i32, i32, i32) {
    %c0_i32 = arith.constant 0 : i32
    %c0_i32_0 = arith.constant 0 : i32
    %c0_i32_1 = arith.constant 0 : i32
    return %arg0, %c0_i32, %c0_i32_0 : i32, i32, i32
  }
}

module attributes {stable_mosaic.version = 11 : i64} {
  func.func @_fused_mtp_kernel(%arg0: i32, %arg1: i32, %arg2: memref<1x7x32xbf16, #tpu.memory_space<vmem>>, %arg3: memref<1x7x32xbf16, #tpu.memory_space<vmem>>, %arg4: memref<7x32xf32, #tpu.memory_space<vmem>>, %arg5: memref<7x32xf32, #tpu.memory_space<vmem>>, %arg6: memref<7x7xf32, #tpu.memory_space<vmem>>, %arg7: memref<1x7x1xi32, #tpu.memory_space<vmem>>, %arg8: memref<1x32xf32, #tpu.memory_space<vmem>>, %arg9: memref<1x32xf32, #tpu.memory_space<vmem>>, %arg10: memref<32x32xbf16, #tpu.memory_space<vmem>>, %arg11: memref<32x32xbf16, #tpu.memory_space<vmem>>, %arg12: memref<1x1x32xf32, #tpu.memory_space<vmem>>, %arg13: memref<1x1x32xf32, #tpu.memory_space<vmem>>, %arg14: memref<1x32x160xbf16, #tpu.memory_space<vmem>>, %arg15: memref<1x32x32xbf16, #tpu.memory_space<vmem>>, %arg16: memref<1x32x128xbf16, #tpu.memory_space<vmem>>, %arg17: memref<1x64x32xbf16, #tpu.memory_space<vmem>>, %arg18: memref<1x32xf32, #tpu.memory_space<vmem>>, %arg19: memref<32x64xbf16, #tpu.memory_space<vmem>>, %arg20: memref<1x7x32xbf16, #tpu.memory_space<vmem>>, %arg21: memref<1x1x1xf32, #tpu.memory_space<vmem>>, %arg22: memref<7x32xf32, #tpu.memory_space<vmem>>) attributes {dimension_semantics = [#tpu.dimension_semantics<parallel>, #tpu.dimension_semantics<arbitrary>], iteration_bounds = array<i64: 2, 1>, scalar_prefetch = 0 : i64, scratch_operands = 1 : i64, tpu.core_type = #tpu.core_type<tc>, window_params = [{transform_indices = @transform_0, window_bounds = array<i64: 1, 7, 32>}, {transform_indices = @transform_1, window_bounds = array<i64: 1, 7, 32>}, {pipeline_mode = #tpu.pipeline_mode<synchronous>, transform_indices = @transform_2, window_bounds = array<i64: 7, 32>}, {pipeline_mode = #tpu.pipeline_mode<synchronous>, transform_indices = @transform_3, window_bounds = array<i64: 7, 32>}, {pipeline_mode = #tpu.pipeline_mode<synchronous>, transform_indices = @transform_4, window_bounds = array<i64: 7, 7>}, {transform_indices = @transform_5, window_bounds = array<i64: 1, 7, 1>}, {pipeline_mode = #tpu.pipeline_mode<synchronous>, transform_indices = @transform_6, window_bounds = array<i64: 1, 32>}, {pipeline_mode = #tpu.pipeline_mode<synchronous>, transform_indices = @transform_7, window_bounds = array<i64: 1, 32>}, {pipeline_mode = #tpu.pipeline_mode<synchronous>, transform_indices = @transform_8, window_bounds = array<i64: 32, 32>}, {pipeline_mode = #tpu.pipeline_mode<synchronous>, transform_indices = @transform_9, window_bounds = array<i64: 32, 32>}, {transform_indices = @transform_10, window_bounds = array<i64: 1, 1, 32>}, {transform_indices = @transform_11, window_bounds = array<i64: 1, 1, 32>}, {transform_indices = @transform_12, window_bounds = array<i64: 1, 32, 160>}, {transform_indices = @transform_13, window_bounds = array<i64: 1, 32, 32>}, {transform_indices = @transform_14, window_bounds = array<i64: 1, 32, 128>}, {transform_indices = @transform_15, window_bounds = array<i64: 1, 64, 32>}, {pipeline_mode = #tpu.pipeline_mode<synchronous>, transform_indices = @transform_16, window_bounds = array<i64: 1, 32>}, {pipeline_mode = #tpu.pipeline_mode<synchronous>, transform_indices = @transform_17, window_bounds = array<i64: 32, 64>}, {transform_indices = @transform_18, window_bounds = array<i64: 1, 7, 32>}, {transform_indices = @transform_19, window_bounds = array<i64: 1, 1, 1>}]} {
    %c0_i32 = arith.constant 0 : i32
    %0 = arith.cmpi eq, %arg1, %c0_i32 : i32
    %1 = arith.extui %0 : i1 to i32
    %c0_i32_0 = arith.constant 0 : i32
    %2 = arith.cmpi ne, %1, %c0_i32_0 : i32
    scf.if %2 {
      %c0_60 = arith.constant 0 : index
      %c0_61 = arith.constant 0 : index
      %c0_62 = arith.constant 0 : index
      %166 = vector.load %arg2[%c0_60, %c0_61, %c0_62] : memref<1x7x32xbf16, #tpu.memory_space<vmem>>, vector<1x7x32xbf16>
      %167 = vector.shape_cast %166 : vector<1x7x32xbf16> to vector<7x32xbf16>
      %168 = arith.extf %167 : vector<7x32xbf16> to vector<7x32xf32>
      %c0_63 = arith.constant 0 : index
      %c0_64 = arith.constant 0 : index
      %c0_65 = arith.constant 0 : index
      %169 = vector.load %arg3[%c0_63, %c0_64, %c0_65] : memref<1x7x32xbf16, #tpu.memory_space<vmem>>, vector<1x7x32xbf16>
      %170 = vector.shape_cast %169 : vector<1x7x32xbf16> to vector<7x32xbf16>
      %171 = arith.extf %170 : vector<7x32xbf16> to vector<7x32xf32>
      %c0_66 = arith.constant 0 : index
      %c0_67 = arith.constant 0 : index
      %172 = vector.load %arg8[%c0_66, %c0_67] : memref<1x32xf32, #tpu.memory_space<vmem>>, vector<1x32xf32>
      %173 = arith.mulf %168, %168 : vector<7x32xf32>
      %cst_68 = arith.constant dense<0.000000e+00> : vector<7xf32>
      %174 = vector.multi_reduction <add>, %173, %cst_68 [1] : vector<7x32xf32> to vector<7xf32>
      %175 = vector.shape_cast %174 : vector<7xf32> to vector<7x1xf32>
      %cst_69 = arith.constant 3.200000e+01 : f32
      %176 = vector.broadcast %cst_69 : f32 to vector<7x1xf32>
      %177 = arith.divf %175, %176 : vector<7x1xf32>
      %cst_70 = arith.constant 9.99999997E-7 : f32
      %178 = vector.broadcast %cst_70 : f32 to vector<7x1xf32>
      %179 = arith.addf %177, %178 : vector<7x1xf32>
      %180 = math.rsqrt %179 : vector<7x1xf32>
      %181 = vector.broadcast %180 : vector<7x1xf32> to vector<7x32xf32>
      %182 = arith.mulf %168, %181 : vector<7x32xf32>
      %183 = vector.broadcast %172 : vector<1x32xf32> to vector<7x32xf32>
      %184 = arith.mulf %182, %183 : vector<7x32xf32>
      %c0_71 = arith.constant 0 : index
      %c0_72 = arith.constant 0 : index
      %185 = vector.load %arg9[%c0_71, %c0_72] : memref<1x32xf32, #tpu.memory_space<vmem>>, vector<1x32xf32>
      %186 = arith.mulf %171, %171 : vector<7x32xf32>
      %cst_73 = arith.constant dense<0.000000e+00> : vector<7xf32>
      %187 = vector.multi_reduction <add>, %186, %cst_73 [1] : vector<7x32xf32> to vector<7xf32>
      %188 = vector.shape_cast %187 : vector<7xf32> to vector<7x1xf32>
      %cst_74 = arith.constant 3.200000e+01 : f32
      %189 = vector.broadcast %cst_74 : f32 to vector<7x1xf32>
      %190 = arith.divf %188, %189 : vector<7x1xf32>
      %cst_75 = arith.constant 9.99999997E-7 : f32
      %191 = vector.broadcast %cst_75 : f32 to vector<7x1xf32>
      %192 = arith.addf %190, %191 : vector<7x1xf32>
      %193 = math.rsqrt %192 : vector<7x1xf32>
      %194 = vector.broadcast %193 : vector<7x1xf32> to vector<7x32xf32>
      %195 = arith.mulf %171, %194 : vector<7x32xf32>
      %196 = vector.broadcast %185 : vector<1x32xf32> to vector<7x32xf32>
      %197 = arith.mulf %195, %196 : vector<7x32xf32>
      %198 = arith.truncf %184 : vector<7x32xf32> to vector<7x32xbf16>
      %c0_76 = arith.constant 0 : index
      %c0_77 = arith.constant 0 : index
      %199 = vector.load %arg10[%c0_76, %c0_77] : memref<32x32xbf16, #tpu.memory_space<vmem>>, vector<32x32xbf16>
      %cst_78 = arith.constant dense<0.000000e+00> : vector<7x32xf32>
      %200 = tpu.matmul %198, %199, %cst_78 {dimension_numbers = #tpu.dot_dimension_numbers<[1], [0], [0], [1], [0, 0, 1, 1], [], []>} : vector<7x32xbf16>, vector<32x32xbf16>, vector<7x32xf32> -> vector<7x32xf32>
      %201 = arith.truncf %197 : vector<7x32xf32> to vector<7x32xbf16>
      %c0_79 = arith.constant 0 : index
      %c0_80 = arith.constant 0 : index
      %202 = vector.load %arg11[%c0_79, %c0_80] : memref<32x32xbf16, #tpu.memory_space<vmem>>, vector<32x32xbf16>
      %cst_81 = arith.constant dense<0.000000e+00> : vector<7x32xf32>
      %203 = tpu.matmul %201, %202, %cst_81 {dimension_numbers = #tpu.dot_dimension_numbers<[1], [0], [0], [1], [0, 0, 1, 1], [], []>} : vector<7x32xbf16>, vector<32x32xbf16>, vector<7x32xf32> -> vector<7x32xf32>
      %204 = arith.addf %200, %203 : vector<7x32xf32>
      %c0_82 = arith.constant 0 : index
      %c0_83 = arith.constant 0 : index
      %205 = vector.load %arg22[%c0_82, %c0_83] : memref<7x32xf32, #tpu.memory_space<vmem>>, vector<7x32xf32>
      tpu.vector_store %arg22[%c0_82, %c0_83], %204 {strides = array<i32>} : memref<7x32xf32, #tpu.memory_space<vmem>>, vector<7x32xf32>,
    } else {
    }
    %c0 = arith.constant 0 : index
    %c0_1 = arith.constant 0 : index
    %3 = vector.load %arg22[%c0, %c0_1] : memref<7x32xf32, #tpu.memory_space<vmem>>, vector<7x32xf32>
    %c0_2 = arith.constant 0 : index
    %c0_3 = arith.constant 0 : index
    %4 = vector.load %arg4[%c0_2, %c0_3] : memref<7x32xf32, #tpu.memory_space<vmem>>, vector<7x32xf32>
    %c0_4 = arith.constant 0 : index
    %c0_5 = arith.constant 0 : index
    %5 = vector.load %arg5[%c0_4, %c0_5] : memref<7x32xf32, #tpu.memory_space<vmem>>, vector<7x32xf32>
    %c0_6 = arith.constant 0 : index
    %c0_7 = arith.constant 0 : index
    %6 = vector.load %arg6[%c0_6, %c0_7] : memref<7x7xf32, #tpu.memory_space<vmem>>, vector<7x7xf32>
    %c0_8 = arith.constant 0 : index
    %c0_9 = arith.constant 0 : index
    %c0_10 = arith.constant 0 : index
    %7 = vector.load %arg12[%c0_8, %c0_9, %c0_10] : memref<1x1x32xf32, #tpu.memory_space<vmem>>, vector<1x1x32xf32>
    %8 = vector.shape_cast %7 : vector<1x1x32xf32> to vector<1x32xf32>
    %c0_11 = arith.constant 0 : index
    %c0_12 = arith.constant 0 : index
    %c0_13 = arith.constant 0 : index
    %9 = vector.load %arg13[%c0_11, %c0_12, %c0_13] : memref<1x1x32xf32, #tpu.memory_space<vmem>>, vector<1x1x32xf32>
    %10 = vector.shape_cast %9 : vector<1x1x32xf32> to vector<1x32xf32>
    %c0_14 = arith.constant 0 : index
    %c0_15 = arith.constant 0 : index
    %c0_16 = arith.constant 0 : index
    %11 = vector.load %arg14[%c0_14, %c0_15, %c0_16] : memref<1x32x160xbf16, #tpu.memory_space<vmem>>, vector<1x32x160xbf16>
    %12 = vector.shape_cast %11 : vector<1x32x160xbf16> to vector<32x160xbf16>
    %c0_17 = arith.constant 0 : index
    %c0_18 = arith.constant 0 : index
    %c0_19 = arith.constant 0 : index
    %13 = vector.load %arg15[%c0_17, %c0_18, %c0_19] : memref<1x32x32xbf16, #tpu.memory_space<vmem>>, vector<1x32x32xbf16>
    %14 = vector.shape_cast %13 : vector<1x32x32xbf16> to vector<32x32xbf16>
    %c0_20 = arith.constant 0 : index
    %c0_21 = arith.constant 0 : index
    %c0_22 = arith.constant 0 : index
    %15 = vector.load %arg16[%c0_20, %c0_21, %c0_22] : memref<1x32x128xbf16, #tpu.memory_space<vmem>>, vector<1x32x128xbf16>
    %16 = vector.shape_cast %15 : vector<1x32x128xbf16> to vector<32x128xbf16>
    %c0_23 = arith.constant 0 : index
    %c0_24 = arith.constant 0 : index
    %c0_25 = arith.constant 0 : index
    %17 = vector.load %arg17[%c0_23, %c0_24, %c0_25] : memref<1x64x32xbf16, #tpu.memory_space<vmem>>, vector<1x64x32xbf16>
    %18 = vector.shape_cast %17 : vector<1x64x32xbf16> to vector<64x32xbf16>
    %19 = arith.mulf %3, %3 : vector<7x32xf32>
    %cst = arith.constant dense<0.000000e+00> : vector<7xf32>
    %20 = vector.multi_reduction <add>, %19, %cst [1] : vector<7x32xf32> to vector<7xf32>
    %21 = vector.shape_cast %20 : vector<7xf32> to vector<7x1xf32>
    %cst_26 = arith.constant 3.200000e+01 : f32
    %22 = vector.broadcast %cst_26 : f32 to vector<7x1xf32>
    %23 = arith.divf %21, %22 : vector<7x1xf32>
    %cst_27 = arith.constant 9.99999997E-7 : f32
    %24 = vector.broadcast %cst_27 : f32 to vector<7x1xf32>
    %25 = arith.addf %23, %24 : vector<7x1xf32>
    %26 = math.rsqrt %25 : vector<7x1xf32>
    %27 = vector.broadcast %26 : vector<7x1xf32> to vector<7x32xf32>
    %28 = arith.mulf %3, %27 : vector<7x32xf32>
    %29 = vector.broadcast %8 : vector<1x32xf32> to vector<7x32xf32>
    %30 = arith.mulf %28, %29 : vector<7x32xf32>
    %31 = arith.truncf %30 : vector<7x32xf32> to vector<7x32xbf16>
    %cst_28 = arith.constant dense<0.000000e+00> : vector<7x160xf32>
    %32 = tpu.matmul %31, %12, %cst_28 {dimension_numbers = #tpu.dot_dimension_numbers<[1], [0], [0], [1], [0, 0, 1, 1], [], []>} : vector<7x32xbf16>, vector<32x160xbf16>, vector<7x160xf32> -> vector<7x160xf32>
    %33 = vector.extract_strided_slice %32 {offsets = [0, 0], sizes = [7, 32], strides = [1, 1]} : vector<7x160xf32> to vector<7x32xf32>
    %34 = arith.mulf %33, %4 : vector<7x32xf32>
    %35 = vector.extract_strided_slice %32 {offsets = [0, 32], sizes = [7, 32], strides = [1, 1]} : vector<7x160xf32> to vector<7x32xf32>
    %36 = arith.mulf %35, %5 : vector<7x32xf32>
    %37 = arith.addf %34, %36 : vector<7x32xf32>
    %38 = vector.extract_strided_slice %32 {offsets = [0, 64], sizes = [7, 32], strides = [1, 1]} : vector<7x160xf32> to vector<7x32xf32>
    %39 = arith.mulf %38, %4 : vector<7x32xf32>
    %40 = vector.extract_strided_slice %32 {offsets = [0, 96], sizes = [7, 32], strides = [1, 1]} : vector<7x160xf32> to vector<7x32xf32>
    %41 = arith.mulf %40, %5 : vector<7x32xf32>
    %42 = arith.addf %39, %41 : vector<7x32xf32>
    %43 = vector.extract_strided_slice %32 {offsets = [0, 128], sizes = [7, 32], strides = [1, 1]} : vector<7x160xf32> to vector<7x32xf32>
    %44 = vector.extract_strided_slice %37 {offsets = [0, 0], sizes = [7, 8], strides = [1, 1]} : vector<7x32xf32> to vector<7x8xf32>
    %45 = arith.truncf %44 : vector<7x8xf32> to vector<7x8xbf16>
    %46 = vector.extract_strided_slice %42 {offsets = [0, 0], sizes = [7, 8], strides = [1, 1]} : vector<7x32xf32> to vector<7x8xf32>
    %47 = arith.truncf %46 : vector<7x8xf32> to vector<7x8xbf16>
    %48 = vector.extract_strided_slice %43 {offsets = [0, 0], sizes = [7, 8], strides = [1, 1]} : vector<7x32xf32> to vector<7x8xf32>
    %49 = arith.truncf %48 : vector<7x8xf32> to vector<7x8xbf16>
    %cst_29 = arith.constant dense<0.000000e+00> : vector<7x7xf32>
    %50 = tpu.matmul %45, %47, %cst_29 {dimension_numbers = #tpu.dot_dimension_numbers<[1], [1], [0], [0], [0, 0, 1, 0], [], []>} : vector<7x8xbf16>, vector<7x8xbf16>, vector<7x7xf32> -> vector<7x7xf32>
    %cst_30 = arith.constant 0.353553385 : f32
    %51 = vector.broadcast %cst_30 : f32 to vector<7x7xf32>
    %52 = arith.mulf %50, %51 : vector<7x7xf32>
    %53 = arith.addf %52, %6 : vector<7x7xf32>
    %cst_31 = arith.constant dense<0xFF800000> : vector<7xf32>
    %54 = vector.multi_reduction <maximumf>, %53, %cst_31 [1] : vector<7x7xf32> to vector<7xf32>
    %55 = vector.shape_cast %54 : vector<7xf32> to vector<7x1xf32>
    %56 = vector.broadcast %55 : vector<7x1xf32> to vector<7x7xf32>
    %57 = arith.subf %53, %56 : vector<7x7xf32>
    %58 = math.exp %57 : vector<7x7xf32>
    %cst_32 = arith.constant dense<0.000000e+00> : vector<7xf32>
    %59 = vector.multi_reduction <add>, %58, %cst_32 [1] : vector<7x7xf32> to vector<7xf32>
    %60 = vector.shape_cast %59 : vector<7xf32> to vector<7x1xf32>
    %61 = tpu.reciprocal %60 {approx = true} : vector<7x1xf32> -> vector<7x1xf32>
    %62 = vector.broadcast %61 : vector<7x1xf32> to vector<7x7xf32>
    %63 = arith.mulf %58, %62 : vector<7x7xf32>
    %64 = arith.truncf %63 : vector<7x7xf32> to vector<7x7xbf16>
    %cst_33 = arith.constant dense<0.000000e+00> : vector<7x8xf32>
    %65 = tpu.matmul %64, %49, %cst_33 {dimension_numbers = #tpu.dot_dimension_numbers<[1], [0], [0], [1], [0, 0, 1, 1], [], []>} : vector<7x7xbf16>, vector<7x8xbf16>, vector<7x8xf32> -> vector<7x8xf32>
    %66 = vector.extract_strided_slice %37 {offsets = [0, 8], sizes = [7, 8], strides = [1, 1]} : vector<7x32xf32> to vector<7x8xf32>
    %67 = arith.truncf %66 : vector<7x8xf32> to vector<7x8xbf16>
    %68 = vector.extract_strided_slice %42 {offsets = [0, 8], sizes = [7, 8], strides = [1, 1]} : vector<7x32xf32> to vector<7x8xf32>
    %69 = arith.truncf %68 : vector<7x8xf32> to vector<7x8xbf16>
    %70 = vector.extract_strided_slice %43 {offsets = [0, 8], sizes = [7, 8], strides = [1, 1]} : vector<7x32xf32> to vector<7x8xf32>
    %71 = arith.truncf %70 : vector<7x8xf32> to vector<7x8xbf16>
    %cst_34 = arith.constant dense<0.000000e+00> : vector<7x7xf32>
    %72 = tpu.matmul %67, %69, %cst_34 {dimension_numbers = #tpu.dot_dimension_numbers<[1], [1], [0], [0], [0, 0, 1, 0], [], []>} : vector<7x8xbf16>, vector<7x8xbf16>, vector<7x7xf32> -> vector<7x7xf32>
    %cst_35 = arith.constant 0.353553385 : f32
    %73 = vector.broadcast %cst_35 : f32 to vector<7x7xf32>
    %74 = arith.mulf %72, %73 : vector<7x7xf32>
    %75 = arith.addf %74, %6 : vector<7x7xf32>
    %cst_36 = arith.constant dense<0xFF800000> : vector<7xf32>
    %76 = vector.multi_reduction <maximumf>, %75, %cst_36 [1] : vector<7x7xf32> to vector<7xf32>
    %77 = vector.shape_cast %76 : vector<7xf32> to vector<7x1xf32>
    %78 = vector.broadcast %77 : vector<7x1xf32> to vector<7x7xf32>
    %79 = arith.subf %75, %78 : vector<7x7xf32>
    %80 = math.exp %79 : vector<7x7xf32>
    %cst_37 = arith.constant dense<0.000000e+00> : vector<7xf32>
    %81 = vector.multi_reduction <add>, %80, %cst_37 [1] : vector<7x7xf32> to vector<7xf32>
    %82 = vector.shape_cast %81 : vector<7xf32> to vector<7x1xf32>
    %83 = tpu.reciprocal %82 {approx = true} : vector<7x1xf32> -> vector<7x1xf32>
    %84 = vector.broadcast %83 : vector<7x1xf32> to vector<7x7xf32>
    %85 = arith.mulf %80, %84 : vector<7x7xf32>
    %86 = arith.truncf %85 : vector<7x7xf32> to vector<7x7xbf16>
    %cst_38 = arith.constant dense<0.000000e+00> : vector<7x8xf32>
    %87 = tpu.matmul %86, %71, %cst_38 {dimension_numbers = #tpu.dot_dimension_numbers<[1], [0], [0], [1], [0, 0, 1, 1], [], []>} : vector<7x7xbf16>, vector<7x8xbf16>, vector<7x8xf32> -> vector<7x8xf32>
    %88 = vector.extract_strided_slice %37 {offsets = [0, 16], sizes = [7, 8], strides = [1, 1]} : vector<7x32xf32> to vector<7x8xf32>
    %89 = arith.truncf %88 : vector<7x8xf32> to vector<7x8xbf16>
    %90 = vector.extract_strided_slice %42 {offsets = [0, 16], sizes = [7, 8], strides = [1, 1]} : vector<7x32xf32> to vector<7x8xf32>
    %91 = arith.truncf %90 : vector<7x8xf32> to vector<7x8xbf16>
    %92 = vector.extract_strided_slice %43 {offsets = [0, 16], sizes = [7, 8], strides = [1, 1]} : vector<7x32xf32> to vector<7x8xf32>
    %93 = arith.truncf %92 : vector<7x8xf32> to vector<7x8xbf16>
    %cst_39 = arith.constant dense<0.000000e+00> : vector<7x7xf32>
    %94 = tpu.matmul %89, %91, %cst_39 {dimension_numbers = #tpu.dot_dimension_numbers<[1], [1], [0], [0], [0, 0, 1, 0], [], []>} : vector<7x8xbf16>, vector<7x8xbf16>, vector<7x7xf32> -> vector<7x7xf32>
    %cst_40 = arith.constant 0.353553385 : f32
    %95 = vector.broadcast %cst_40 : f32 to vector<7x7xf32>
    %96 = arith.mulf %94, %95 : vector<7x7xf32>
    %97 = arith.addf %96, %6 : vector<7x7xf32>
    %cst_41 = arith.constant dense<0xFF800000> : vector<7xf32>
    %98 = vector.multi_reduction <maximumf>, %97, %cst_41 [1] : vector<7x7xf32> to vector<7xf32>
    %99 = vector.shape_cast %98 : vector<7xf32> to vector<7x1xf32>
    %100 = vector.broadcast %99 : vector<7x1xf32> to vector<7x7xf32>
    %101 = arith.subf %97, %100 : vector<7x7xf32>
    %102 = math.exp %101 : vector<7x7xf32>
    %cst_42 = arith.constant dense<0.000000e+00> : vector<7xf32>
    %103 = vector.multi_reduction <add>, %102, %cst_42 [1] : vector<7x7xf32> to vector<7xf32>
    %104 = vector.shape_cast %103 : vector<7xf32> to vector<7x1xf32>
    %105 = tpu.reciprocal %104 {approx = true} : vector<7x1xf32> -> vector<7x1xf32>
    %106 = vector.broadcast %105 : vector<7x1xf32> to vector<7x7xf32>
    %107 = arith.mulf %102, %106 : vector<7x7xf32>
    %108 = arith.truncf %107 : vector<7x7xf32> to vector<7x7xbf16>
    %cst_43 = arith.constant dense<0.000000e+00> : vector<7x8xf32>
    %109 = tpu.matmul %108, %93, %cst_43 {dimension_numbers = #tpu.dot_dimension_numbers<[1], [0], [0], [1], [0, 0, 1, 1], [], []>} : vector<7x7xbf16>, vector<7x8xbf16>, vector<7x8xf32> -> vector<7x8xf32>
    %110 = vector.extract_strided_slice %37 {offsets = [0, 24], sizes = [7, 8], strides = [1, 1]} : vector<7x32xf32> to vector<7x8xf32>
    %111 = arith.truncf %110 : vector<7x8xf32> to vector<7x8xbf16>
    %112 = vector.extract_strided_slice %42 {offsets = [0, 24], sizes = [7, 8], strides = [1, 1]} : vector<7x32xf32> to vector<7x8xf32>
    %113 = arith.truncf %112 : vector<7x8xf32> to vector<7x8xbf16>
    %114 = vector.extract_strided_slice %43 {offsets = [0, 24], sizes = [7, 8], strides = [1, 1]} : vector<7x32xf32> to vector<7x8xf32>
    %115 = arith.truncf %114 : vector<7x8xf32> to vector<7x8xbf16>
    %cst_44 = arith.constant dense<0.000000e+00> : vector<7x7xf32>
    %116 = tpu.matmul %111, %113, %cst_44 {dimension_numbers = #tpu.dot_dimension_numbers<[1], [1], [0], [0], [0, 0, 1, 0], [], []>} : vector<7x8xbf16>, vector<7x8xbf16>, vector<7x7xf32> -> vector<7x7xf32>
    %cst_45 = arith.constant 0.353553385 : f32
    %117 = vector.broadcast %cst_45 : f32 to vector<7x7xf32>
    %118 = arith.mulf %116, %117 : vector<7x7xf32>
    %119 = arith.addf %118, %6 : vector<7x7xf32>
    %cst_46 = arith.constant dense<0xFF800000> : vector<7xf32>
    %120 = vector.multi_reduction <maximumf>, %119, %cst_46 [1] : vector<7x7xf32> to vector<7xf32>
    %121 = vector.shape_cast %120 : vector<7xf32> to vector<7x1xf32>
    %122 = vector.broadcast %121 : vector<7x1xf32> to vector<7x7xf32>
    %123 = arith.subf %119, %122 : vector<7x7xf32>
    %124 = math.exp %123 : vector<7x7xf32>
    %cst_47 = arith.constant dense<0.000000e+00> : vector<7xf32>
    %125 = vector.multi_reduction <add>, %124, %cst_47 [1] : vector<7x7xf32> to vector<7xf32>
    %126 = vector.shape_cast %125 : vector<7xf32> to vector<7x1xf32>
    %127 = tpu.reciprocal %126 {approx = true} : vector<7x1xf32> -> vector<7x1xf32>
    %128 = vector.broadcast %127 : vector<7x1xf32> to vector<7x7xf32>
    %129 = arith.mulf %124, %128 : vector<7x7xf32>
    %130 = arith.truncf %129 : vector<7x7xf32> to vector<7x7xbf16>
    %cst_48 = arith.constant dense<0.000000e+00> : vector<7x8xf32>
    %131 = tpu.matmul %130, %115, %cst_48 {dimension_numbers = #tpu.dot_dimension_numbers<[1], [0], [0], [1], [0, 0, 1, 1], [], []>} : vector<7x7xbf16>, vector<7x8xbf16>, vector<7x8xf32> -> vector<7x8xf32>
    %132 = tpu.concatenate %65, %87, %109, %131 in 1 : vector<7x8xf32>, vector<7x8xf32>, vector<7x8xf32>, vector<7x8xf32> -> vector<7x32xf32>
    %133 = arith.truncf %132 : vector<7x32xf32> to vector<7x32xbf16>
    %cst_49 = arith.constant dense<0.000000e+00> : vector<7x32xf32>
    %134 = tpu.matmul %133, %14, %cst_49 {dimension_numbers = #tpu.dot_dimension_numbers<[1], [0], [0], [1], [0, 0, 1, 1], [], []>} : vector<7x32xbf16>, vector<32x32xbf16>, vector<7x32xf32> -> vector<7x32xf32>
    %135 = arith.addf %3, %134 : vector<7x32xf32>
    %136 = arith.mulf %135, %135 : vector<7x32xf32>
    %cst_50 = arith.constant dense<0.000000e+00> : vector<7xf32>
    %137 = vector.multi_reduction <add>, %136, %cst_50 [1] : vector<7x32xf32> to vector<7xf32>
    %138 = vector.shape_cast %137 : vector<7xf32> to vector<7x1xf32>
    %cst_51 = arith.constant 3.200000e+01 : f32
    %139 = vector.broadcast %cst_51 : f32 to vector<7x1xf32>
    %140 = arith.divf %138, %139 : vector<7x1xf32>
    %cst_52 = arith.constant 9.99999997E-7 : f32
    %141 = vector.broadcast %cst_52 : f32 to vector<7x1xf32>
    %142 = arith.addf %140, %141 : vector<7x1xf32>
    %143 = math.rsqrt %142 : vector<7x1xf32>
    %144 = vector.broadcast %143 : vector<7x1xf32> to vector<7x32xf32>
    %145 = arith.mulf %135, %144 : vector<7x32xf32>
    %146 = vector.broadcast %10 : vector<1x32xf32> to vector<7x32xf32>
    %147 = arith.mulf %145, %146 : vector<7x32xf32>
    %148 = arith.truncf %147 : vector<7x32xf32> to vector<7x32xbf16>
    %cst_53 = arith.constant dense<0.000000e+00> : vector<7x128xf32>
    %149 = tpu.matmul %148, %16, %cst_53 {dimension_numbers = #tpu.dot_dimension_numbers<[1], [0], [0], [1], [0, 0, 1, 1], [], []>} : vector<7x32xbf16>, vector<32x128xbf16>, vector<7x128xf32> -> vector<7x128xf32>
    %150 = vector.extract_strided_slice %149 {offsets = [0, 0], sizes = [7, 64], strides = [1, 1]} : vector<7x128xf32> to vector<7x64xf32>
    %151 = vector.extract_strided_slice %149 {offsets = [0, 64], sizes = [7, 64], strides = [1, 1]} : vector<7x128xf32> to vector<7x64xf32>
    %152 = arith.negf %150 : vector<7x64xf32>
    %153 = math.exp %152 : vector<7x64xf32>
    %cst_54 = arith.constant 1.000000e+00 : f32
    %154 = vector.broadcast %cst_54 : f32 to vector<7x64xf32>
    %155 = arith.addf %154, %153 : vector<7x64xf32>
    %156 = arith.divf %154, %155 : vector<7x64xf32>
    %157 = arith.mulf %150, %156 : vector<7x64xf32>
    %158 = arith.mulf %157, %151 : vector<7x64xf32>
    %159 = arith.truncf %158 : vector<7x64xf32> to vector<7x64xbf16>
    %cst_55 = arith.constant dense<0.000000e+00> : vector<7x32xf32>
    %160 = tpu.matmul %159, %18, %cst_55 {dimension_numbers = #tpu.dot_dimension_numbers<[1], [0], [0], [1], [0, 0, 1, 1], [], []>} : vector<7x64xbf16>, vector<64x32xbf16>, vector<7x32xf32> -> vector<7x32xf32>
    %161 = arith.addf %135, %160 : vector<7x32xf32>
    %c0_56 = arith.constant 0 : index
    %c0_57 = arith.constant 0 : index
    %162 = vector.load %arg22[%c0_56, %c0_57] : memref<7x32xf32, #tpu.memory_space<vmem>>, vector<7x32xf32>
    tpu.vector_store %arg22[%c0_56, %c0_57], %161 {strides = array<i32>} : memref<7x32xf32, #tpu.memory_space<vmem>>, vector<7x32xf32>,
    %c0_i32_58 = arith.constant 0 : i32
    %163 = arith.cmpi eq, %arg1, %c0_i32_58 : i32
    %164 = arith.extui %163 : i1 to i32
    %c0_i32_59 = arith.constant 0 : i32
    %165 = arith.cmpi ne, %164, %c0_i32_59 : i32
    scf.if %165 {
      %166 = arith.truncf %161 : vector<7x32xf32> to vector<7x32xbf16>
      %c0_60 = arith.constant 0 : index
      %c0_61 = arith.constant 0 : index
      %c0_62 = arith.constant 0 : index
      %167 = vector.load %arg20[%c0_60, %c0_61, %c0_62] : memref<1x7x32xbf16, #tpu.memory_space<vmem>>, vector<1x7x32xbf16>
      %168 = vector.shape_cast %167 : vector<1x7x32xbf16> to vector<7x32xbf16>
      %169 = vector.shape_cast %166 : vector<7x32xbf16> to vector<1x7x32xbf16>
      tpu.vector_store %arg20[%c0_60, %c0_61, %c0_62], %169 {strides = array<i32>} : memref<1x7x32xbf16, #tpu.memory_space<vmem>>, vector<1x7x32xbf16>,
      %c0_63 = arith.constant 0 : index
      %c0_64 = arith.constant 0 : index
      %170 = vector.load %arg18[%c0_63, %c0_64] : memref<1x32xf32, #tpu.memory_space<vmem>>, vector<1x32xf32>
      %c0_65 = arith.constant 0 : index
      %c0_66 = arith.constant 0 : index
      %171 = vector.load %arg19[%c0_65, %c0_66] : memref<32x64xbf16, #tpu.memory_space<vmem>>, vector<32x64xbf16>
      %c0_67 = arith.constant 0 : index
      %c0_68 = arith.constant 0 : index
      %c0_69 = arith.constant 0 : index
      %172 = vector.load %arg7[%c0_67, %c0_68, %c0_69] : memref<1x7x1xi32, #tpu.memory_space<vmem>>, vector<1x7x1xi32>
      %173 = vector.shape_cast %172 : vector<1x7x1xi32> to vector<7x1xi32>
      %174 = arith.mulf %161, %161 : vector<7x32xf32>
      %cst_70 = arith.constant dense<0.000000e+00> : vector<7xf32>
      %175 = vector.multi_reduction <add>, %174, %cst_70 [1] : vector<7x32xf32> to vector<7xf32>
      %176 = vector.shape_cast %175 : vector<7xf32> to vector<7x1xf32>
      %cst_71 = arith.constant 3.200000e+01 : f32
      %177 = vector.broadcast %cst_71 : f32 to vector<7x1xf32>
      %178 = arith.divf %176, %177 : vector<7x1xf32>
      %cst_72 = arith.constant 9.99999997E-7 : f32
      %179 = vector.broadcast %cst_72 : f32 to vector<7x1xf32>
      %180 = arith.addf %178, %179 : vector<7x1xf32>
      %181 = math.rsqrt %180 : vector<7x1xf32>
      %182 = vector.broadcast %181 : vector<7x1xf32> to vector<7x32xf32>
      %183 = arith.mulf %161, %182 : vector<7x32xf32>
      %184 = vector.broadcast %170 : vector<1x32xf32> to vector<7x32xf32>
      %185 = arith.mulf %183, %184 : vector<7x32xf32>
      %186 = arith.truncf %185 : vector<7x32xf32> to vector<7x32xbf16>
      %cst_73 = arith.constant dense<0.000000e+00> : vector<7x64xf32>
      %187 = tpu.matmul %186, %171, %cst_73 {dimension_numbers = #tpu.dot_dimension_numbers<[1], [0], [0], [1], [0, 0, 1, 1], [], []>} : vector<7x32xbf16>, vector<32x64xbf16>, vector<7x64xf32> -> vector<7x64xf32>
      %cst_74 = arith.constant dense<0xFF800000> : vector<7xf32>
      %188 = vector.multi_reduction <maximumf>, %187, %cst_74 [1] : vector<7x64xf32> to vector<7xf32>
      %189 = vector.shape_cast %188 : vector<7xf32> to vector<7x1xf32>
      %190 = vector.broadcast %189 : vector<7x1xf32> to vector<7x64xf32>
      %191 = arith.subf %187, %190 : vector<7x64xf32>
      %192 = math.exp %191 : vector<7x64xf32>
      %cst_75 = arith.constant dense<0.000000e+00> : vector<7xf32>
      %193 = vector.multi_reduction <add>, %192, %cst_75 [1] : vector<7x64xf32> to vector<7xf32>
      %194 = vector.shape_cast %193 : vector<7xf32> to vector<7x1xf32>
      %195 = math.log %194 : vector<7x1xf32>
      %196 = arith.addf %189, %195 : vector<7x1xf32>
      %197 = tpu.iota {dimensions = array<i32: 1>} : vector<7x64xi32>
      %198 = vector.broadcast %173 : vector<7x1xi32> to vector<7x64xi32>
      %199 = arith.cmpi eq, %197, %198 : vector<7x64xi32>
      %cst_76 = arith.constant 0.000000e+00 : f32
      %200 = vector.broadcast %cst_76 : f32 to vector<7x64xf32>
      %201 = arith.select %199, %187, %200 : vector<7x64xi1>, vector<7x64xf32>
      %cst_77 = arith.constant dense<0.000000e+00> : vector<7xf32>
      %202 = vector.multi_reduction <add>, %201, %cst_77 [1] : vector<7x64xf32> to vector<7xf32>
      %203 = vector.shape_cast %202 : vector<7xf32> to vector<7x1xf32>
      %204 = arith.subf %196, %203 : vector<7x1xf32>
      %cst_78 = arith.constant dense<0.000000e+00> : vector<1xf32>
      %205 = vector.multi_reduction <add>, %204, %cst_78 [0] : vector<7x1xf32> to vector<1xf32>
      %206 = vector.shape_cast %205 : vector<1xf32> to vector<1x1xf32>
      %cst_79 = arith.constant 7.000000e+00 : f32
      %207 = vector.broadcast %cst_79 : f32 to vector<1x1xf32>
      %208 = arith.divf %206, %207 : vector<1x1xf32>
      %c0_80 = arith.constant 0 : index
      %c0_81 = arith.constant 0 : index
      %c0_82 = arith.constant 0 : index
      %209 = vector.load %arg21[%c0_80, %c0_81, %c0_82] : memref<1x1x1xf32, #tpu.memory_space<vmem>>, vector<1x1x1xf32>
      %210 = vector.shape_cast %209 : vector<1x1x1xf32> to vector<1x1xf32>
      %211 = vector.shape_cast %208 : vector<1x1xf32> to vector<1x1x1xf32>
      tpu.vector_store %arg21[%c0_80, %c0_81, %c0_82], %211 {strides = array<i32>} : memref<1x1x1xf32, #tpu.memory_space<vmem>>, vector<1x1x1xf32>,
    } else {
    }
    return
  }
  func.func @transform_0(%arg0: i32, %arg1: i32) -> (i32, i32, i32) {
    %c0_i32 = arith.constant 0 : i32
    %c0_i32_0 = arith.constant 0 : i32
    %c0_i32_1 = arith.constant 0 : i32
    return %arg0, %c0_i32, %c0_i32_0 : i32, i32, i32
  }
  func.func @transform_1(%arg0: i32, %arg1: i32) -> (i32, i32, i32) {
    %c0_i32 = arith.constant 0 : i32
    %c0_i32_0 = arith.constant 0 : i32
    %c0_i32_1 = arith.constant 0 : i32
    return %arg0, %c0_i32, %c0_i32_0 : i32, i32, i32
  }
  func.func @transform_2(%arg0: i32, %arg1: i32) -> (i32, i32) {
    %c0_i32 = arith.constant 0 : i32
    %c0_i32_0 = arith.constant 0 : i32
    %c0_i32_1 = arith.constant 0 : i32
    return %c0_i32, %c0_i32_0 : i32, i32
  }
  func.func @transform_3(%arg0: i32, %arg1: i32) -> (i32, i32) {
    %c0_i32 = arith.constant 0 : i32
    %c0_i32_0 = arith.constant 0 : i32
    %c0_i32_1 = arith.constant 0 : i32
    return %c0_i32, %c0_i32_0 : i32, i32
  }
  func.func @transform_4(%arg0: i32, %arg1: i32) -> (i32, i32) {
    %c0_i32 = arith.constant 0 : i32
    %c0_i32_0 = arith.constant 0 : i32
    %c0_i32_1 = arith.constant 0 : i32
    return %c0_i32, %c0_i32_0 : i32, i32
  }
  func.func @transform_5(%arg0: i32, %arg1: i32) -> (i32, i32, i32) {
    %c0_i32 = arith.constant 0 : i32
    %c0_i32_0 = arith.constant 0 : i32
    %c0_i32_1 = arith.constant 0 : i32
    return %arg0, %c0_i32, %c0_i32_0 : i32, i32, i32
  }
  func.func @transform_6(%arg0: i32, %arg1: i32) -> (i32, i32) {
    %c0_i32 = arith.constant 0 : i32
    %c0_i32_0 = arith.constant 0 : i32
    %c0_i32_1 = arith.constant 0 : i32
    return %c0_i32, %c0_i32_0 : i32, i32
  }
  func.func @transform_7(%arg0: i32, %arg1: i32) -> (i32, i32) {
    %c0_i32 = arith.constant 0 : i32
    %c0_i32_0 = arith.constant 0 : i32
    %c0_i32_1 = arith.constant 0 : i32
    return %c0_i32, %c0_i32_0 : i32, i32
  }
  func.func @transform_8(%arg0: i32, %arg1: i32) -> (i32, i32) {
    %c0_i32 = arith.constant 0 : i32
    %c0_i32_0 = arith.constant 0 : i32
    %c0_i32_1 = arith.constant 0 : i32
    return %c0_i32, %c0_i32_0 : i32, i32
  }
  func.func @transform_9(%arg0: i32, %arg1: i32) -> (i32, i32) {
    %c0_i32 = arith.constant 0 : i32
    %c0_i32_0 = arith.constant 0 : i32
    %c0_i32_1 = arith.constant 0 : i32
    return %c0_i32, %c0_i32_0 : i32, i32
  }
  func.func @transform_10(%arg0: i32, %arg1: i32) -> (i32, i32, i32) {
    %c0_i32 = arith.constant 0 : i32
    %c0_i32_0 = arith.constant 0 : i32
    %c0_i32_1 = arith.constant 0 : i32
    return %arg1, %c0_i32, %c0_i32_0 : i32, i32, i32
  }
  func.func @transform_11(%arg0: i32, %arg1: i32) -> (i32, i32, i32) {
    %c0_i32 = arith.constant 0 : i32
    %c0_i32_0 = arith.constant 0 : i32
    %c0_i32_1 = arith.constant 0 : i32
    return %arg1, %c0_i32, %c0_i32_0 : i32, i32, i32
  }
  func.func @transform_12(%arg0: i32, %arg1: i32) -> (i32, i32, i32) {
    %c0_i32 = arith.constant 0 : i32
    %c0_i32_0 = arith.constant 0 : i32
    %c0_i32_1 = arith.constant 0 : i32
    return %arg1, %c0_i32, %c0_i32_0 : i32, i32, i32
  }
  func.func @transform_13(%arg0: i32, %arg1: i32) -> (i32, i32, i32) {
    %c0_i32 = arith.constant 0 : i32
    %c0_i32_0 = arith.constant 0 : i32
    %c0_i32_1 = arith.constant 0 : i32
    return %arg1, %c0_i32, %c0_i32_0 : i32, i32, i32
  }
  func.func @transform_14(%arg0: i32, %arg1: i32) -> (i32, i32, i32) {
    %c0_i32 = arith.constant 0 : i32
    %c0_i32_0 = arith.constant 0 : i32
    %c0_i32_1 = arith.constant 0 : i32
    return %arg1, %c0_i32, %c0_i32_0 : i32, i32, i32
  }
  func.func @transform_15(%arg0: i32, %arg1: i32) -> (i32, i32, i32) {
    %c0_i32 = arith.constant 0 : i32
    %c0_i32_0 = arith.constant 0 : i32
    %c0_i32_1 = arith.constant 0 : i32
    return %arg1, %c0_i32, %c0_i32_0 : i32, i32, i32
  }
  func.func @transform_16(%arg0: i32, %arg1: i32) -> (i32, i32) {
    %c0_i32 = arith.constant 0 : i32
    %c0_i32_0 = arith.constant 0 : i32
    %c0_i32_1 = arith.constant 0 : i32
    return %c0_i32, %c0_i32_0 : i32, i32
  }
  func.func @transform_17(%arg0: i32, %arg1: i32) -> (i32, i32) {
    %c0_i32 = arith.constant 0 : i32
    %c0_i32_0 = arith.constant 0 : i32
    %c0_i32_1 = arith.constant 0 : i32
    return %c0_i32, %c0_i32_0 : i32, i32
  }
  func.func @transform_18(%arg0: i32, %arg1: i32) -> (i32, i32, i32) {
    %c0_i32 = arith.constant 0 : i32
    %c0_i32_0 = arith.constant 0 : i32
    %c0_i32_1 = arith.constant 0 : i32
    return %arg0, %c0_i32, %c0_i32_0 : i32, i32, i32
  }
  func.func @transform_19(%arg0: i32, %arg1: i32) -> (i32, i32, i32) {
    %c0_i32 = arith.constant 0 : i32
    %c0_i32_0 = arith.constant 0 : i32
    %c0_i32_1 = arith.constant 0 : i32
    return %arg0, %c0_i32, %c0_i32_0 : i32, i32, i32
  }
}

</mosaic_0001>

<llo_original>
// kernel: tile.24
$region0: #{tile.24}
  %s0 = inlined_call_operand.vmem [shape: f32[8,4,8], index: 0, kind: input, shape index: {}]
  %s1 = inlined_call_operand.vmem [shape: f32[8,32], index: 1, kind: output, shape index: {}]
  $region1: #{tile.24} parent=0
    #allocation0 [shape = 'u8[32768]{0}', space=vmem, size = 0x8000, scoped, tag = 'scoped mem for input reshape']
    %s3 = ssub.s32 16, 1
    %s4 = scalar_lea.vmem %s0, 28
    %v5 = vld [vmem:[%s4] sm:%s3]
    %s6 = scalar_lea.vmem [#allocation0], 56
    %7 = vst [vmem:[%s6] sm:%s3] %v5
    %s8 = scalar_lea.vmem %s0, 24
    %v9 = vld [vmem:[%s8] sm:%s3]
    %s10 = scalar_lea.vmem [#allocation0], 48
    %11 = vst [vmem:[%s10] sm:%s3] %v9
    %s12 = scalar_lea.vmem %s0, 20
    %v13 = vld [vmem:[%s12] sm:%s3]
    %s14 = scalar_lea.vmem [#allocation0], 40
    %15 = vst [vmem:[%s14] sm:%s3] %v13
    %s16 = scalar_lea.vmem %s0, 16
    %v17 = vld [vmem:[%s16] sm:%s3]
    %s18 = scalar_lea.vmem [#allocation0], 32
    %19 = vst [vmem:[%s18] sm:%s3] %v17
    %s20 = scalar_lea.vmem %s0, 12
    %v21 = vld [vmem:[%s20] sm:%s3]
    %s22 = scalar_lea.vmem [#allocation0], 24
    %23 = vst [vmem:[%s22] sm:%s3] %v21
    %s24 = scalar_lea.vmem %s0, 8
    %v25 = vld [vmem:[%s24] sm:%s3]
    %s26 = scalar_lea.vmem [#allocation0], 16
    %27 = vst [vmem:[%s26] sm:%s3] %v25
    %s28 = scalar_lea.vmem %s0, 4
    %v29 = vld [vmem:[%s28] sm:%s3]
    %s30 = scalar_lea.vmem [#allocation0], 8
    %31 = vst [vmem:[%s30] sm:%s3] %v29
    %v32 = vld [vmem:[%s0] sm:%s3]
    %33 = vst [vmem:[#allocation0] sm:%s3] %v32
    %v34 = vld [vmem:[#allocation0] ss:$8 sm:$0xf]
    %v35 = vld [vmem:[#allocation0] ss:$8 sm:$0xf0]
    %vm36 = vcmask 1047556
    %v37 = vsel %vm36, %v35, %v34
    %vm38 = vcmask 64512
    %39 = vst.msk [vmem:[%s1] sm:$0xff] %vm38, %v37
    %s40 = scalar_lea.vmem [#allocation0], 3
    %v41 = vld [vmem:[%s40] ss:$8 sm:$0xf]
    %s42 = scalar_lea.vmem [#allocation0], 3
    %v43 = vld [vmem:[%s42] ss:$8 sm:$0xf0]
    %vm44 = vcmask 1047556
    %v45 = vsel %vm44, %v43, %v41
    %46 = vrot.lane.b32.xlu0 %v45, 24
    %v47 = vpop.permute.xlu0 %46
    %vm48 = vcmask 261312
    %49 = vst.msk [vmem:[%s1] sm:$0xff] %vm48, %v47
    %s50 = scalar_lea.vmem [#allocation0], 2
    %v51 = vld [vmem:[%s50] ss:$8 sm:$0xf]
    %s52 = scalar_lea.vmem [#allocation0], 2
    %v53 = vld [vmem:[%s52] ss:$8 sm:$0xf0]
    %vm54 = vcmask 1047556
    %v55 = vsel %vm54, %v53, %v51
    %56 = vrot.lane.b32.xlu0 %v55, 16
    %v57 = vpop.permute.xlu0 %56
    %vm58 = vcmask 195712
    %59 = vst.msk [vmem:[%s1] sm:$0xff] %vm58, %v57
    %s60 = scalar_lea.vmem [#allocation0], 1
    %v61 = vld [vmem:[%s60] ss:$8 sm:$0xf]
    %s62 = scalar_lea.vmem [#allocation0], 1
    %v63 = vld [vmem:[%s62] ss:$8 sm:$0xf0]
    %vm64 = vcmask 1047556
    %v65 = vsel %vm64, %v63, %v61
    %66 = vrot.lane.b32.xlu0 %v65, 8
    %v67 = vpop.permute.xlu0 %66
    %vm68 = vcmask 130112
    %69 = vst.msk [vmem:[%s1] sm:$0xff] %vm68, %v67

// kernel: tile.34
$region0: #{tile.34}
  %s0 = inlined_call_operand.vmem [shape: f32[7,4,8], index: 0, kind: input, shape index: {}]
  %s1 = inlined_call_operand.vmem [shape: f32[7,32], index: 1, kind: output, shape index: {}]
  $region1: #{tile.34} parent=0
    #allocation0 [shape = 'u8[28672]{0}', space=vmem, size = 0x7000, scoped, tag = 'scoped mem for input reshape']
    %s3 = ssub.s32 16, 1
    %s4 = scalar_lea.vmem %s0, 24
    %v5 = vld [vmem:[%s4] sm:%s3]
    %s6 = scalar_lea.vmem [#allocation0], 48
    %7 = vst [vmem:[%s6] sm:%s3] %v5
    %s8 = scalar_lea.vmem %s0, 20
    %v9 = vld [vmem:[%s8] sm:%s3]
    %s10 = scalar_lea.vmem [#allocation0], 40
    %11 = vst [vmem:[%s10] sm:%s3] %v9
    %s12 = scalar_lea.vmem %s0, 16
    %v13 = vld [vmem:[%s12] sm:%s3]
    %s14 = scalar_lea.vmem [#allocation0], 32
    %15 = vst [vmem:[%s14] sm:%s3] %v13
    %s16 = scalar_lea.vmem %s0, 12
    %v17 = vld [vmem:[%s16] sm:%s3]
    %s18 = scalar_lea.vmem [#allocation0], 24
    %19 = vst [vmem:[%s18] sm:%s3] %v17
    %s20 = scalar_lea.vmem %s0, 8
    %v21 = vld [vmem:[%s20] sm:%s3]
    %s22 = scalar_lea.vmem [#allocation0], 16
    %23 = vst [vmem:[%s22] sm:%s3] %v21
    %s24 = scalar_lea.vmem %s0, 4
    %v25 = vld [vmem:[%s24] sm:%s3]
    %s26 = scalar_lea.vmem [#allocation0], 8
    %27 = vst [vmem:[%s26] sm:%s3] %v25
    %v28 = vld [vmem:[%s0] sm:%s3]
    %29 = vst [vmem:[#allocation0] sm:%s3] %v28
    %v30 = vld [vmem:[#allocation0] ss:$8 sm:$0xf]
    %v31 = vld [vmem:[#allocation0] ss:$8 sm:$0x70]
    %vm32 = vcmask 1046532
    %v33 = vsel %vm32, %v31, %v30
    %vm34 = vcmask 64512
    %35 = vst.msk [vmem:[%s1] sm:$0x7f] %vm34, %v33
    %s36 = scalar_lea.vmem [#allocation0], 3
    %v37 = vld [vmem:[%s36] ss:$8 sm:$0xf]
    %s38 = scalar_lea.vmem [#allocation0], 3
    %v39 = vld [vmem:[%s38] ss:$8 sm:$0x70]
    %vm40 = vcmask 1046532
    %v41 = vsel %vm40, %v39, %v37
    %42 = vrot.lane.b32.xlu0 %v41, 24
    %v43 = vpop.permute.xlu0 %42
    %vm44 = vcmask 261312
    %45 = vst.msk [vmem:[%s1] sm:$0x7f] %vm44, %v43
    %s46 = scalar_lea.vmem [#allocation0], 2
    %v47 = vld [vmem:[%s46] ss:$8 sm:$0xf]
    %s48 = scalar_lea.vmem [#allocation0], 2
    %v49 = vld [vmem:[%s48] ss:$8 sm:$0x70]
    %vm50 = vcmask 1046532
    %v51 = vsel %vm50, %v49, %v47
    %52 = vrot.lane.b32.xlu0 %v51, 16
    %v53 = vpop.permute.xlu0 %52
    %vm54 = vcmask 195712
    %55 = vst.msk [vmem:[%s1] sm:$0x7f] %vm54, %v53
    %s56 = scalar_lea.vmem [#allocation0], 1
    %v57 = vld [vmem:[%s56] ss:$8 sm:$0xf]
    %s58 = scalar_lea.vmem [#allocation0], 1
    %v59 = vld [vmem:[%s58] ss:$8 sm:$0x70]
    %vm60 = vcmask 1046532
    %v61 = vsel %vm60, %v59, %v57
    %62 = vrot.lane.b32.xlu0 %v61, 8
    %v63 = vpop.permute.xlu0 %62
    %vm64 = vcmask 130112
    %65 = vst.msk [vmem:[%s1] sm:$0x7f] %vm64, %v63

// kernel: deepseek_trainable_mtp_forward.2
$region0: #{deepseek_trainable_mtp_forward.2}
  #allocation0 [shape = 'u32[]', space=smem, size = 0x4, offset = 0x4, fixed_abs, tag = 'smem constant byte address 0x4 - core index']
  #allocation1 [shape = 'u32[72,128]{1,0:T(1,128)}', space=vmem, size = 0x9000, scoped, tag = 'internal scratch']
  #allocation2 [shape = 'f32[8,32]{1,0:T(8,128)}', space=vmem, size = 0x1000, scoped, tag = 'scratch operand']
  %s0 = inlined_call_operand.vmem [shape: bf16[2,8,32], index: 0, kind: input, shape index: {}]
  %s1 = inlined_call_operand.vmem [shape: f32[8,32], index: 1, kind: input, shape index: {}]
  %s2 = inlined_call_operand.vmem [shape: f32[8,32], index: 2, kind: input, shape index: {}]
  %s3 = inlined_call_operand.vmem [shape: f32[8,8], index: 3, kind: input, shape index: {}]
  %s4 = inlined_call_operand.vmem [shape: s32[2,8,1], index: 4, kind: input, shape index: {}]
  %s5 = inlined_call_operand.vmem [shape: f32[2,1,32], index: 5, kind: input, shape index: {}]
  %s6 = inlined_call_operand.vmem [shape: f32[2,1,32], index: 6, kind: input, shape index: {}]
  %s7 = inlined_call_operand.vmem [shape: bf16[2,32,160], index: 7, kind: input, shape index: {}]
  %s8 = inlined_call_operand.vmem [shape: bf16[2,32,32], index: 8, kind: input, shape index: {}]
  %s9 = inlined_call_operand.vmem [shape: bf16[2,32,128], index: 9, kind: input, shape index: {}]
  %s10 = inlined_call_operand.vmem [shape: bf16[2,64,32], index: 10, kind: input, shape index: {}]
  %s11 = inlined_call_operand.vmem [shape: f32[1,32], index: 11, kind: input, shape index: {}]
  %s12 = inlined_call_operand.vmem [shape: bf16[32,64], index: 12, kind: input, shape index: {}]
  %s13 = inlined_call_operand.vmem [shape: bf16[2,8,32], index: 13, kind: output, shape index: {0}]
  %s14 = inlined_call_operand.vmem [shape: bf16[2,8,64], index: 14, kind: output, shape index: {1}]
  %s15 = inlined_call_operand.vmem [shape: f32[2,1,1], index: 15, kind: output, shape index: {2}]
  %16 = xla_tuple %s13, %s14, %s15
  %s17 = sld [smem:[#allocation0]]
  $region109: #{deepseek_trainable_mtp_forward.2} parent=0
    _
  %s19 = ssub.s32 1, %s17
  %s20 = scalar_select 0, %s19, %s17
  loop: start=0, step=1, limit=6
  $region2: #{deepseek_trainable_mtp_forward.2} parent=0 // loop_pre_header
    _
  $region3: #{deepseek_trainable_mtp_forward.2} parent=0 // loop_header
    %s22 = sphi 0, %s26
    %p23 = scmp.ge.s32.totalorder %s22, 6
    %s29 = sphi 0, %s41
    %s30 = sphi 0, %s37
    %s31 = sphi 0, %s29
    %s32 = sphi 0, %s30
    %s33 = sphi 0, %s31
    %s34 = sphi 0, %s32
    %s44 = sphi 0, %s46
    %s47 = sphi 0, %s44
    %s48 = sphi 0, %s47
    %s64 = sphi 0, %s48
    %s68 = sphi 0, %s68
    %s70 = sphi 0, %s68
    %s71 = sphi 0, %s70
    %s85 = sphi 0, %s71
    %s89 = sphi 0, %s89
    %s91 = sphi 0, %s89
    %s92 = sphi 0, %s91
    %s106 = sphi 0, %s92
    %s110 = sphi 0, %s110
    %s112 = sphi 0, %s110
    %s113 = sphi 0, %s112
    %s127 = sphi 0, %s113
    %s133 = sphi 0, %s135
    %s136 = sphi 0, %s133
    %s137 = sphi 0, %s136
    %s153 = sphi 0, %s137
    %s159 = sphi 0, %s161
    %s162 = sphi 0, %s159
    %s163 = sphi 0, %s162
    %s179 = sphi 0, %s163
    %s185 = sphi 0, %s187
    %s188 = sphi 0, %s185
    %s189 = sphi 0, %s188
    %s205 = sphi 0, %s189
    %s211 = sphi 0, %s213
    %s214 = sphi 0, %s211
    %s215 = sphi 0, %s214
    %s231 = sphi 0, %s215
    %s237 = sphi 0, %s239
    %s240 = sphi 0, %s237
    %s241 = sphi 0, %s240
    %s257 = sphi 0, %s241
    %s263 = sphi 0, %s265
    %s266 = sphi 0, %s263
    %s267 = sphi 0, %s266
    %s283 = sphi 0, %s267
    %s289 = sphi 0, %s291
    %s292 = sphi 0, %s289
    %s293 = sphi 0, %s292
    %s309 = sphi 0, %s293
    %s313 = sphi 0, %s313
    %s315 = sphi 0, %s313
    %s316 = sphi 0, %s315
    %s330 = sphi 0, %s316
    %s334 = sphi 0, %s334
    %s336 = sphi 0, %s334
    %s337 = sphi 0, %s336
    %s351 = sphi 0, %s337
    %s357 = sphi 0, %s359
    %s360 = sphi 0, %s357
    %s361 = sphi 0, %s360
    %s377 = sphi 0, %s361
    %s383 = sphi 0, %s385
    %s386 = sphi 0, %s383
    %s387 = sphi 0, %s386
    %s403 = sphi 0, %s387
    %s409 = sphi 0, %s411
    %s412 = sphi 0, %s409
    %s413 = sphi 0, %s412
    %s429 = sphi 0, %s413
  $region4: #{deepseek_trainable_mtp_forward.2} parent=0 // loop_header_branch
    %25 = sbr.rel (%p23) target = $region8
  $region5: #{deepseek_trainable_mtp_forward.2} parent=0 // loop_body
    %s27 = ssub.s32 %s22, 1
    %s28 = ssub.s32 %s22, 2
    %s35 = sadd.s32 1, %s30
    %p36 = scmp.ge.s32.totalorder %s35, 2
    %s37 = scalar_select %p36, 0, %s35
    %s38 = sadd.s32 1, %s29
    %s39 = scalar_select %p36, %s38, %s29
    %p40 = scmp.ge.s32.totalorder %s39, 2
    %s41 = scalar_select %p40, 0, %s39
    %s42 = ssub.s32 %s29, %s41
    %p43 = scmp.eq.s32.totalorder %s42, 0
    %s45 = sadd.s32 %s44, 1
    %s46 = scalar_select %p43, %s44, %s45
    %p49 = pneg %p43
    %p50 = scmp.eq.s32.totalorder %s22, 3
    %p51 = por %p49, %p50
    %p52 = scmp.ne.s32.totalorder %s44, %s47
    %p53 = scmp.eq.s32.totalorder %s22, 0
    %p54 = por %p52, %p53
    %p55 = scmp.ne.s32.totalorder %s44, %s47
    %p56 = scmp.eq.s32.totalorder %s27, 3
    %p57 = por %p55, %p56
    %p58 = scmp.ne.s32.totalorder %s47, %s48
    %p59 = scmp.eq.s32.totalorder %s27, 0
    %p60 = por %p58, %p59
    %p61 = scmp.ne.s32.totalorder %s47, %s48
    %p62 = scmp.eq.s32.totalorder %s28, 3
    %p63 = por %p61, %p62
    %p65 = scmp.ne.s32.totalorder %s48, %s64
    %p66 = scmp.eq.s32.totalorder %s28, 0
    %p67 = por %p65, %p66
    %s69 = sadd.s32 %s68, 1
    %p72 = scmp.eq.s32.totalorder %s22, 3
    %p73 = scmp.ne.s32.totalorder %s68, %s70
    %p74 = scmp.eq.s32.totalorder %s22, 0
    %p75 = por %p73, %p74
    %p76 = scmp.ne.s32.totalorder %s68, %s70
    %p77 = scmp.eq.s32.totalorder %s27, 3
    %p78 = por %p76, %p77
    %p79 = scmp.ne.s32.totalorder %s70, %s71
    %p80 = scmp.eq.s32.totalorder %s27, 0
    %p81 = por %p79, %p80
    %p82 = scmp.ne.s32.totalorder %s70, %s71
    %p83 = scmp.eq.s32.totalorder %s28, 3
    %p84 = por %p82, %p83
    %p86 = scmp.ne.s32.totalorder %s71, %s85
    %p87 = scmp.eq.s32.totalorder %s28, 0
    %p88 = por %p86, %p87
    %s90 = sadd.s32 %s89, 1
    %p93 = scmp.eq.s32.totalorder %s22, 3
    %p94 = scmp.ne.s32.totalorder %s89, %s91
    %p95 = scmp.eq.s32.totalorder %s22, 0
    %p96 = por %p94, %p95
    %p97 = scmp.ne.s32.totalorder %s89, %s91
    %p98 = scmp.eq.s32.totalorder %s27, 3
    %p99 = por %p97, %p98
    %p100 = scmp.ne.s32.totalorder %s91, %s92
    %p101 = scmp.eq.s32.totalorder %s27, 0
    %p102 = por %p100, %p101
    %p103 = scmp.ne.s32.totalorder %s91, %s92
    %p104 = scmp.eq.s32.totalorder %s28, 3
    %p105 = por %p103, %p104
    %p107 = scmp.ne.s32.totalorder %s92, %s106
    %p108 = scmp.eq.s32.totalorder %s28, 0
    %p109 = por %p107, %p108
    %s111 = sadd.s32 %s110, 1
    %p114 = scmp.eq.s32.totalorder %s22, 3
    %p115 = scmp.ne.s32.totalorder %s110, %s112
    %p116 = scmp.eq.s32.totalorder %s22, 0
    %p117 = por %p115, %p116
    %p118 = scmp.ne.s32.totalorder %s110, %s112
    %p119 = scmp.eq.s32.totalorder %s27, 3
    %p120 = por %p118, %p119
    %p121 = scmp.ne.s32.totalorder %s112, %s113
    %p122 = scmp.eq.s32.totalorder %s27, 0
    %p123 = por %p121, %p122
    %p124 = scmp.ne.s32.totalorder %s112, %s113
    %p125 = scmp.eq.s32.totalorder %s28, 3
    %p126 = por %p124, %p125
    %p128 = scmp.ne.s32.totalorder %s113, %s127
    %p129 = scmp.eq.s32.totalorder %s28, 0
    %p130 = por %p128, %p129
    %s131 = ssub.s32 %s29, %s41
    %p132 = scmp.eq.s32.totalorder %s131, 0
    %s134 = sadd.s32 %s133, 1
    %s135 = scalar_select %p132, %s133, %s134
    %p138 = pneg %p132
    %p139 = scmp.eq.s32.totalorder %s22, 3
    %p140 = por %p138, %p139
    %p141 = scmp.ne.s32.totalorder %s133, %s136
    %p142 = scmp.eq.s32.totalorder %s22, 0
    %p143 = por %p141, %p142
    %p144 = scmp.ne.s32.totalorder %s133, %s136
    %p145 = scmp.eq.s32.totalorder %s27, 3
    %p146 = por %p144, %p145
    %p147 = scmp.ne.s32.totalorder %s136, %s137
    %p148 = scmp.eq.s32.totalorder %s27, 0
    %p149 = por %p147, %p148
    %p150 = scmp.ne.s32.totalorder %s136, %s137
    %p151 = scmp.eq.s32.totalorder %s28, 3
    %p152 = por %p150, %p151
    %p154 = scmp.ne.s32.totalorder %s137, %s153
    %p155 = scmp.eq.s32.totalorder %s28, 0
    %p156 = por %p154, %p155
    %s157 = ssub.s32 %s30, %s37
    %p158 = scmp.eq.s32.totalorder %s157, 0
    %s160 = sadd.s32 %s159, 1
    %s161 = scalar_select %p158, %s159, %s160
    %p164 = pneg %p158
    %p165 = scmp.eq.s32.totalorder %s22, 3
    %p166 = por %p164, %p165
    %p167 = scmp.ne.s32.totalorder %s159, %s162
    %p168 = scmp.eq.s32.totalorder %s22, 0
    %p169 = por %p167, %p168
    %p170 = scmp.ne.s32.totalorder %s159, %s162
    %p171 = scmp.eq.s32.totalorder %s27, 3
    %p172 = por %p170, %p171
    %p173 = scmp.ne.s32.totalorder %s162, %s163
    %p174 = scmp.eq.s32.totalorder %s27, 0
    %p175 = por %p173, %p174
    %p176 = scmp.ne.s32.totalorder %s162, %s163
    %p177 = scmp.eq.s32.totalorder %s28, 3
    %p178 = por %p176, %p177
    %p180 = scmp.ne.s32.totalorder %s163, %s179
    %p181 = scmp.eq.s32.totalorder %s28, 0
    %p182 = por %p180, %p181
    %s183 = ssub.s32 %s30, %s37
    %p184 = scmp.eq.s32.totalorder %s183, 0
    %s186 = sadd.s32 %s185, 1
    %s187 = scalar_select %p184, %s185, %s186
    %p190 = pneg %p184
    %p191 = scmp.eq.s32.totalorder %s22, 3
    %p192 = por %p190, %p191
    %p193 = scmp.ne.s32.totalorder %s185, %s188
    %p194 = scmp.eq.s32.totalorder %s22, 0
    %p195 = por %p193, %p194
    %p196 = scmp.ne.s32.totalorder %s185, %s188
    %p197 = scmp.eq.s32.totalorder %s27, 3
    %p198 = por %p196, %p197
    %p199 = scmp.ne.s32.totalorder %s188, %s189
    %p200 = scmp.eq.s32.totalorder %s27, 0
    %p201 = por %p199, %p200
    %p202 = scmp.ne.s32.totalorder %s188, %s189
    %p203 = scmp.eq.s32.totalorder %s28, 3
    %p204 = por %p202, %p203
    %p206 = scmp.ne.s32.totalorder %s189, %s205
    %p207 = scmp.eq.s32.totalorder %s28, 0
    %p208 = por %p206, %p207
    %s209 = ssub.s32 %s30, %s37
    %p210 = scmp.eq.s32.totalorder %s209, 0
    %s212 = sadd.s32 %s211, 1
    %s213 = scalar_select %p210, %s211, %s212
    %p216 = pneg %p210
    %p217 = scmp.eq.s32.totalorder %s22, 3
    %p218 = por %p216, %p217
    %p219 = scmp.ne.s32.totalorder %s211, %s214
    %p220 = scmp.eq.s32.totalorder %s22, 0
    %p221 = por %p219, %p220
    %p222 = scmp.ne.s32.totalorder %s211, %s214
    %p223 = scmp.eq.s32.totalorder %s27, 3
    %p224 = por %p222, %p223
    %p225 = scmp.ne.s32.totalorder %s214, %s215
    %p226 = scmp.eq.s32.totalorder %s27, 0
    %p227 = por %p225, %p226
    %p228 = scmp.ne.s32.totalorder %s214, %s215
    %p229 = scmp.eq.s32.totalorder %s28, 3
    %p230 = por %p228, %p229
    %p232 = scmp.ne.s32.totalorder %s215, %s231
    %p233 = scmp.eq.s32.totalorder %s28, 0
    %p234 = por %p232, %p233
    %s235 = ssub.s32 %s30, %s37
    %p236 = scmp.eq.s32.totalorder %s235, 0
    %s238 = sadd.s32 %s237, 1
    %s239 = scalar_select %p236, %s237, %s238
    %p242 = pneg %p236
    %p243 = scmp.eq.s32.totalorder %s22, 3
    %p244 = por %p242, %p243
    %p245 = scmp.ne.s32.totalorder %s237, %s240
    %p246 = scmp.eq.s32.totalorder %s22, 0
    %p247 = por %p245, %p246
    %p248 = scmp.ne.s32.totalorder %s237, %s240
    %p249 = scmp.eq.s32.totalorder %s27, 3
    %p250 = por %p248, %p249
    %p251 = scmp.ne.s32.totalorder %s240, %s241
    %p252 = scmp.eq.s32.totalorder %s27, 0
    %p253 = por %p251, %p252
    %p254 = scmp.ne.s32.totalorder %s240, %s241
    %p255 = scmp.eq.s32.totalorder %s28, 3
    %p256 = por %p254, %p255
    %p258 = scmp.ne.s32.totalorder %s241, %s257
    %p259 = scmp.eq.s32.totalorder %s28, 0
    %p260 = por %p258, %p259
    %s261 = ssub.s32 %s30, %s37
    %p262 = scmp.eq.s32.totalorder %s261, 0
    %s264 = sadd.s32 %s263, 1
    %s265 = scalar_select %p262, %s263, %s264
    %p268 = pneg %p262
    %p269 = scmp.eq.s32.totalorder %s22, 3
    %p270 = por %p268, %p269
    %p271 = scmp.ne.s32.totalorder %s263, %s266
    %p272 = scmp.eq.s32.totalorder %s22, 0
    %p273 = por %p271, %p272
    %p274 = scmp.ne.s32.totalorder %s263, %s266
    %p275 = scmp.eq.s32.totalorder %s27, 3
    %p276 = por %p274, %p275
    %p277 = scmp.ne.s32.totalorder %s266, %s267
    %p278 = scmp.eq.s32.totalorder %s27, 0
    %p279 = por %p277, %p278
    %p280 = scmp.ne.s32.totalorder %s266, %s267
    %p281 = scmp.eq.s32.totalorder %s28, 3
    %p282 = por %p280, %p281
    %p284 = scmp.ne.s32.totalorder %s267, %s283
    %p285 = scmp.eq.s32.totalorder %s28, 0
    %p286 = por %p284, %p285
    %s287 = ssub.s32 %s30, %s37
    %p288 = scmp.eq.s32.totalorder %s287, 0
    %s290 = sadd.s32 %s289, 1
    %s291 = scalar_select %p288, %s289, %s290
    %p294 = pneg %p288
    %p295 = scmp.eq.s32.totalorder %s22, 3
    %p296 = por %p294, %p295
    %p297 = scmp.ne.s32.totalorder %s289, %s292
    %p298 = scmp.eq.s32.totalorder %s22, 0
    %p299 = por %p297, %p298
    %p300 = scmp.ne.s32.totalorder %s289, %s292
    %p301 = scmp.eq.s32.totalorder %s27, 3
    %p302 = por %p300, %p301
    %p303 = scmp.ne.s32.totalorder %s292, %s293
    %p304 = scmp.eq.s32.totalorder %s27, 0
    %p305 = por %p303, %p304
    %p306 = scmp.ne.s32.totalorder %s292, %s293
    %p307 = scmp.eq.s32.totalorder %s28, 3
    %p308 = por %p306, %p307
    %p310 = scmp.ne.s32.totalorder %s293, %s309
    %p311 = scmp.eq.s32.totalorder %s28, 0
    %p312 = por %p310, %p311
    %s314 = sadd.s32 %s313, 1
    %p317 = scmp.eq.s32.totalorder %s22, 3
    %p318 = scmp.ne.s32.totalorder %s313, %s315
    %p319 = scmp.eq.s32.totalorder %s22, 0
    %p320 = por %p318, %p319
    %p321 = scmp.ne.s32.totalorder %s313, %s315
    %p322 = scmp.eq.s32.totalorder %s27, 3
    %p323 = por %p321, %p322
    %p324 = scmp.ne.s32.totalorder %s315, %s316
    %p325 = scmp.eq.s32.totalorder %s27, 0
    %p326 = por %p324, %p325
    %p327 = scmp.ne.s32.totalorder %s315, %s316
    %p328 = scmp.eq.s32.totalorder %s28, 3
    %p329 = por %p327, %p328
    %p331 = scmp.ne.s32.totalorder %s316, %s330
    %p332 = scmp.eq.s32.totalorder %s28, 0
    %p333 = por %p331, %p332
    %s335 = sadd.s32 %s334, 1
    %p338 = scmp.eq.s32.totalorder %s22, 3
    %p339 = scmp.ne.s32.totalorder %s334, %s336
    %p340 = scmp.eq.s32.totalorder %s22, 0
    %p341 = por %p339, %p340
    %p342 = scmp.ne.s32.totalorder %s334, %s336
    %p343 = scmp.eq.s32.totalorder %s27, 3
    %p344 = por %p342, %p343
    %p345 = scmp.ne.s32.totalorder %s336, %s337
    %p346 = scmp.eq.s32.totalorder %s27, 0
    %p347 = por %p345, %p346
    %p348 = scmp.ne.s32.totalorder %s336, %s337
    %p349 = scmp.eq.s32.totalorder %s28, 3
    %p350 = por %p348, %p349
    %p352 = scmp.ne.s32.totalorder %s337, %s351
    %p353 = scmp.eq.s32.totalorder %s28, 0
    %p354 = por %p352, %p353
    %s355 = ssub.s32 %s29, %s41
    %p356 = scmp.eq.s32.totalorder %s355, 0
    %s358 = sadd.s32 %s357, 1
    %s359 = scalar_select %p356, %s357, %s358
    %p362 = pneg %p356
    %p363 = scmp.eq.s32.totalorder %s22, 3
    %p364 = por %p362, %p363
    %p365 = scmp.ne.s32.totalorder %s357, %s360
    %p366 = scmp.eq.s32.totalorder %s22, 0
    %p367 = por %p365, %p366
    %p368 = scmp.ne.s32.totalorder %s357, %s360
    %p369 = scmp.eq.s32.totalorder %s27, 3
    %p370 = por %p368, %p369
    %p371 = scmp.ne.s32.totalorder %s360, %s361
    %p372 = scmp.eq.s32.totalorder %s27, 0
    %p373 = por %p371, %p372
    %p374 = scmp.ne.s32.totalorder %s360, %s361
    %p375 = scmp.eq.s32.totalorder %s28, 3
    %p376 = por %p374, %p375
    %p378 = scmp.ne.s32.totalorder %s361, %s377
    %p379 = scmp.eq.s32.totalorder %s28, 0
    %p380 = por %p378, %p379
    %s381 = ssub.s32 %s29, %s41
    %p382 = scmp.eq.s32.totalorder %s381, 0
    %s384 = sadd.s32 %s383, 1
    %s385 = scalar_select %p382, %s383, %s384
    %p388 = pneg %p382
    %p389 = scmp.eq.s32.totalorder %s22, 3
    %p390 = por %p388, %p389
    %p391 = scmp.ne.s32.totalorder %s383, %s386
    %p392 = scmp.eq.s32.totalorder %s22, 0
    %p393 = por %p391, %p392
    %p394 = scmp.ne.s32.totalorder %s383, %s386
    %p395 = scmp.eq.s32.totalorder %s27, 3
    %p396 = por %p394, %p395
    %p397 = scmp.ne.s32.totalorder %s386, %s387
    %p398 = scmp.eq.s32.totalorder %s27, 0
    %p399 = por %p397, %p398
    %p400 = scmp.ne.s32.totalorder %s386, %s387
    %p401 = scmp.eq.s32.totalorder %s28, 3
    %p402 = por %p400, %p401
    %p404 = scmp.ne.s32.totalorder %s387, %s403
    %p405 = scmp.eq.s32.totalorder %s28, 0
    %p406 = por %p404, %p405
    %s407 = ssub.s32 %s29, %s41
    %p408 = scmp.eq.s32.totalorder %s407, 0
    %s410 = sadd.s32 %s409, 1
    %s411 = scalar_select %p408, %s409, %s410
    %p414 = pneg %p408
    %p415 = scmp.eq.s32.totalorder %s22, 3
    %p416 = por %p414, %p415
    %p417 = scmp.ne.s32.totalorder %s409, %s412
    %p418 = scmp.eq.s32.totalorder %s22, 0
    %p419 = por %p417, %p418
    %p420 = scmp.ne.s32.totalorder %s409, %s412
    %p421 = scmp.eq.s32.totalorder %s27, 3
    %p422 = por %p420, %p421
    %p423 = scmp.ne.s32.totalorder %s412, %s413
    %p424 = scmp.eq.s32.totalorder %s27, 0
    %p425 = por %p423, %p424
    %p426 = scmp.ne.s32.totalorder %s412, %s413
    %p427 = scmp.eq.s32.totalorder %s28, 3
    %p428 = por %p426, %p427
    %p430 = scmp.ne.s32.totalorder %s413, %s429
    %p431 = scmp.eq.s32.totalorder %s28, 0
    %p432 = por %p430, %p431
    %p433 = scmp.le.s32.totalorder 1, %s22
    %p434 = scmp.lt.s32.totalorder %s22, 5
    %p435 = pnand %p433, %p434
    %p436 = pneg %p435
    // Predicated region
    $region9: #{deepseek_trainable_mtp_forward.2} parent=5 // pred_check
      _
    $region10: #{deepseek_trainable_mtp_forward.2} parent=5 // pred_check_branch
      %438 = sbr.rel (%p435) target = $region12
    $region11: #{deepseek_trainable_mtp_forward.2} parent=5 // pred_region
      %s439 = ssub.s32 %s22, 1
      // Predicated region
      $region13: #{deepseek_trainable_mtp_forward.2} parent=11 // pred_check
        %p440 = pneg %p81
      $region14: #{deepseek_trainable_mtp_forward.2} parent=11 // pred_check_branch
        %442 = sbr.rel (%p440) target = $region16
      $region15: #{deepseek_trainable_mtp_forward.2} parent=11 // pred_region
        _
      $region16: #{deepseek_trainable_mtp_forward.2} parent=11 // pred_fallthru
        _
      // Predicated region
      $region17: #{deepseek_trainable_mtp_forward.2} parent=11 // pred_check
        %p443 = pneg %p102
      $region18: #{deepseek_trainable_mtp_forward.2} parent=11 // pred_check_branch
        %445 = sbr.rel (%p443) target = $region20
      $region19: #{deepseek_trainable_mtp_forward.2} parent=11 // pred_region
        _
      $region20: #{deepseek_trainable_mtp_forward.2} parent=11 // pred_fallthru
        _
      // Predicated region
      $region21: #{deepseek_trainable_mtp_forward.2} parent=11 // pred_check
        %p446 = pneg %p123
      $region22: #{deepseek_trainable_mtp_forward.2} parent=11 // pred_check_branch
        %448 = sbr.rel (%p446) target = $region24
      $region23: #{deepseek_trainable_mtp_forward.2} parent=11 // pred_region
        _
      $region24: #{deepseek_trainable_mtp_forward.2} parent=11 // pred_fallthru
        _
      // Predicated region
      $region25: #{deepseek_trainable_mtp_forward.2} parent=11 // pred_check
        %p449 = pneg %p326
      $region26: #{deepseek_trainable_mtp_forward.2} parent=11 // pred_check_branch
        %451 = sbr.rel (%p449) target = $region28
      $region27: #{deepseek_trainable_mtp_forward.2} parent=11 // pred_region
        _
      $region28: #{deepseek_trainable_mtp_forward.2} parent=11 // pred_fallthru
        _
      // Predicated region
      $region29: #{deepseek_trainable_mtp_forward.2} parent=11 // pred_check
        %p452 = pneg %p347
      $region30: #{deepseek_trainable_mtp_forward.2} parent=11 // pred_check_branch
        %454 = sbr.rel (%p452) target = $region32
      $region31: #{deepseek_trainable_mtp_forward.2} parent=11 // pred_region
        _
      $region32: #{deepseek_trainable_mtp_forward.2} parent=11 // pred_fallthru
        _
    $region12: #{deepseek_trainable_mtp_forward.2} parent=5 // pred_fallthru
      _
    %p455 = scmp.lt.s32.totalorder %s22, 4
    // Predicated region
    $region33: #{deepseek_trainable_mtp_forward.2} parent=5 // pred_check
      %p456 = pneg %p455
    $region34: #{deepseek_trainable_mtp_forward.2} parent=5 // pred_check_branch
      %458 = sbr.rel (%p456) target = $region36
    $region35: #{deepseek_trainable_mtp_forward.2} parent=5 // pred_region
      // Predicated region
      $region37: #{deepseek_trainable_mtp_forward.2} parent=35 // pred_check
        %p459 = pneg %p54
      $region38: #{deepseek_trainable_mtp_forward.2} parent=35 // pred_check_branch
        %461 = sbr.rel (%p459) target = $region40
      $region39: #{deepseek_trainable_mtp_forward.2} parent=35 // pred_region
        %p462 = scmp.lt.s32.totalorder %s29, 1
        %s463 = scalar_select %p462, %s29, 1
        %s464 = smul.addr %s463, 4
        %s465 = scalar_lea.vmem %s0, %s464
      $region40: #{deepseek_trainable_mtp_forward.2} parent=35 // pred_fallthru
        _
      // Predicated region
      $region41: #{deepseek_trainable_mtp_forward.2} parent=35 // pred_check
        %p466 = pneg %p143
      $region42: #{deepseek_trainable_mtp_forward.2} parent=35 // pred_check_branch
        %468 = sbr.rel (%p466) target = $region44
      $region43: #{deepseek_trainable_mtp_forward.2} parent=35 // pred_region
        %p469 = scmp.lt.s32.totalorder %s29, 1
        %s470 = scalar_select %p469, %s29, 1
        %s471 = smul.addr %s470, 8
        %s472 = scalar_lea.vmem %s4, %s471
      $region44: #{deepseek_trainable_mtp_forward.2} parent=35 // pred_fallthru
        _
      // Predicated region
      $region45: #{deepseek_trainable_mtp_forward.2} parent=35 // pred_check
        %p473 = pneg %p169
      $region46: #{deepseek_trainable_mtp_forward.2} parent=35 // pred_check_branch
        %475 = sbr.rel (%p473) target = $region48
      $region47: #{deepseek_trainable_mtp_forward.2} parent=35 // pred_region
        %p476 = scmp.lt.s32.totalorder %s30, 1
        %s477 = scalar_select %p476, %s30, 1
        %s478 = scalar_lea.vmem %s5, %s477
      $region48: #{deepseek_trainable_mtp_forward.2} parent=35 // pred_fallthru
        _
      // Predicated region
      $region49: #{deepseek_trainable_mtp_forward.2} parent=35 // pred_check
        %p479 = pneg %p195
      $region50: #{deepseek_trainable_mtp_forward.2} parent=35 // pred_check_branch
        %481 = sbr.rel (%p479) target = $region52
      $region51: #{deepseek_trainable_mtp_forward.2} parent=35 // pred_region
        %p482 = scmp.lt.s32.totalorder %s30, 1
        %s483 = scalar_select %p482, %s30, 1
        %s484 = scalar_lea.vmem %s6, %s483
      $region52: #{deepseek_trainable_mtp_forward.2} parent=35 // pred_fallthru
        _
      // Predicated region
      $region53: #{deepseek_trainable_mtp_forward.2} parent=35 // pred_check
        %p485 = pneg %p221
      $region54: #{deepseek_trainable_mtp_forward.2} parent=35 // pred_check_branch
        %487 = sbr.rel (%p485) target = $region56
      $region55: #{deepseek_trainable_mtp_forward.2} parent=35 // pred_region
        %p488 = scmp.lt.s32.totalorder %s30, 1
        %s489 = scalar_select %p488, %s30, 1
        %s490 = smul.addr %s489, 8
        %s491 = smul.addr %s490, 4
        %s492 = scalar_lea.vmem %s7, %s491
      $region56: #{deepseek_trainable_mtp_forward.2} parent=35 // pred_fallthru
        _
      // Predicated region
      $region57: #{deepseek_trainable_mtp_forward.2} parent=35 // pred_check
        %p493 = pneg %p247
      $region58: #{deepseek_trainable_mtp_forward.2} parent=35 // pred_check_branch
        %495 = sbr.rel (%p493) target = $region60
      $region59: #{deepseek_trainable_mtp_forward.2} parent=35 // pred_region
        %p496 = scmp.lt.s32.totalorder %s30, 1
        %s497 = scalar_select %p496, %s30, 1
        %s498 = smul.addr %s497, 4
        %s499 = smul.addr %s498, 4
        %s500 = scalar_lea.vmem %s8, %s499
      $region60: #{deepseek_trainable_mtp_forward.2} parent=35 // pred_fallthru
        _
      // Predicated region
      $region61: #{deepseek_trainable_mtp_forward.2} parent=35 // pred_check
        %p501 = pneg %p273
      $region62: #{deepseek_trainable_mtp_forward.2} parent=35 // pred_check_branch
        %503 = sbr.rel (%p501) target = $region64
      $region63: #{deepseek_trainable_mtp_forward.2} parent=35 // pred_region
        %p504 = scmp.lt.s32.totalorder %s30, 1
        %s505 = scalar_select %p504, %s30, 1
        %s506 = smul.addr %s505, 4
        %s507 = smul.addr %s506, 4
        %s508 = scalar_lea.vmem %s9, %s507
      $region64: #{deepseek_trainable_mtp_forward.2} parent=35 // pred_fallthru
        _
      // Predicated region
      $region65: #{deepseek_trainable_mtp_forward.2} parent=35 // pred_check
        %p509 = pneg %p299
      $region66: #{deepseek_trainable_mtp_forward.2} parent=35 // pred_check_branch
        %511 = sbr.rel (%p509) target = $region68
      $region67: #{deepseek_trainable_mtp_forward.2} parent=35 // pred_region
        %p512 = scmp.lt.s32.totalorder %s30, 1
        %s513 = scalar_select %p512, %s30, 1
        %s514 = smul.addr %s513, 8
        %s515 = smul.addr %s514, 4
        %s516 = scalar_lea.vmem %s10, %s515
      $region68: #{deepseek_trainable_mtp_forward.2} parent=35 // pred_fallthru
        _
    $region36: #{deepseek_trainable_mtp_forward.2} parent=5 // pred_fallthru
      _
    %p517 = scmp.le.s32.totalorder 1, %s22
    %p518 = scmp.lt.s32.totalorder %s22, 5
    %p519 = pnand %p517, %p518
    %p520 = pneg %p519
    // Predicated region
    $region69: #{deepseek_trainable_mtp_forward.2} parent=5 // pred_check
      _
    $region70: #{deepseek_trainable_mtp_forward.2} parent=5 // pred_check_branch
      %522 = sbr.rel (%p519) target = $region72
    $region71: #{deepseek_trainable_mtp_forward.2} parent=5 // pred_region
      %s523 = ssub.s32 %s22, 1
      %p524 = scmp.lt.s32.totalorder %s31, 1
      %s525 = scalar_select %p524, %s31, 1
      %s526 = smul.addr %s525, 4
      %s527 = scalar_lea.vmem %s0, %s526
      %p528 = pneg %p60
      %p529 = pneg %p57
      %p530 = pneg %p81
      %p531 = pneg %p78
      %p532 = pneg %p102
      %p533 = pneg %p99
      %p534 = pneg %p123
      %p535 = pneg %p120
      %p536 = scmp.lt.s32.totalorder %s31, 1
      %s537 = scalar_select %p536, %s31, 1
      %s538 = smul.addr %s537, 8
      %s539 = scalar_lea.vmem %s4, %s538
      %p540 = pneg %p149
      %p541 = pneg %p146
      %p542 = scmp.lt.s32.totalorder %s32, 1
      %s543 = scalar_select %p542, %s32, 1
      %s544 = scalar_lea.vmem %s5, %s543
      %p545 = pneg %p175
      %p546 = pneg %p172
      %p547 = scmp.lt.s32.totalorder %s32, 1
      %s548 = scalar_select %p547, %s32, 1
      %s549 = scalar_lea.vmem %s6, %s548
      %p550 = pneg %p201
      %p551 = pneg %p198
      %p552 = scmp.lt.s32.totalorder %s32, 1
      %s553 = scalar_select %p552, %s32, 1
      %s554 = smul.addr %s553, 8
      %s555 = smul.addr %s554, 4
      %s556 = scalar_lea.vmem %s7, %s555
      %p557 = pneg %p227
      %p558 = pneg %p224
      %p559 = scmp.lt.s32.totalorder %s32, 1
      %s560 = scalar_select %p559, %s32, 1
      %s561 = smul.addr %s560, 4
      %s562 = smul.addr %s561, 4
      %s563 = scalar_lea.vmem %s8, %s562
      %p564 = pneg %p253
      %p565 = pneg %p250
      %p566 = scmp.lt.s32.totalorder %s32, 1
      %s567 = scalar_select %p566, %s32, 1
      %s568 = smul.addr %s567, 4
      %s569 = smul.addr %s568, 4
      %s570 = scalar_lea.vmem %s9, %s569
      %p571 = pneg %p279
      %p572 = pneg %p276
      %p573 = scmp.lt.s32.totalorder %s32, 1
      %s574 = scalar_select %p573, %s32, 1
      %s575 = smul.addr %s574, 8
      %s576 = smul.addr %s575, 4
      %s577 = scalar_lea.vmem %s10, %s576
      %p578 = pneg %p305
      %p579 = pneg %p302
      %p580 = pneg %p326
      %p581 = pneg %p323
      %p582 = pneg %p347
      %p583 = pneg %p344
      %p584 = pneg %p373
      %p585 = pneg %p370
      %p586 = scmp.lt.s32.totalorder %s31, 1
      %s587 = scalar_select %p586, %s31, 1
      %s588 = smul.addr %s587, 4
      %s589 = scalar_lea.vmem %s13, %s588
      %p590 = pneg %p399
      %p591 = pneg %p396
      %p592 = scmp.lt.s32.totalorder %s31, 1
      %s593 = scalar_select %p592, %s31, 1
      %s594 = smul.addr %s593, 4
      %s595 = scalar_lea.vmem %s14, %s594
      %p596 = pneg %p425
      %p597 = pneg %p422
      %p598 = scmp.lt.s32.totalorder %s31, 1
      %s599 = scalar_select %p598, %s31, 1
      %s600 = scalar_lea.vmem %s15, %s599
      %p601 = scmp.lt.s32.totalorder %s31, 1
      %s602 = scalar_select %p601, %s31, 1
      %s603 = smul.addr %s602, 4
      %s604 = scalar_lea.vmem %s0, %s603
      %p605 = scmp.lt.s32.totalorder %s31, 1
      %s606 = scalar_select %p605, %s31, 1
      %s607 = smul.addr %s606, 8
      %s608 = scalar_lea.vmem %s4, %s607
      %p609 = scmp.lt.s32.totalorder %s32, 1
      %s610 = scalar_select %p609, %s32, 1
      %s611 = scalar_lea.vmem %s5, %s610
      %p612 = scmp.lt.s32.totalorder %s32, 1
      %s613 = scalar_select %p612, %s32, 1
      %s614 = scalar_lea.vmem %s6, %s613
      %p615 = scmp.lt.s32.totalorder %s32, 1
      %s616 = scalar_select %p615, %s32, 1
      %s617 = smul.addr %s616, 8
      %s618 = smul.addr %s617, 4
      %s619 = scalar_lea.vmem %s7, %s618
      %p620 = scmp.lt.s32.totalorder %s32, 1
      %s621 = scalar_select %p620, %s32, 1
      %s622 = smul.addr %s621, 4
      %s623 = smul.addr %s622, 4
      %s624 = scalar_lea.vmem %s8, %s623
      %p625 = scmp.lt.s32.totalorder %s32, 1
      %s626 = scalar_select %p625, %s32, 1
      %s627 = smul.addr %s626, 4
      %s628 = smul.addr %s627, 4
      %s629 = scalar_lea.vmem %s9, %s628
      %p630 = scmp.lt.s32.totalorder %s32, 1
      %s631 = scalar_select %p630, %s32, 1
      %s632 = smul.addr %s631, 8
      %s633 = smul.addr %s632, 4
      %s634 = scalar_lea.vmem %s10, %s633
      %p635 = scmp.lt.s32.totalorder %s31, 1
      %s636 = scalar_select %p635, %s31, 1
      %s637 = smul.addr %s636, 4
      %s638 = scalar_lea.vmem %s13, %s637
      %p639 = scmp.lt.s32.totalorder %s31, 1
      %s640 = scalar_select %p639, %s31, 1
      %s641 = smul.addr %s640, 4
      %s642 = scalar_lea.vmem %s14, %s641
      %p643 = scmp.lt.s32.totalorder %s31, 1
      %s644 = scalar_select %p643, %s31, 1
      %s645 = scalar_lea.vmem %s15, %s644
      %p647 = scmp.eq.s32.totalorder %s32, 0
      // Predicated region
      $region73: #{deepseek_trainable_mtp_forward.2} parent=71 // pred_check
        %p648 = pneg %p647
      $region74: #{deepseek_trainable_mtp_forward.2} parent=71 // pred_check_branch
        %650 = sbr.rel (%p648) target = $region76
      $region75: #{deepseek_trainable_mtp_forward.2} parent=71 // pred_region
        %v651 = vld [vmem:[%s604] sm:$0xf]
        %v652 = vunpack.c.l.bf16 %v651
        %vm653 = vcmask 261120
        %654 = vst.msk [vmem:[#allocation2] sm:$0xff] %vm653, %v652
      $region76: #{deepseek_trainable_mtp_forward.2} parent=71 // pred_fallthru
        _
      %v655 = vld [vmem:[#allocation2] sm:$0xff]
      %v656 = vld [vmem:[%s1] sm:$0xff]
      %v657 = vld [vmem:[%s2] sm:$0xff]
      %v658 = vld [vmem:[%s3] sm:$0xff]
      %v659 = vld [vmem:[%s611] sm:$0x1]
      %v660 = vld [vmem:[%s614] sm:$0x1]
      %v661 = vld [vmem:[%s619] sm:$0xff]
      %v662 = vld [vmem:[%s619 + $0x8] sm:$0xff]
      %v663 = vld [vmem:[%s619 + $0x10] sm:$0xff]
      %v664 = vld [vmem:[%s619 + $0x18] sm:$0xff]
      %v665 = vld [vmem:[%s624] sm:$0xf]
      %v666 = vld [vmem:[%s624 + $0x4] sm:$0xf]
      %v667 = vld [vmem:[%s624 + $0x8] sm:$0xf]
      %v668 = vld [vmem:[%s624 + $0xc] sm:$0xf]
      %v669 = vld [vmem:[%s629] sm:$0xf]
      %v670 = vld [vmem:[%s629 + $0x4] sm:$0xf]
      %v671 = vld [vmem:[%s629 + $0x8] sm:$0xf]
      %v672 = vld [vmem:[%s629 + $0xc] sm:$0xf]
      %v673 = vld [vmem:[%s634] sm:$0xf]
      %v674 = vld [vmem:[%s634 + $0x4] sm:$0xf]
      %v675 = vld [vmem:[%s634 + $0x8] sm:$0xf]
      %v676 = vld [vmem:[%s634 + $0xc] sm:$0xf]
      %v677 = vld [vmem:[%s634 + $0x10] sm:$0xf]
      %v678 = vld [vmem:[%s634 + $0x14] sm:$0xf]
      %v679 = vld [vmem:[%s634 + $0x18] sm:$0xf]
      %v680 = vld [vmem:[%s634 + $0x1c] sm:$0xf]
      %v681 = vmul.f32 %v655, %v655
      %vm682 = vcmask 261120
      %v683 = vsel %vm682, %v681, 0.0
      %684 = vadd.xlane.f32.xlu0 %v683
      %v685 = vpop.xlane.xlu0 %684
      %v686 = vrcp.pop 32.0
      %v687 = vmul.f32 32.0, %v686
      %v688 = vsub.f32 1.0, %v687
      %v689 = vmul.f32 %v686, %v688
      %v690 = vadd.f32 %v686, %v689
      %vm691 = vweird.f32 %v686
      %v692 = vsel %vm691, %v686, %v690
      %v693 = vmul.f32 %v685, %v692
      %v694 = vadd.f32 %v693, 1e-06
      %v695 = vrsqrt.pop %v694
      %v696 = vmul.f32 %v695, %v694
      %v697 = vmul.f32 %v696, %v695
      %v698 = vmul.f32 0.5, %v697
      %v699 = vsub.f32 1.5, %v698
      %v700 = vmul.f32 %v695, %v699
      %vm701 = vweird.f32 %v694
      %vm702 = vweird.f32 %v695
      %vm703 = vmor %vm701, %vm702
      %v704 = vsel %vm703, %v695, %v700
      %v705 = vmul.f32 %v655, %v704
      %v707 = vperm.slane %v659, 0
      %v709 = vmul.f32 %v705, %v707
      %v710 = vpack.c.bf16 %v709, %v709
      %v715 = vunpack.c.l.b16 %v661
      %v716 = vunpack.c.h.b16 %v661
      %v717 = vunpack.c.l.b16 %v662
      %v718 = vunpack.c.h.b16 %v662
      %v719 = vunpack.c.l.b16 %v663
      %v720 = vunpack.c.h.b16 %v663
      %v721 = vunpack.c.l.b16 %v664
      %v722 = vunpack.c.h.b16 %v664
      %v723 = vpack.c.b16 %v717, %v715
      %v724 = vpack.c.b16 %v718, %v716
      %v725 = vpack.c.b16 %v721, %v719
      %v726 = vpack.c.b16 %v722, %v720
      %v732 = vsel %vm682, %v710, 0
      %734 = vmatpush.bf16.msra.mxu0 0
      %735 = vmatpush.bf16.msra.mxu0 0
      %736 = vmatpush.bf16.msra.mxu0 0
      %737 = vmatpush.bf16.msra.mxu0 0
      %738 = vmatpush.bf16.msra.mxu0 0
      %739 = vmatpush.bf16.msra.mxu0 0
      %740 = vmatpush.bf16.msra.mxu0 %v725
      %741 = vmatpush.bf16.msra.mxu0 %v723
      %742 = vmatmul.bf16.gmra.mxu0 %v732
      %v743 = vpop.f32.mrf.mxu0
      %v744 = vadd.f32 0.0, %v743
      %v745 = vpop.f32.mrf.mxu0
      %746 = vdwg.mxu0
      %747 = vmatpush.bf16.msra.mxu0 0
      %748 = vmatpush.bf16.msra.mxu0 0
      %749 = vmatpush.bf16.msra.mxu0 0
      %750 = vmatpush.bf16.msra.mxu0 0
      %751 = vmatpush.bf16.msra.mxu0 0
      %752 = vmatpush.bf16.msra.mxu0 0
      %753 = vmatpush.bf16.msra.mxu0 %v726
      %754 = vmatpush.bf16.msra.mxu0 %v724
      %755 = vmatmul.bf16.gmra.mxu0 %v732
      %v756 = vpop.f32.mrf.mxu0
      %v757 = vadd.f32 0.0, %v756
      %v758 = vpop.f32.mrf.mxu0
      %759 = vdwg.mxu0
      %v760 = vmul.f32 %v744, %v656
      %762 = vrot.lane.b32.xlu0 %v657, 32
      %v763 = vpop.permute.xlu0 %762
      %v765 = vmul.f32 %v744, %v763
      %767 = vrot.lane.b32.xlu0 %v765, 96
      %v768 = vpop.permute.xlu0 %767
      %v770 = vadd.f32 %v760, %v768
      %772 = vrot.lane.b32.xlu0 %v656, 64
      %v773 = vpop.permute.xlu0 %772
      %v775 = vmul.f32 %v744, %v773
      %776 = vrot.lane.b32.xlu0 %v657, 96
      %v777 = vpop.permute.xlu0 %776
      %v779 = vmul.f32 %v744, %v777
      %781 = vrot.lane.b32.xlu0 %v779, 96
      %v782 = vpop.permute.xlu0 %781
      %v784 = vadd.f32 %v775, %v782
      %v785 = vpack.c.bf16 %v770, %v770
      %v786 = vpack.c.bf16 %v784, %v784
      %v787 = vpack.c.bf16 %v757, %v757
      %789 = vrot.lane.b32.xlu0 %v786, 64
      %v790 = vpop.permute.xlu0 %789
      %vm791 = vcmask 64512
      %v793 = vsel %vm791, %v785, 0
      %v796 = vsel %vm791, %v790, 0
      %798 = vmatpush.bf16.xpose.msra.mxu0 0
      %799 = vmatpush.bf16.xpose.msra.mxu0 0
      %800 = vmatpush.bf16.xpose.msra.mxu0 0
      %801 = vmatpush.bf16.xpose.msra.mxu0 0
      %802 = vmatpush.bf16.xpose.msra.mxu0 0
      %803 = vmatpush.bf16.xpose.msra.mxu0 0
      %804 = vmatpush.bf16.xpose.msra.mxu0 0
      %805 = vmatpush.bf16.xpose.msra.mxu0 %v796
      %806 = vmatmul.bf16.gmra.mxu0 %v793
      %v807 = vpop.f32.mrf.mxu0
      %v808 = vadd.f32 0.0, %v807
      %v809 = vpop.f32.mrf.mxu0
      %810 = vdwg.mxu0
      %v811 = vmul.f32 %v808, 0.35355338
      %v812 = vadd.f32 %v811, %v658
      %v813 = vsel %vm791, %v812, -inf
      %814 = vmax.xlane.f32.xlu0 %v813
      %v815 = vpop.xlane.xlu0 %814
      %v816 = vsub.f32 %v812, %v815
      %v817 = vmul.f32 %v816, 1.442695
      %v818 = vpow.pop %v817
      %v819 = vsel %vm791, %v818, 0.0
      %820 = vadd.xlane.f32.xlu0 %v819
      %v821 = vpop.xlane.xlu0 %820
      %v822 = vrcp.pop %v821
      %v823 = vmul.f32 %v818, %v822
      %v824 = vpack.c.bf16 %v823, %v823
      %v826 = vsel %vm791, %v824, 0
      %vm828 = vcmask 1043456
      %v830 = vsel %vm828, %v787, 0
      %832 = vmatpush.bf16.msra.mxu0 0
      %833 = vmatpush.bf16.msra.mxu0 0
      %834 = vmatpush.bf16.msra.mxu0 0
      %835 = vmatpush.bf16.msra.mxu0 0
      %836 = vmatpush.bf16.msra.mxu0 0
      %837 = vmatpush.bf16.msra.mxu0 0
      %838 = vmatpush.bf16.msra.mxu0 0
      %839 = vmatpush.bf16.msra.mxu0 %v830
      %840 = vmatmul.bf16.gmra.mxu0 %v826
      %v841 = vpop.f32.mrf.mxu0
      %v842 = vadd.f32 0.0, %v841
      %v843 = vpop.f32.mrf.mxu0
      %844 = vdwg.mxu0
      %846 = vrot.lane.b32.xlu0 %v785, 120
      %v847 = vpop.permute.xlu0 %846
      %848 = vrot.lane.b32.xlu0 %v786, 56
      %v849 = vpop.permute.xlu0 %848
      %v851 = vsel %vm791, %v847, 0
      %v854 = vsel %vm791, %v849, 0
      %856 = vmatpush.bf16.xpose.msra.mxu0 0
      %857 = vmatpush.bf16.xpose.msra.mxu0 0
      %858 = vmatpush.bf16.xpose.msra.mxu0 0
      %859 = vmatpush.bf16.xpose.msra.mxu0 0
      %860 = vmatpush.bf16.xpose.msra.mxu0 0
      %861 = vmatpush.bf16.xpose.msra.mxu0 0
      %862 = vmatpush.bf16.xpose.msra.mxu0 0
      %863 = vmatpush.bf16.xpose.msra.mxu0 %v854
      %864 = vmatmul.bf16.gmra.mxu0 %v851
      %v865 = vpop.f32.mrf.mxu0
      %v866 = vadd.f32 0.0, %v865
      %v867 = vpop.f32.mrf.mxu0
      %868 = vdwg.mxu0
      %v869 = vmul.f32 %v866, 0.35355338
      %v870 = vadd.f32 %v869, %v658
      %v871 = vsel %vm791, %v870, -inf
      %872 = vmax.xlane.f32.xlu0 %v871
      %v873 = vpop.xlane.xlu0 %872
      %v874 = vsub.f32 %v870, %v873
      %v875 = vmul.f32 %v874, 1.442695
      %v876 = vpow.pop %v875
      %v877 = vsel %vm791, %v876, 0.0
      %878 = vadd.xlane.f32.xlu0 %v877
      %v879 = vpop.xlane.xlu0 %878
      %v880 = vrcp.pop %v879
      %v881 = vmul.f32 %v876, %v880
      %v882 = vpack.c.bf16 %v881, %v881
      %884 = vrot.lane.b32.xlu0 %v787, 120
      %v885 = vpop.permute.xlu0 %884
      %v887 = vsel %vm791, %v882, 0
      %v890 = vsel %vm828, %v885, 0
      %892 = vmatpush.bf16.msra.mxu0 0
      %893 = vmatpush.bf16.msra.mxu0 0
      %894 = vmatpush.bf16.msra.mxu0 0
      %895 = vmatpush.bf16.msra.mxu0 0
      %896 = vmatpush.bf16.msra.mxu0 0
      %897 = vmatpush.bf16.msra.mxu0 0
      %898 = vmatpush.bf16.msra.mxu0 0
      %899 = vmatpush.bf16.msra.mxu0 %v890
      %900 = vmatmul.bf16.gmra.mxu0 %v887
      %v901 = vpop.f32.mrf.mxu0
      %v902 = vadd.f32 0.0, %v901
      %v903 = vpop.f32.mrf.mxu0
      %904 = vdwg.mxu0
      %905 = vrot.lane.b32.xlu0 %v785, 112
      %v906 = vpop.permute.xlu0 %905
      %907 = vrot.lane.b32.xlu0 %v786, 48
      %v908 = vpop.permute.xlu0 %907
      %v910 = vsel %vm791, %v906, 0
      %v913 = vsel %vm791, %v908, 0
      %915 = vmatpush.bf16.xpose.msra.mxu0 0
      %916 = vmatpush.bf16.xpose.msra.mxu0 0
      %917 = vmatpush.bf16.xpose.msra.mxu0 0
      %918 = vmatpush.bf16.xpose.msra.mxu0 0
      %919 = vmatpush.bf16.xpose.msra.mxu0 0
      %920 = vmatpush.bf16.xpose.msra.mxu0 0
      %921 = vmatpush.bf16.xpose.msra.mxu0 0
      %922 = vmatpush.bf16.xpose.msra.mxu0 %v913
      %923 = vmatmul.bf16.gmra.mxu0 %v910
      %v924 = vpop.f32.mrf.mxu0
      %v925 = vadd.f32 0.0, %v924
      %v926 = vpop.f32.mrf.mxu0
      %927 = vdwg.mxu0
      %v928 = vmul.f32 %v925, 0.35355338
      %v929 = vadd.f32 %v928, %v658
      %v930 = vsel %vm791, %v929, -inf
      %931 = vmax.xlane.f32.xlu0 %v930
      %v932 = vpop.xlane.xlu0 %931
      %v933 = vsub.f32 %v929, %v932
      %v934 = vmul.f32 %v933, 1.442695
      %v935 = vpow.pop %v934
      %v936 = vsel %vm791, %v935, 0.0
      %937 = vadd.xlane.f32.xlu0 %v936
      %v938 = vpop.xlane.xlu0 %937
      %v939 = vrcp.pop %v938
      %v940 = vmul.f32 %v935, %v939
      %v941 = vpack.c.bf16 %v940, %v940
      %942 = vrot.lane.b32.xlu0 %v787, 112
      %v943 = vpop.permute.xlu0 %942
      %v945 = vsel %vm791, %v941, 0
      %v948 = vsel %vm828, %v943, 0
      %950 = vmatpush.bf16.msra.mxu0 0
      %951 = vmatpush.bf16.msra.mxu0 0
      %952 = vmatpush.bf16.msra.mxu0 0
      %953 = vmatpush.bf16.msra.mxu0 0
      %954 = vmatpush.bf16.msra.mxu0 0
      %955 = vmatpush.bf16.msra.mxu0 0
      %956 = vmatpush.bf16.msra.mxu0 0
      %957 = vmatpush.bf16.msra.mxu0 %v948
      %958 = vmatmul.bf16.gmra.mxu0 %v945
      %v959 = vpop.f32.mrf.mxu0
      %v960 = vadd.f32 0.0, %v959
      %v961 = vpop.f32.mrf.mxu0
      %962 = vdwg.mxu0
      %963 = vrot.lane.b32.xlu0 %v785, 104
      %v964 = vpop.permute.xlu0 %963
      %965 = vrot.lane.b32.xlu0 %v786, 40
      %v966 = vpop.permute.xlu0 %965
      %v968 = vsel %vm791, %v964, 0
      %v971 = vsel %vm791, %v966, 0
      %973 = vmatpush.bf16.xpose.msra.mxu0 0
      %974 = vmatpush.bf16.xpose.msra.mxu0 0
      %975 = vmatpush.bf16.xpose.msra.mxu0 0
      %976 = vmatpush.bf16.xpose.msra.mxu0 0
      %977 = vmatpush.bf16.xpose.msra.mxu0 0
      %978 = vmatpush.bf16.xpose.msra.mxu0 0
      %979 = vmatpush.bf16.xpose.msra.mxu0 0
      %980 = vmatpush.bf16.xpose.msra.mxu0 %v971
      %981 = vmatmul.bf16.gmra.mxu0 %v968
      %v982 = vpop.f32.mrf.mxu0
      %v983 = vadd.f32 0.0, %v982
      %v984 = vpop.f32.mrf.mxu0
      %985 = vdwg.mxu0
      %v986 = vmul.f32 %v983, 0.35355338
      %v987 = vadd.f32 %v986, %v658
      %v988 = vsel %vm791, %v987, -inf
      %989 = vmax.xlane.f32.xlu0 %v988
      %v990 = vpop.xlane.xlu0 %989
      %v991 = vsub.f32 %v987, %v990
      %v992 = vmul.f32 %v991, 1.442695
      %v993 = vpow.pop %v992
      %v994 = vsel %vm791, %v993, 0.0
      %995 = vadd.xlane.f32.xlu0 %v994
      %v996 = vpop.xlane.xlu0 %995
      %v997 = vrcp.pop %v996
      %v998 = vmul.f32 %v993, %v997
      %v999 = vpack.c.bf16 %v998, %v998
      %1000 = vrot.lane.b32.xlu0 %v787, 104
      %v1001 = vpop.permute.xlu0 %1000
      %v1003 = vsel %vm791, %v999, 0
      %v1006 = vsel %vm828, %v1001, 0
      %1008 = vmatpush.bf16.msra.mxu0 0
      %1009 = vmatpush.bf16.msra.mxu0 0
      %1010 = vmatpush.bf16.msra.mxu0 0
      %1011 = vmatpush.bf16.msra.mxu0 0
      %1012 = vmatpush.bf16.msra.mxu0 0
      %1013 = vmatpush.bf16.msra.mxu0 0
      %1014 = vmatpush.bf16.msra.mxu0 0
      %1015 = vmatpush.bf16.msra.mxu0 %v1006
      %1016 = vmatmul.bf16.gmra.mxu0 %v1003
      %v1017 = vpop.f32.mrf.mxu0
      %v1018 = vadd.f32 0.0, %v1017
      %v1019 = vpop.f32.mrf.mxu0
      %1020 = vdwg.mxu0
      %1022 = vrot.lane.b32.xlu0 %v902, 8
      %v1023 = vpop.permute.xlu0 %1022
      %1026 = vrot.lane.b32.xlu0 %v960, 16
      %v1027 = vpop.permute.xlu0 %1026
      %1030 = vrot.lane.b32.xlu0 %v1018, 24
      %v1031 = vpop.permute.xlu0 %1030
      %v1033 = vsel %vm791, %v842, %v1023
      %vm1034 = vcmask 130048
      %v1035 = vsel %vm1034, %v1033, %v1027
      %vm1036 = vcmask 195584
      %v1037 = vsel %vm1036, %v1035, %v1031
      %v1038 = vpack.c.bf16 %v1037, %v1037
      %v1043 = vunpack.c.l.b16 %v665
      %v1044 = vunpack.c.l.b16 %v666
      %v1045 = vunpack.c.l.b16 %v667
      %v1046 = vunpack.c.l.b16 %v668
      %v1047 = vpack.c.b16 %v1044, %v1043
      %v1048 = vpack.c.b16 %v1046, %v1045
      %v1052 = vsel %vm682, %v1038, 0
      %1054 = vmatpush.bf16.msra.mxu0 0
      %1055 = vmatpush.bf16.msra.mxu0 0
      %1056 = vmatpush.bf16.msra.mxu0 0
      %1057 = vmatpush.bf16.msra.mxu0 0
      %1058 = vmatpush.bf16.msra.mxu0 0
      %1059 = vmatpush.bf16.msra.mxu0 0
      %1060 = vmatpush.bf16.msra.mxu0 %v1048
      %1061 = vmatpush.bf16.msra.mxu0 %v1047
      %1062 = vmatmul.bf16.gmra.mxu0 %v1052
      %v1063 = vpop.f32.mrf.mxu0
      %v1064 = vadd.f32 0.0, %v1063
      %v1065 = vpop.f32.mrf.mxu0
      %1066 = vdwg.mxu0
      %v1067 = vadd.f32 %v655, %v1064
      %v1068 = vmul.f32 %v1067, %v1067
      %v1069 = vsel %vm682, %v1068, 0.0
      %1070 = vadd.xlane.f32.xlu0 %v1069
      %v1071 = vpop.xlane.xlu0 %1070
      %v1072 = vmul.f32 %v1071, %v692
      %v1073 = vadd.f32 %v1072, 1e-06
      %v1074 = vrsqrt.pop %v1073
      %v1075 = vmul.f32 %v1074, %v1073
      %v1076 = vmul.f32 %v1075, %v1074
      %v1077 = vmul.f32 0.5, %v1076
      %v1078 = vsub.f32 1.5, %v1077
      %v1079 = vmul.f32 %v1074, %v1078
      %vm1080 = vweird.f32 %v1073
      %vm1081 = vweird.f32 %v1074
      %vm1082 = vmor %vm1080, %vm1081
      %v1083 = vsel %vm1082, %v1074, %v1079
      %v1084 = vmul.f32 %v1067, %v1083
      %v1086 = vperm.slane %v660, 0
      %v1088 = vmul.f32 %v1084, %v1086
      %v1089 = vpack.c.bf16 %v1088, %v1088
      %v1094 = vunpack.c.l.b16 %v669
      %v1095 = vunpack.c.l.b16 %v670
      %v1096 = vunpack.c.l.b16 %v671
      %v1097 = vunpack.c.l.b16 %v672
      %v1098 = vpack.c.b16 %v1095, %v1094
      %v1099 = vpack.c.b16 %v1097, %v1096
      %v1103 = vsel %vm682, %v1089, 0
      %1105 = vmatpush.bf16.msra.mxu0 0
      %1106 = vmatpush.bf16.msra.mxu0 0
      %1107 = vmatpush.bf16.msra.mxu0 0
      %1108 = vmatpush.bf16.msra.mxu0 0
      %1109 = vmatpush.bf16.msra.mxu0 0
      %1110 = vmatpush.bf16.msra.mxu0 0
      %1111 = vmatpush.bf16.msra.mxu0 %v1099
      %1112 = vmatpush.bf16.msra.mxu0 %v1098
      %1113 = vmatmul.bf16.gmra.mxu0 %v1103
      %v1114 = vpop.f32.mrf.mxu0
      %v1115 = vadd.f32 0.0, %v1114
      %v1116 = vpop.f32.mrf.mxu0
      %1117 = vdwg.mxu0
      %v1118 = vxor.u32 %v1115, 2147483648
      %v1119 = vmul.f32 %v1118, 1.442695
      %v1120 = vpow.pop %v1119
      %v1121 = vadd.f32 %v1120, 1.0
      %v1122 = vrcp.pop %v1121
      %v1123 = vmul.f32 %v1121, %v1122
      %v1124 = vsub.f32 1.0, %v1123
      %v1125 = vmul.f32 %v1122, %v1124
      %v1126 = vadd.f32 %v1122, %v1125
      %vm1127 = vweird.f32 %v1121
      %vm1128 = vweird.f32 %v1122
      %vm1129 = vmor %vm1127, %vm1128
      %v1130 = vsel %vm1129, %v1122, %v1126
      %v1131 = vand.u32 2147483647, %v1121
      %vm1132 = vcmp.eq.f32.partialorder %v1131, 8.507059e+37
      %v1133 = vand.u32 %v1121, 2147483648
      %v1134 = vor.u32 1.1754944e-38, %v1133
      %v1135 = vsel %vm1132, %v1134, %v1130
      %v1136 = vmul.f32 1.0, %v1135
      %v1137 = vmul.f32 %v1115, %v1136
      %1139 = vrot.lane.b32.xlu0 %v1115, 64
      %v1140 = vpop.permute.xlu0 %1139
      %v1142 = vmul.f32 %v1137, %v1140
      %v1143 = vpack.c.bf16 %v1142, %v1142
      %v1152 = vunpack.c.l.b16 %v673
      %v1153 = vunpack.c.l.b16 %v674
      %v1154 = vunpack.c.l.b16 %v675
      %v1155 = vunpack.c.l.b16 %v676
      %v1156 = vunpack.c.l.b16 %v677
      %v1157 = vunpack.c.l.b16 %v678
      %v1158 = vunpack.c.l.b16 %v679
      %v1159 = vunpack.c.l.b16 %v680
      %v1160 = vpack.c.b16 %v1153, %v1152
      %v1161 = vpack.c.b16 %v1155, %v1154
      %v1162 = vpack.c.b16 %v1157, %v1156
      %v1163 = vpack.c.b16 %v1159, %v1158
      %vm1168 = vcmask 523264
      %v1170 = vsel %vm1168, %v1143, 0
      %1172 = vmatpush.bf16.msra.mxu0 0
      %1173 = vmatpush.bf16.msra.mxu0 0
      %1174 = vmatpush.bf16.msra.mxu0 0
      %1175 = vmatpush.bf16.msra.mxu0 0
      %1176 = vmatpush.bf16.msra.mxu0 %v1163
      %1177 = vmatpush.bf16.msra.mxu0 %v1162
      %1178 = vmatpush.bf16.msra.mxu0 %v1161
      %1179 = vmatpush.bf16.msra.mxu0 %v1160
      %1180 = vmatmul.bf16.gmra.mxu0 %v1170
      %v1181 = vpop.f32.mrf.mxu0
      %v1182 = vadd.f32 0.0, %v1181
      %v1183 = vpop.f32.mrf.mxu0
      %1184 = vdwg.mxu0
      %v1185 = vadd.f32 %v1067, %v1182
      %1186 = vst.msk [vmem:[#allocation2] sm:$0xff] %vm682, %v1185
      %p1187 = scmp.eq.s32.totalorder %s32, 1
      // Predicated region
      $region77: #{deepseek_trainable_mtp_forward.2} parent=71 // pred_check
        %p1188 = pneg %p1187
      $region78: #{deepseek_trainable_mtp_forward.2} parent=71 // pred_check_branch
        %1190 = sbr.rel (%p1188) target = $region80
      $region79: #{deepseek_trainable_mtp_forward.2} parent=71 // pred_region
        %v1191 = vpack.c.bf16 %v1185, %v1185
        %vm1192 = vcmask 257024
        %1193 = vst.msk [vmem:[%s638] sm:$0xf] %vm1192, %v1191
        %v1194 = vld [vmem:[%s11] sm:$0x1]
        %v1195 = vld [vmem:[%s12] sm:$0xf]
        %v1196 = vld [vmem:[%s12 + $0x4] sm:$0xf]
        %v1197 = vld [vmem:[%s12 + $0x8] sm:$0xf]
        %v1198 = vld [vmem:[%s12 + $0xc] sm:$0xf]
        %v1199 = vld [vmem:[%s608] sm:$0xff]
        %v1200 = vmul.f32 %v1185, %v1185
        %v1201 = vsel %vm682, %v1200, 0.0
        %1202 = vadd.xlane.f32.xlu0 %v1201
        %v1203 = vpop.xlane.xlu0 %1202
        %v1204 = vmul.f32 %v1203, %v692
        %v1205 = vadd.f32 %v1204, 1e-06
        %v1206 = vrsqrt.pop %v1205
        %v1207 = vmul.f32 %v1206, %v1205
        %v1208 = vmul.f32 %v1207, %v1206
        %v1209 = vmul.f32 0.5, %v1208
        %v1210 = vsub.f32 1.5, %v1209
        %v1211 = vmul.f32 %v1206, %v1210
        %vm1212 = vweird.f32 %v1205
        %vm1213 = vweird.f32 %v1206
        %vm1214 = vmor %vm1212, %vm1213
        %v1215 = vsel %vm1214, %v1206, %v1211
        %v1216 = vmul.f32 %v1185, %v1215
        %v1218 = vperm.slane %v1194, 0
        %v1220 = vmul.f32 %v1216, %v1218
        %v1221 = vpack.c.bf16 %v1220, %v1220
        %v1226 = vunpack.c.l.b16 %v1195
        %v1227 = vunpack.c.l.b16 %v1196
        %v1228 = vunpack.c.l.b16 %v1197
        %v1229 = vunpack.c.l.b16 %v1198
        %v1230 = vpack.c.b16 %v1227, %v1226
        %v1231 = vpack.c.b16 %v1229, %v1228
        %v1235 = vsel %vm682, %v1221, 0
        %1237 = vmatpush.bf16.msra.mxu0 0
        %1238 = vmatpush.bf16.msra.mxu0 0
        %1239 = vmatpush.bf16.msra.mxu0 0
        %1240 = vmatpush.bf16.msra.mxu0 0
        %1241 = vmatpush.bf16.msra.mxu0 0
        %1242 = vmatpush.bf16.msra.mxu0 0
        %1243 = vmatpush.bf16.msra.mxu0 %v1231
        %1244 = vmatpush.bf16.msra.mxu0 %v1230
        %1245 = vmatmul.bf16.gmra.mxu0 %v1235
        %v1246 = vpop.f32.mrf.mxu0
        %v1247 = vadd.f32 0.0, %v1246
        %v1248 = vpop.f32.mrf.mxu0
        %1249 = vdwg.mxu0
        %v1250 = vsel %vm1168, %v1247, -inf
        %1251 = vmax.xlane.f32.xlu0 %v1250
        %v1252 = vpop.xlane.xlu0 %1251
        %v1253 = vsub.f32 %v1247, %v1252
        %v1254 = vmul.f32 %v1253, 1.442695
        %v1255 = vpow.pop %v1254
        %v1256 = vsel %vm1168, %v1255, 0.0
        %1257 = vadd.xlane.f32.xlu0 %v1256
        %v1258 = vpop.xlane.xlu0 %1257
        %v1259 = vlog2.pop %v1258
        %v1260 = vmul.f32 %v1259, 0.6931472
        %v1261 = vadd.f32 %v1252, %v1260
        %v1262 = vlaneseq
        %v1263 = vand.u32 %v1262, 127
        %1264 = vset.pattern.permute.xlu0 0
        %1265 = vperm.xlu0 %1264, %v1199
        %v1266 = vpop.permute.xlu0 %1265
        %vm1267 = vcmp.eq.s32.totalorder %v1263, %v1266
        %v1268 = vsel %vm1267, %v1247, 0.0
        %v1269 = vsel %vm1168, %v1268, 0.0
        %1270 = vadd.xlane.f32.xlu0 %v1269
        %v1271 = vpop.xlane.xlu0 %1270
        %v1272 = vsub.f32 %v1261, %v1271
        %v1273 = vrot.slane %v1272, 4
        %v1274 = vadd.f32 %v1272, %v1273
        %v1275 = vrot.slane %v1274, 2
        %v1276 = vadd.f32 %v1274, %v1275
        %v1277 = vrot.slane %v1276, 1
        %v1278 = vadd.f32 %v1276, %v1277
        %v1279 = vrcp.pop 8.0
        %v1280 = vmul.f32 8.0, %v1279
        %v1281 = vsub.f32 1.0, %v1280
        %v1282 = vmul.f32 %v1279, %v1281
        %v1283 = vadd.f32 %v1279, %v1282
        %vm1284 = vweird.f32 %v1279
        %v1285 = vsel %vm1284, %v1279, %v1283
        %v1286 = vmul.f32 %v1278, %v1285
        %v1287 = vpack.c.bf16 %v1247, %v1247
        %vm1288 = vcmask 519168
        %1289 = vst.msk [vmem:[%s642] sm:$0xf] %vm1288, %v1287
        %vm1290 = vcmask 0
        %1291 = vst.msk [vmem:[%s645] sm:$0x1] %vm1290, %v1286
      $region80: #{deepseek_trainable_mtp_forward.2} parent=71 // pred_fallthru
        _
      %p1292 = scmp.lt.s32.totalorder %s31, 1
      %s1293 = scalar_select %p1292, %s31, 1
      %s1294 = smul.addr %s1293, 4
      %s1295 = scalar_lea.vmem %s13, %s1294
      %p1296 = scmp.lt.s32.totalorder %s31, 1
      %s1297 = scalar_select %p1296, %s31, 1
      %s1298 = smul.addr %s1297, 4
      %s1299 = scalar_lea.vmem %s14, %s1298
      %p1300 = scmp.lt.s32.totalorder %s31, 1
      %s1301 = scalar_select %p1300, %s31, 1
      %s1302 = scalar_lea.vmem %s15, %s1301
      // Predicated region
      $region81: #{deepseek_trainable_mtp_forward.2} parent=71 // pred_check
        %p1303 = pneg %p370
      $region82: #{deepseek_trainable_mtp_forward.2} parent=71 // pred_check_branch
        %1305 = sbr.rel (%p1303) target = $region84
      $region83: #{deepseek_trainable_mtp_forward.2} parent=71 // pred_region
        _
      $region84: #{deepseek_trainable_mtp_forward.2} parent=71 // pred_fallthru
        _
      // Predicated region
      $region85: #{deepseek_trainable_mtp_forward.2} parent=71 // pred_check
        %p1306 = pneg %p396
      $region86: #{deepseek_trainable_mtp_forward.2} parent=71 // pred_check_branch
        %1308 = sbr.rel (%p1306) target = $region88
      $region87: #{deepseek_trainable_mtp_forward.2} parent=71 // pred_region
        _
      $region88: #{deepseek_trainable_mtp_forward.2} parent=71 // pred_fallthru
        _
      // Predicated region
      $region89: #{deepseek_trainable_mtp_forward.2} parent=71 // pred_check
        %p1309 = pneg %p422
      $region90: #{deepseek_trainable_mtp_forward.2} parent=71 // pred_check_branch
        %1311 = sbr.rel (%p1309) target = $region92
      $region91: #{deepseek_trainable_mtp_forward.2} parent=71 // pred_region
        _
      $region92: #{deepseek_trainable_mtp_forward.2} parent=71 // pred_fallthru
        _
    $region72: #{deepseek_trainable_mtp_forward.2} parent=5 // pred_fallthru
      _
    %p1312 = scmp.le.s32.totalorder 2, %s22
    // Predicated region
    $region93: #{deepseek_trainable_mtp_forward.2} parent=5 // pred_check
      %p1313 = pneg %p1312
    $region94: #{deepseek_trainable_mtp_forward.2} parent=5 // pred_check_branch
      %1315 = sbr.rel (%p1313) target = $region96
    $region95: #{deepseek_trainable_mtp_forward.2} parent=5 // pred_region
      %s1316 = ssub.s32 %s22, 2
      // Predicated region
      $region97: #{deepseek_trainable_mtp_forward.2} parent=95 // pred_check
        %p1317 = pneg %p376
      $region98: #{deepseek_trainable_mtp_forward.2} parent=95 // pred_check_branch
        %1319 = sbr.rel (%p1317) target = $region100
      $region99: #{deepseek_trainable_mtp_forward.2} parent=95 // pred_region
        %p1320 = scmp.lt.s32.totalorder %s33, 1
        %s1321 = scalar_select %p1320, %s33, 1
        %s1322 = smul.addr %s1321, 4
        %s1323 = scalar_lea.vmem %s13, %s1322
      $region100: #{deepseek_trainable_mtp_forward.2} parent=95 // pred_fallthru
        _
      // Predicated region
      $region101: #{deepseek_trainable_mtp_forward.2} parent=95 // pred_check
        %p1324 = pneg %p402
      $region102: #{deepseek_trainable_mtp_forward.2} parent=95 // pred_check_branch
        %1326 = sbr.rel (%p1324) target = $region104
      $region103: #{deepseek_trainable_mtp_forward.2} parent=95 // pred_region
        %p1327 = scmp.lt.s32.totalorder %s33, 1
        %s1328 = scalar_select %p1327, %s33, 1
        %s1329 = smul.addr %s1328, 4
        %s1330 = scalar_lea.vmem %s14, %s1329
      $region104: #{deepseek_trainable_mtp_forward.2} parent=95 // pred_fallthru
        _
      // Predicated region
      $region105: #{deepseek_trainable_mtp_forward.2} parent=95 // pred_check
        %p1331 = pneg %p428
      $region106: #{deepseek_trainable_mtp_forward.2} parent=95 // pred_check_branch
        %1333 = sbr.rel (%p1331) target = $region108
      $region107: #{deepseek_trainable_mtp_forward.2} parent=95 // pred_region
        %p1334 = scmp.lt.s32.totalorder %s33, 1
        %s1335 = scalar_select %p1334, %s33, 1
        %s1336 = scalar_lea.vmem %s15, %s1335
      $region108: #{deepseek_trainable_mtp_forward.2} parent=95 // pred_fallthru
        _
    $region96: #{deepseek_trainable_mtp_forward.2} parent=5 // pred_fallthru
      _
  $region6: #{deepseek_trainable_mtp_forward.2} parent=0 // loop_footer
    %s26 = sadd.s32 1, %s22
  $region7: #{deepseek_trainable_mtp_forward.2} parent=0 // loop_footer_branch
    %21 = sbr.rel target = $region3
  $region8: #{deepseek_trainable_mtp_forward.2} parent=0 // loop_exit
    _

// kernel: deepseek_trainable_mtp_forward.3
$region0: #{deepseek_trainable_mtp_forward.3}
  #allocation0 [shape = 'u32[]', space=smem, size = 0x4, offset = 0x4, fixed_abs, tag = 'smem constant byte address 0x4 - core index']
  #allocation1 [shape = 'u32[72,128]{1,0:T(1,128)}', space=vmem, size = 0x9000, scoped, tag = 'internal scratch']
  #allocation2 [shape = 'f32[7,32]{1,0:T(8,128)}', space=vmem, size = 0x1000, scoped, tag = 'scratch operand']
  %s0 = inlined_call_operand.vmem [shape: bf16[2,7,32], index: 0, kind: input, shape index: {}]
  %s1 = inlined_call_operand.vmem [shape: bf16[2,7,32], index: 1, kind: input, shape index: {}]
  %s2 = inlined_call_operand.vmem [shape: f32[7,32], index: 2, kind: input, shape index: {}]
  %s3 = inlined_call_operand.vmem [shape: f32[7,32], index: 3, kind: input, shape index: {}]
  %s4 = inlined_call_operand.vmem [shape: f32[7,7], index: 4, kind: input, shape index: {}]
  %s5 = inlined_call_operand.vmem [shape: s32[2,7,1], index: 5, kind: input, shape index: {}]
  %s6 = inlined_call_operand.vmem [shape: f32[1,32], index: 6, kind: input, shape index: {}]
  %s7 = inlined_call_operand.vmem [shape: f32[1,32], index: 7, kind: input, shape index: {}]
  %s8 = inlined_call_operand.vmem [shape: bf16[32,32], index: 8, kind: input, shape index: {}]
  %s9 = inlined_call_operand.vmem [shape: bf16[32,32], index: 9, kind: input, shape index: {}]
  %s10 = inlined_call_operand.vmem [shape: f32[1,1,32], index: 10, kind: input, shape index: {}]
  %s11 = inlined_call_operand.vmem [shape: f32[1,1,32], index: 11, kind: input, shape index: {}]
  %s12 = inlined_call_operand.vmem [shape: bf16[1,32,160], index: 12, kind: input, shape index: {}]
  %s13 = inlined_call_operand.vmem [shape: bf16[1,32,32], index: 13, kind: input, shape index: {}]
  %s14 = inlined_call_operand.vmem [shape: bf16[1,32,128], index: 14, kind: input, shape index: {}]
  %s15 = inlined_call_operand.vmem [shape: bf16[1,64,32], index: 15, kind: input, shape index: {}]
  %s16 = inlined_call_operand.vmem [shape: f32[1,32], index: 16, kind: input, shape index: {}]
  %s17 = inlined_call_operand.vmem [shape: bf16[32,64], index: 17, kind: input, shape index: {}]
  %s18 = inlined_call_operand.hbm [shape: bf16[2,7,32], index: 18, kind: output, shape index: {0}]
  %s19 = inlined_call_operand.vmem [shape: f32[2,1,1], index: 19, kind: output, shape index: {1}]
  %20 = xla_tuple %s18, %s19
  %s21 = sld [smem:[#allocation0]]
  $region121: #{deepseek_trainable_mtp_forward.3} parent=0
    _
  %s23 = ssub.s32 1, %s21
  %s24 = scalar_select 0, %s23, %s21
  $region1: #{deepseek_trainable_mtp_forward.3} parent=0
    #allocation3 [shape = 'u8[4096]{0}', space=vmem, size = 0x1000, scoped, tag = 'output window, operand 0']
    #allocation4 [shape = 's32[2]{0}', space=sflag, size = 0x8, scoped, tag = 'scoped memory for deepseek_trainable_mtp_forward.3']
    %25 = vsyncpa [#allocation4], 0
    %s26 = scalar_lea.sflag [#allocation4], 1
    %27 = vsyncpa %s26, 0
    loop: start=0, step=1, limit=4
    $region2: #{deepseek_trainable_mtp_forward.3} parent=1 // loop_pre_header
      _
    $region3: #{deepseek_trainable_mtp_forward.3} parent=1 // loop_header
      %s29 = sphi 0, %s33
      %p30 = scmp.ge.s32.totalorder %s29, 4
      %s36 = sphi 0, %s48
      %s37 = sphi 0, %s44
      %s38 = sphi 0, %s36
      %s39 = sphi 0, %s37
      %s40 = sphi 0, %s38
      %s41 = sphi 0, %s39
      %s51 = sphi 0, %s53
      %s54 = sphi 0, %s51
      %s55 = sphi 0, %s54
      %s71 = sphi 0, %s55
      %s77 = sphi 0, %s79
      %s80 = sphi 0, %s77
      %s81 = sphi 0, %s80
      %s97 = sphi 0, %s81
      %s101 = sphi 0, %s101
      %s103 = sphi 0, %s101
      %s104 = sphi 0, %s103
      %s118 = sphi 0, %s104
      %s122 = sphi 0, %s122
      %s124 = sphi 0, %s122
      %s125 = sphi 0, %s124
      %s139 = sphi 0, %s125
      %s143 = sphi 0, %s143
      %s145 = sphi 0, %s143
      %s146 = sphi 0, %s145
      %s160 = sphi 0, %s146
      %s166 = sphi 0, %s168
      %s169 = sphi 0, %s166
      %s170 = sphi 0, %s169
      %s186 = sphi 0, %s170
      %s190 = sphi 0, %s190
      %s192 = sphi 0, %s190
      %s193 = sphi 0, %s192
      %s207 = sphi 0, %s193
      %s211 = sphi 0, %s211
      %s213 = sphi 0, %s211
      %s214 = sphi 0, %s213
      %s228 = sphi 0, %s214
      %s232 = sphi 0, %s232
      %s234 = sphi 0, %s232
      %s235 = sphi 0, %s234
      %s249 = sphi 0, %s235
      %s253 = sphi 0, %s253
      %s255 = sphi 0, %s253
      %s256 = sphi 0, %s255
      %s270 = sphi 0, %s256
      %s276 = sphi 0, %s278
      %s279 = sphi 0, %s276
      %s280 = sphi 0, %s279
      %s296 = sphi 0, %s280
      %s302 = sphi 0, %s304
      %s305 = sphi 0, %s302
      %s306 = sphi 0, %s305
      %s322 = sphi 0, %s306
      %s328 = sphi 0, %s330
      %s331 = sphi 0, %s328
      %s332 = sphi 0, %s331
      %s348 = sphi 0, %s332
      %s354 = sphi 0, %s356
      %s357 = sphi 0, %s354
      %s358 = sphi 0, %s357
      %s374 = sphi 0, %s358
      %s380 = sphi 0, %s382
      %s383 = sphi 0, %s380
      %s384 = sphi 0, %s383
      %s400 = sphi 0, %s384
      %s406 = sphi 0, %s408
      %s409 = sphi 0, %s406
      %s410 = sphi 0, %s409
      %s426 = sphi 0, %s410
      %s430 = sphi 0, %s430
      %s432 = sphi 0, %s430
      %s433 = sphi 0, %s432
      %s447 = sphi 0, %s433
      %s451 = sphi 0, %s451
      %s453 = sphi 0, %s451
      %s454 = sphi 0, %s453
      %s468 = sphi 0, %s454
      %s474 = sphi 0, %s476
      %s477 = sphi 0, %s474
      %s478 = sphi 0, %s477
      %s494 = sphi 0, %s478
      %s500 = sphi 0, %s502
      %s503 = sphi 0, %s500
      %s504 = sphi 0, %s503
      %s520 = sphi 0, %s504
    $region4: #{deepseek_trainable_mtp_forward.3} parent=1 // loop_header_branch
      %32 = sbr.rel (%p30) target = $region8
    $region5: #{deepseek_trainable_mtp_forward.3} parent=1 // loop_body
      %s34 = ssub.s32 %s29, 1
      %s35 = ssub.s32 %s29, 2
      %s42 = sadd.s32 1, %s37
      %p43 = scmp.ge.s32.totalorder %s42, 1
      %s44 = scalar_select %p43, 0, %s42
      %s45 = sadd.s32 1, %s36
      %s46 = scalar_select %p43, %s45, %s36
      %p47 = scmp.ge.s32.totalorder %s46, 2
      %s48 = scalar_select %p47, 0, %s46
      %s49 = ssub.s32 %s36, %s48
      %p50 = scmp.eq.s32.totalorder %s49, 0
      %s52 = sadd.s32 %s51, 1
      %s53 = scalar_select %p50, %s51, %s52
      %p56 = pneg %p50
      %p57 = scmp.eq.s32.totalorder %s29, 1
      %p58 = por %p56, %p57
      %p59 = scmp.ne.s32.totalorder %s51, %s54
      %p60 = scmp.eq.s32.totalorder %s29, 0
      %p61 = por %p59, %p60
      %p62 = scmp.ne.s32.totalorder %s51, %s54
      %p63 = scmp.eq.s32.totalorder %s34, 1
      %p64 = por %p62, %p63
      %p65 = scmp.ne.s32.totalorder %s54, %s55
      %p66 = scmp.eq.s32.totalorder %s34, 0
      %p67 = por %p65, %p66
      %p68 = scmp.ne.s32.totalorder %s54, %s55
      %p69 = scmp.eq.s32.totalorder %s35, 1
      %p70 = por %p68, %p69
      %p72 = scmp.ne.s32.totalorder %s55, %s71
      %p73 = scmp.eq.s32.totalorder %s35, 0
      %p74 = por %p72, %p73
      %s75 = ssub.s32 %s36, %s48
      %p76 = scmp.eq.s32.totalorder %s75, 0
      %s78 = sadd.s32 %s77, 1
      %s79 = scalar_select %p76, %s77, %s78
      %p82 = pneg %p76
      %p83 = scmp.eq.s32.totalorder %s29, 1
      %p84 = por %p82, %p83
      %p85 = scmp.ne.s32.totalorder %s77, %s80
      %p86 = scmp.eq.s32.totalorder %s29, 0
      %p87 = por %p85, %p86
      %p88 = scmp.ne.s32.totalorder %s77, %s80
      %p89 = scmp.eq.s32.totalorder %s34, 1
      %p90 = por %p88, %p89
      %p91 = scmp.ne.s32.totalorder %s80, %s81
      %p92 = scmp.eq.s32.totalorder %s34, 0
      %p93 = por %p91, %p92
      %p94 = scmp.ne.s32.totalorder %s80, %s81
      %p95 = scmp.eq.s32.totalorder %s35, 1
      %p96 = por %p94, %p95
      %p98 = scmp.ne.s32.totalorder %s81, %s97
      %p99 = scmp.eq.s32.totalorder %s35, 0
      %p100 = por %p98, %p99
      %s102 = sadd.s32 %s101, 1
      %p105 = scmp.eq.s32.totalorder %s29, 1
      %p106 = scmp.ne.s32.totalorder %s101, %s103
      %p107 = scmp.eq.s32.totalorder %s29, 0
      %p108 = por %p106, %p107
      %p109 = scmp.ne.s32.totalorder %s101, %s103
      %p110 = scmp.eq.s32.totalorder %s34, 1
      %p111 = por %p109, %p110
      %p112 = scmp.ne.s32.totalorder %s103, %s104
      %p113 = scmp.eq.s32.totalorder %s34, 0
      %p114 = por %p112, %p113
      %p115 = scmp.ne.s32.totalorder %s103, %s104
      %p116 = scmp.eq.s32.totalorder %s35, 1
      %p117 = por %p115, %p116
      %p119 = scmp.ne.s32.totalorder %s104, %s118
      %p120 = scmp.eq.s32.totalorder %s35, 0
      %p121 = por %p119, %p120
      %s123 = sadd.s32 %s122, 1
      %p126 = scmp.eq.s32.totalorder %s29, 1
      %p127 = scmp.ne.s32.totalorder %s122, %s124
      %p128 = scmp.eq.s32.totalorder %s29, 0
      %p129 = por %p127, %p128
      %p130 = scmp.ne.s32.totalorder %s122, %s124
      %p131 = scmp.eq.s32.totalorder %s34, 1
      %p132 = por %p130, %p131
      %p133 = scmp.ne.s32.totalorder %s124, %s125
      %p134 = scmp.eq.s32.totalorder %s34, 0
      %p135 = por %p133, %p134
      %p136 = scmp.ne.s32.totalorder %s124, %s125
      %p137 = scmp.eq.s32.totalorder %s35, 1
      %p138 = por %p136, %p137
      %p140 = scmp.ne.s32.totalorder %s125, %s139
      %p141 = scmp.eq.s32.totalorder %s35, 0
      %p142 = por %p140, %p141
      %s144 = sadd.s32 %s143, 1
      %p147 = scmp.eq.s32.totalorder %s29, 1
      %p148 = scmp.ne.s32.totalorder %s143, %s145
      %p149 = scmp.eq.s32.totalorder %s29, 0
      %p150 = por %p148, %p149
      %p151 = scmp.ne.s32.totalorder %s143, %s145
      %p152 = scmp.eq.s32.totalorder %s34, 1
      %p153 = por %p151, %p152
      %p154 = scmp.ne.s32.totalorder %s145, %s146
      %p155 = scmp.eq.s32.totalorder %s34, 0
      %p156 = por %p154, %p155
      %p157 = scmp.ne.s32.totalorder %s145, %s146
      %p158 = scmp.eq.s32.totalorder %s35, 1
      %p159 = por %p157, %p158
      %p161 = scmp.ne.s32.totalorder %s146, %s160
      %p162 = scmp.eq.s32.totalorder %s35, 0
      %p163 = por %p161, %p162
      %s164 = ssub.s32 %s36, %s48
      %p165 = scmp.eq.s32.totalorder %s164, 0
      %s167 = sadd.s32 %s166, 1
      %s168 = scalar_select %p165, %s166, %s167
      %p171 = pneg %p165
      %p172 = scmp.eq.s32.totalorder %s29, 1
      %p173 = por %p171, %p172
      %p174 = scmp.ne.s32.totalorder %s166, %s169
      %p175 = scmp.eq.s32.totalorder %s29, 0
      %p176 = por %p174, %p175
      %p177 = scmp.ne.s32.totalorder %s166, %s169
      %p178 = scmp.eq.s32.totalorder %s34, 1
      %p179 = por %p177, %p178
      %p180 = scmp.ne.s32.totalorder %s169, %s170
      %p181 = scmp.eq.s32.totalorder %s34, 0
      %p182 = por %p180, %p181
      %p183 = scmp.ne.s32.totalorder %s169, %s170
      %p184 = scmp.eq.s32.totalorder %s35, 1
      %p185 = por %p183, %p184
      %p187 = scmp.ne.s32.totalorder %s170, %s186
      %p188 = scmp.eq.s32.totalorder %s35, 0
      %p189 = por %p187, %p188
      %s191 = sadd.s32 %s190, 1
      %p194 = scmp.eq.s32.totalorder %s29, 1
      %p195 = scmp.ne.s32.totalorder %s190, %s192
      %p196 = scmp.eq.s32.totalorder %s29, 0
      %p197 = por %p195, %p196
      %p198 = scmp.ne.s32.totalorder %s190, %s192
      %p199 = scmp.eq.s32.totalorder %s34, 1
      %p200 = por %p198, %p199
      %p201 = scmp.ne.s32.totalorder %s192, %s193
      %p202 = scmp.eq.s32.totalorder %s34, 0
      %p203 = por %p201, %p202
      %p204 = scmp.ne.s32.totalorder %s192, %s193
      %p205 = scmp.eq.s32.totalorder %s35, 1
      %p206 = por %p204, %p205
      %p208 = scmp.ne.s32.totalorder %s193, %s207
      %p209 = scmp.eq.s32.totalorder %s35, 0
      %p210 = por %p208, %p209
      %s212 = sadd.s32 %s211, 1
      %p215 = scmp.eq.s32.totalorder %s29, 1
      %p216 = scmp.ne.s32.totalorder %s211, %s213
      %p217 = scmp.eq.s32.totalorder %s29, 0
      %p218 = por %p216, %p217
      %p219 = scmp.ne.s32.totalorder %s211, %s213
      %p220 = scmp.eq.s32.totalorder %s34, 1
      %p221 = por %p219, %p220
      %p222 = scmp.ne.s32.totalorder %s213, %s214
      %p223 = scmp.eq.s32.totalorder %s34, 0
      %p224 = por %p222, %p223
      %p225 = scmp.ne.s32.totalorder %s213, %s214
      %p226 = scmp.eq.s32.totalorder %s35, 1
      %p227 = por %p225, %p226
      %p229 = scmp.ne.s32.totalorder %s214, %s228
      %p230 = scmp.eq.s32.totalorder %s35, 0
      %p231 = por %p229, %p230
      %s233 = sadd.s32 %s232, 1
      %p236 = scmp.eq.s32.totalorder %s29, 1
      %p237 = scmp.ne.s32.totalorder %s232, %s234
      %p238 = scmp.eq.s32.totalorder %s29, 0
      %p239 = por %p237, %p238
      %p240 = scmp.ne.s32.totalorder %s232, %s234
      %p241 = scmp.eq.s32.totalorder %s34, 1
      %p242 = por %p240, %p241
      %p243 = scmp.ne.s32.totalorder %s234, %s235
      %p244 = scmp.eq.s32.totalorder %s34, 0
      %p245 = por %p243, %p244
      %p246 = scmp.ne.s32.totalorder %s234, %s235
      %p247 = scmp.eq.s32.totalorder %s35, 1
      %p248 = por %p246, %p247
      %p250 = scmp.ne.s32.totalorder %s235, %s249
      %p251 = scmp.eq.s32.totalorder %s35, 0
      %p252 = por %p250, %p251
      %s254 = sadd.s32 %s253, 1
      %p257 = scmp.eq.s32.totalorder %s29, 1
      %p258 = scmp.ne.s32.totalorder %s253, %s255
      %p259 = scmp.eq.s32.totalorder %s29, 0
      %p260 = por %p258, %p259
      %p261 = scmp.ne.s32.totalorder %s253, %s255
      %p262 = scmp.eq.s32.totalorder %s34, 1
      %p263 = por %p261, %p262
      %p264 = scmp.ne.s32.totalorder %s255, %s256
      %p265 = scmp.eq.s32.totalorder %s34, 0
      %p266 = por %p264, %p265
      %p267 = scmp.ne.s32.totalorder %s255, %s256
      %p268 = scmp.eq.s32.totalorder %s35, 1
      %p269 = por %p267, %p268
      %p271 = scmp.ne.s32.totalorder %s256, %s270
      %p272 = scmp.eq.s32.totalorder %s35, 0
      %p273 = por %p271, %p272
      %s274 = ssub.s32 %s37, %s44
      %p275 = scmp.eq.s32.totalorder %s274, 0
      %s277 = sadd.s32 %s276, 1
      %s278 = scalar_select %p275, %s276, %s277
      %p281 = pneg %p275
      %p282 = scmp.eq.s32.totalorder %s29, 1
      %p283 = por %p281, %p282
      %p284 = scmp.ne.s32.totalorder %s276, %s279
      %p285 = scmp.eq.s32.totalorder %s29, 0
      %p286 = por %p284, %p285
      %p287 = scmp.ne.s32.totalorder %s276, %s279
      %p288 = scmp.eq.s32.totalorder %s34, 1
      %p289 = por %p287, %p288
      %p290 = scmp.ne.s32.totalorder %s279, %s280
      %p291 = scmp.eq.s32.totalorder %s34, 0
      %p292 = por %p290, %p291
      %p293 = scmp.ne.s32.totalorder %s279, %s280
      %p294 = scmp.eq.s32.totalorder %s35, 1
      %p295 = por %p293, %p294
      %p297 = scmp.ne.s32.totalorder %s280, %s296
      %p298 = scmp.eq.s32.totalorder %s35, 0
      %p299 = por %p297, %p298
      %s300 = ssub.s32 %s37, %s44
      %p301 = scmp.eq.s32.totalorder %s300, 0
      %s303 = sadd.s32 %s302, 1
      %s304 = scalar_select %p301, %s302, %s303
      %p307 = pneg %p301
      %p308 = scmp.eq.s32.totalorder %s29, 1
      %p309 = por %p307, %p308
      %p310 = scmp.ne.s32.totalorder %s302, %s305
      %p311 = scmp.eq.s32.totalorder %s29, 0
      %p312 = por %p310, %p311
      %p313 = scmp.ne.s32.totalorder %s302, %s305
      %p314 = scmp.eq.s32.totalorder %s34, 1
      %p315 = por %p313, %p314
      %p316 = scmp.ne.s32.totalorder %s305, %s306
      %p317 = scmp.eq.s32.totalorder %s34, 0
      %p318 = por %p316, %p317
      %p319 = scmp.ne.s32.totalorder %s305, %s306
      %p320 = scmp.eq.s32.totalorder %s35, 1
      %p321 = por %p319, %p320
      %p323 = scmp.ne.s32.totalorder %s306, %s322
      %p324 = scmp.eq.s32.totalorder %s35, 0
      %p325 = por %p323, %p324
      %s326 = ssub.s32 %s37, %s44
      %p327 = scmp.eq.s32.totalorder %s326, 0
      %s329 = sadd.s32 %s328, 1
      %s330 = scalar_select %p327, %s328, %s329
      %p333 = pneg %p327
      %p334 = scmp.eq.s32.totalorder %s29, 1
      %p335 = por %p333, %p334
      %p336 = scmp.ne.s32.totalorder %s328, %s331
      %p337 = scmp.eq.s32.totalorder %s29, 0
      %p338 = por %p336, %p337
      %p339 = scmp.ne.s32.totalorder %s328, %s331
      %p340 = scmp.eq.s32.totalorder %s34, 1
      %p341 = por %p339, %p340
      %p342 = scmp.ne.s32.totalorder %s331, %s332
      %p343 = scmp.eq.s32.totalorder %s34, 0
      %p344 = por %p342, %p343
      %p345 = scmp.ne.s32.totalorder %s331, %s332
      %p346 = scmp.eq.s32.totalorder %s35, 1
      %p347 = por %p345, %p346
      %p349 = scmp.ne.s32.totalorder %s332, %s348
      %p350 = scmp.eq.s32.totalorder %s35, 0
      %p351 = por %p349, %p350
      %s352 = ssub.s32 %s37, %s44
      %p353 = scmp.eq.s32.totalorder %s352, 0
      %s355 = sadd.s32 %s354, 1
      %s356 = scalar_select %p353, %s354, %s355
      %p359 = pneg %p353
      %p360 = scmp.eq.s32.totalorder %s29, 1
      %p361 = por %p359, %p360
      %p362 = scmp.ne.s32.totalorder %s354, %s357
      %p363 = scmp.eq.s32.totalorder %s29, 0
      %p364 = por %p362, %p363
      %p365 = scmp.ne.s32.totalorder %s354, %s357
      %p366 = scmp.eq.s32.totalorder %s34, 1
      %p367 = por %p365, %p366
      %p368 = scmp.ne.s32.totalorder %s357, %s358
      %p369 = scmp.eq.s32.totalorder %s34, 0
      %p370 = por %p368, %p369
      %p371 = scmp.ne.s32.totalorder %s357, %s358
      %p372 = scmp.eq.s32.totalorder %s35, 1
      %p373 = por %p371, %p372
      %p375 = scmp.ne.s32.totalorder %s358, %s374
      %p376 = scmp.eq.s32.totalorder %s35, 0
      %p377 = por %p375, %p376
      %s378 = ssub.s32 %s37, %s44
      %p379 = scmp.eq.s32.totalorder %s378, 0
      %s381 = sadd.s32 %s380, 1
      %s382 = scalar_select %p379, %s380, %s381
      %p385 = pneg %p379
      %p386 = scmp.eq.s32.totalorder %s29, 1
      %p387 = por %p385, %p386
      %p388 = scmp.ne.s32.totalorder %s380, %s383
      %p389 = scmp.eq.s32.totalorder %s29, 0
      %p390 = por %p388, %p389
      %p391 = scmp.ne.s32.totalorder %s380, %s383
      %p392 = scmp.eq.s32.totalorder %s34, 1
      %p393 = por %p391, %p392
      %p394 = scmp.ne.s32.totalorder %s383, %s384
      %p395 = scmp.eq.s32.totalorder %s34, 0
      %p396 = por %p394, %p395
      %p397 = scmp.ne.s32.totalorder %s383, %s384
      %p398 = scmp.eq.s32.totalorder %s35, 1
      %p399 = por %p397, %p398
      %p401 = scmp.ne.s32.totalorder %s384, %s400
      %p402 = scmp.eq.s32.totalorder %s35, 0
      %p403 = por %p401, %p402
      %s404 = ssub.s32 %s37, %s44
      %p405 = scmp.eq.s32.totalorder %s404, 0
      %s407 = sadd.s32 %s406, 1
      %s408 = scalar_select %p405, %s406, %s407
      %p411 = pneg %p405
      %p412 = scmp.eq.s32.totalorder %s29, 1
      %p413 = por %p411, %p412
      %p414 = scmp.ne.s32.totalorder %s406, %s409
      %p415 = scmp.eq.s32.totalorder %s29, 0
      %p416 = por %p414, %p415
      %p417 = scmp.ne.s32.totalorder %s406, %s409
      %p418 = scmp.eq.s32.totalorder %s34, 1
      %p419 = por %p417, %p418
      %p420 = scmp.ne.s32.totalorder %s409, %s410
      %p421 = scmp.eq.s32.totalorder %s34, 0
      %p422 = por %p420, %p421
      %p423 = scmp.ne.s32.totalorder %s409, %s410
      %p424 = scmp.eq.s32.totalorder %s35, 1
      %p425 = por %p423, %p424
      %p427 = scmp.ne.s32.totalorder %s410, %s426
      %p428 = scmp.eq.s32.totalorder %s35, 0
      %p429 = por %p427, %p428
      %s431 = sadd.s32 %s430, 1
      %p434 = scmp.eq.s32.totalorder %s29, 1
      %p435 = scmp.ne.s32.totalorder %s430, %s432
      %p436 = scmp.eq.s32.totalorder %s29, 0
      %p437 = por %p435, %p436
      %p438 = scmp.ne.s32.totalorder %s430, %s432
      %p439 = scmp.eq.s32.totalorder %s34, 1
      %p440 = por %p438, %p439
      %p441 = scmp.ne.s32.totalorder %s432, %s433
      %p442 = scmp.eq.s32.totalorder %s34, 0
      %p443 = por %p441, %p442
      %p444 = scmp.ne.s32.totalorder %s432, %s433
      %p445 = scmp.eq.s32.totalorder %s35, 1
      %p446 = por %p444, %p445
      %p448 = scmp.ne.s32.totalorder %s433, %s447
      %p449 = scmp.eq.s32.totalorder %s35, 0
      %p450 = por %p448, %p449
      %s452 = sadd.s32 %s451, 1
      %p455 = scmp.eq.s32.totalorder %s29, 1
      %p456 = scmp.ne.s32.totalorder %s451, %s453
      %p457 = scmp.eq.s32.totalorder %s29, 0
      %p458 = por %p456, %p457
      %p459 = scmp.ne.s32.totalorder %s451, %s453
      %p460 = scmp.eq.s32.totalorder %s34, 1
      %p461 = por %p459, %p460
      %p462 = scmp.ne.s32.totalorder %s453, %s454
      %p463 = scmp.eq.s32.totalorder %s34, 0
      %p464 = por %p462, %p463
      %p465 = scmp.ne.s32.totalorder %s453, %s454
      %p466 = scmp.eq.s32.totalorder %s35, 1
      %p467 = por %p465, %p466
      %p469 = scmp.ne.s32.totalorder %s454, %s468
      %p470 = scmp.eq.s32.totalorder %s35, 0
      %p471 = por %p469, %p470
      %s472 = ssub.s32 %s36, %s48
      %p473 = scmp.eq.s32.totalorder %s472, 0
      %s475 = sadd.s32 %s474, 1
      %s476 = scalar_select %p473, %s474, %s475
      %p479 = pneg %p473
      %p480 = scmp.eq.s32.totalorder %s29, 1
      %p481 = por %p479, %p480
      %p482 = scmp.ne.s32.totalorder %s474, %s477
      %p483 = scmp.eq.s32.totalorder %s29, 0
      %p484 = por %p482, %p483
      %p485 = scmp.ne.s32.totalorder %s474, %s477
      %p486 = scmp.eq.s32.totalorder %s34, 1
      %p487 = por %p485, %p486
      %p488 = scmp.ne.s32.totalorder %s477, %s478
      %p489 = scmp.eq.s32.totalorder %s34, 0
      %p490 = por %p488, %p489
      %p491 = scmp.ne.s32.totalorder %s477, %s478
      %p492 = scmp.eq.s32.totalorder %s35, 1
      %p493 = por %p491, %p492
      %p495 = scmp.ne.s32.totalorder %s478, %s494
      %p496 = scmp.eq.s32.totalorder %s35, 0
      %p497 = por %p495, %p496
      %s498 = ssub.s32 %s36, %s48
      %p499 = scmp.eq.s32.totalorder %s498, 0
      %s501 = sadd.s32 %s500, 1
      %s502 = scalar_select %p499, %s500, %s501
      %p505 = pneg %p499
      %p506 = scmp.eq.s32.totalorder %s29, 1
      %p507 = por %p505, %p506
      %p508 = scmp.ne.s32.totalorder %s500, %s503
      %p509 = scmp.eq.s32.totalorder %s29, 0
      %p510 = por %p508, %p509
      %p511 = scmp.ne.s32.totalorder %s500, %s503
      %p512 = scmp.eq.s32.totalorder %s34, 1
      %p513 = por %p511, %p512
      %p514 = scmp.ne.s32.totalorder %s503, %s504
      %p515 = scmp.eq.s32.totalorder %s34, 0
      %p516 = por %p514, %p515
      %p517 = scmp.ne.s32.totalorder %s503, %s504
      %p518 = scmp.eq.s32.totalorder %s35, 1
      %p519 = por %p517, %p518
      %p521 = scmp.ne.s32.totalorder %s504, %s520
      %p522 = scmp.eq.s32.totalorder %s35, 0
      %p523 = por %p521, %p522
      %p524 = scmp.le.s32.totalorder 1, %s29
      %p525 = scmp.lt.s32.totalorder %s29, 3
      %p526 = pnand %p524, %p525
      %p527 = pneg %p526
      // Predicated region
      $region9: #{deepseek_trainable_mtp_forward.3} parent=5 // pred_check
        _
      $region10: #{deepseek_trainable_mtp_forward.3} parent=5 // pred_check_branch
        %529 = sbr.rel (%p526) target = $region12
      $region11: #{deepseek_trainable_mtp_forward.3} parent=5 // pred_region
        %s530 = ssub.s32 %s29, 1
        // Predicated region
        $region13: #{deepseek_trainable_mtp_forward.3} parent=11 // pred_check
          %p531 = pneg %p114
        $region14: #{deepseek_trainable_mtp_forward.3} parent=11 // pred_check_branch
          %533 = sbr.rel (%p531) target = $region16
        $region15: #{deepseek_trainable_mtp_forward.3} parent=11 // pred_region
          _
        $region16: #{deepseek_trainable_mtp_forward.3} parent=11 // pred_fallthru
          _
        // Predicated region
        $region17: #{deepseek_trainable_mtp_forward.3} parent=11 // pred_check
          %p534 = pneg %p135
        $region18: #{deepseek_trainable_mtp_forward.3} parent=11 // pred_check_branch
          %536 = sbr.rel (%p534) target = $region20
        $region19: #{deepseek_trainable_mtp_forward.3} parent=11 // pred_region
          _
        $region20: #{deepseek_trainable_mtp_forward.3} parent=11 // pred_fallthru
          _
        // Predicated region
        $region21: #{deepseek_trainable_mtp_forward.3} parent=11 // pred_check
          %p537 = pneg %p156
        $region22: #{deepseek_trainable_mtp_forward.3} parent=11 // pred_check_branch
          %539 = sbr.rel (%p537) target = $region24
        $region23: #{deepseek_trainable_mtp_forward.3} parent=11 // pred_region
          _
        $region24: #{deepseek_trainable_mtp_forward.3} parent=11 // pred_fallthru
          _
        // Predicated region
        $region25: #{deepseek_trainable_mtp_forward.3} parent=11 // pred_check
          %p540 = pneg %p203
        $region26: #{deepseek_trainable_mtp_forward.3} parent=11 // pred_check_branch
          %542 = sbr.rel (%p540) target = $region28
        $region27: #{deepseek_trainable_mtp_forward.3} parent=11 // pred_region
          _
        $region28: #{deepseek_trainable_mtp_forward.3} parent=11 // pred_fallthru
          _
        // Predicated region
        $region29: #{deepseek_trainable_mtp_forward.3} parent=11 // pred_check
          %p543 = pneg %p224
        $region30: #{deepseek_trainable_mtp_forward.3} parent=11 // pred_check_branch
          %545 = sbr.rel (%p543) target = $region32
        $region31: #{deepseek_trainable_mtp_forward.3} parent=11 // pred_region
          _
        $region32: #{deepseek_trainable_mtp_forward.3} parent=11 // pred_fallthru
          _
        // Predicated region
        $region33: #{deepseek_trainable_mtp_forward.3} parent=11 // pred_check
          %p546 = pneg %p245
        $region34: #{deepseek_trainable_mtp_forward.3} parent=11 // pred_check_branch
          %548 = sbr.rel (%p546) target = $region36
        $region35: #{deepseek_trainable_mtp_forward.3} parent=11 // pred_region
          _
        $region36: #{deepseek_trainable_mtp_forward.3} parent=11 // pred_fallthru
          _
        // Predicated region
        $region37: #{deepseek_trainable_mtp_forward.3} parent=11 // pred_check
          %p549 = pneg %p266
        $region38: #{deepseek_trainable_mtp_forward.3} parent=11 // pred_check_branch
          %551 = sbr.rel (%p549) target = $region40
        $region39: #{deepseek_trainable_mtp_forward.3} parent=11 // pred_region
          _
        $region40: #{deepseek_trainable_mtp_forward.3} parent=11 // pred_fallthru
          _
        // Predicated region
        $region41: #{deepseek_trainable_mtp_forward.3} parent=11 // pred_check
          %p552 = pneg %p292
        $region42: #{deepseek_trainable_mtp_forward.3} parent=11 // pred_check_branch
          %554 = sbr.rel (%p552) target = $region44
        $region43: #{deepseek_trainable_mtp_forward.3} parent=11 // pred_region
          %p555 = scmp.lt.s32.totalorder %s39, 0
          %s556 = scalar_select %p555, %s39, 0
          %s557 = scalar_lea.vmem %s10, %s556
        $region44: #{deepseek_trainable_mtp_forward.3} parent=11 // pred_fallthru
          _
        // Predicated region
        $region45: #{deepseek_trainable_mtp_forward.3} parent=11 // pred_check
          %p558 = pneg %p318
        $region46: #{deepseek_trainable_mtp_forward.3} parent=11 // pred_check_branch
          %560 = sbr.rel (%p558) target = $region48
        $region47: #{deepseek_trainable_mtp_forward.3} parent=11 // pred_region
          %p561 = scmp.lt.s32.totalorder %s39, 0
          %s562 = scalar_select %p561, %s39, 0
          %s563 = scalar_lea.vmem %s11, %s562
        $region48: #{deepseek_trainable_mtp_forward.3} parent=11 // pred_fallthru
          _
        // Predicated region
        $region49: #{deepseek_trainable_mtp_forward.3} parent=11 // pred_check
          %p564 = pneg %p344
        $region50: #{deepseek_trainable_mtp_forward.3} parent=11 // pred_check_branch
          %566 = sbr.rel (%p564) target = $region52
        $region51: #{deepseek_trainable_mtp_forward.3} parent=11 // pred_region
          %p567 = scmp.lt.s32.totalorder %s39, 0
          %s568 = scalar_select %p567, %s39, 0
          %s569 = smul.addr %s568, 8
          %s570 = smul.addr %s569, 4
          %s571 = scalar_lea.vmem %s12, %s570
        $region52: #{deepseek_trainable_mtp_forward.3} parent=11 // pred_fallthru
          _
        // Predicated region
        $region53: #{deepseek_trainable_mtp_forward.3} parent=11 // pred_check
          %p572 = pneg %p370
        $region54: #{deepseek_trainable_mtp_forward.3} parent=11 // pred_check_branch
          %574 = sbr.rel (%p572) target = $region56
        $region55: #{deepseek_trainable_mtp_forward.3} parent=11 // pred_region
          %p575 = scmp.lt.s32.totalorder %s39, 0
          %s576 = scalar_select %p575, %s39, 0
          %s577 = smul.addr %s576, 4
          %s578 = smul.addr %s577, 4
          %s579 = scalar_lea.vmem %s13, %s578
        $region56: #{deepseek_trainable_mtp_forward.3} parent=11 // pred_fallthru
          _
        // Predicated region
        $region57: #{deepseek_trainable_mtp_forward.3} parent=11 // pred_check
          %p580 = pneg %p396
        $region58: #{deepseek_trainable_mtp_forward.3} parent=11 // pred_check_branch
          %582 = sbr.rel (%p580) target = $region60
        $region59: #{deepseek_trainable_mtp_forward.3} parent=11 // pred_region
          %p583 = scmp.lt.s32.totalorder %s39, 0
          %s584 = scalar_select %p583, %s39, 0
          %s585 = smul.addr %s584, 4
          %s586 = smul.addr %s585, 4
          %s587 = scalar_lea.vmem %s14, %s586
        $region60: #{deepseek_trainable_mtp_forward.3} parent=11 // pred_fallthru
          _
        // Predicated region
        $region61: #{deepseek_trainable_mtp_forward.3} parent=11 // pred_check
          %p588 = pneg %p422
        $region62: #{deepseek_trainable_mtp_forward.3} parent=11 // pred_check_branch
          %590 = sbr.rel (%p588) target = $region64
        $region63: #{deepseek_trainable_mtp_forward.3} parent=11 // pred_region
          %p591 = scmp.lt.s32.totalorder %s39, 0
          %s592 = scalar_select %p591, %s39, 0
          %s593 = smul.addr %s592, 8
          %s594 = smul.addr %s593, 4
          %s595 = scalar_lea.vmem %s15, %s594
        $region64: #{deepseek_trainable_mtp_forward.3} parent=11 // pred_fallthru
          _
        // Predicated region
        $region65: #{deepseek_trainable_mtp_forward.3} parent=11 // pred_check
          %p596 = pneg %p443
        $region66: #{deepseek_trainable_mtp_forward.3} parent=11 // pred_check_branch
          %598 = sbr.rel (%p596) target = $region68
        $region67: #{deepseek_trainable_mtp_forward.3} parent=11 // pred_region
          _
        $region68: #{deepseek_trainable_mtp_forward.3} parent=11 // pred_fallthru
          _
        // Predicated region
        $region69: #{deepseek_trainable_mtp_forward.3} parent=11 // pred_check
          %p599 = pneg %p464
        $region70: #{deepseek_trainable_mtp_forward.3} parent=11 // pred_check_branch
          %601 = sbr.rel (%p599) target = $region72
        $region71: #{deepseek_trainable_mtp_forward.3} parent=11 // pred_region
          _
        $region72: #{deepseek_trainable_mtp_forward.3} parent=11 // pred_fallthru
          _
      $region12: #{deepseek_trainable_mtp_forward.3} parent=5 // pred_fallthru
        _
      %p602 = scmp.lt.s32.totalorder %s29, 2
      // Predicated region
      $region73: #{deepseek_trainable_mtp_forward.3} parent=5 // pred_check
        %p603 = pneg %p602
      $region74: #{deepseek_trainable_mtp_forward.3} parent=5 // pred_check_branch
        %605 = sbr.rel (%p603) target = $region76
      $region75: #{deepseek_trainable_mtp_forward.3} parent=5 // pred_region
        // Predicated region
        $region77: #{deepseek_trainable_mtp_forward.3} parent=75 // pred_check
          %p606 = pneg %p61
        $region78: #{deepseek_trainable_mtp_forward.3} parent=75 // pred_check_branch
          %608 = sbr.rel (%p606) target = $region80
        $region79: #{deepseek_trainable_mtp_forward.3} parent=75 // pred_region
          %p609 = scmp.lt.s32.totalorder %s36, 1
          %s610 = scalar_select %p609, %s36, 1
          %s611 = smul.addr %s610, 4
          %s612 = scalar_lea.vmem %s0, %s611
        $region80: #{deepseek_trainable_mtp_forward.3} parent=75 // pred_fallthru
          _
        // Predicated region
        $region81: #{deepseek_trainable_mtp_forward.3} parent=75 // pred_check
          %p613 = pneg %p87
        $region82: #{deepseek_trainable_mtp_forward.3} parent=75 // pred_check_branch
          %615 = sbr.rel (%p613) target = $region84
        $region83: #{deepseek_trainable_mtp_forward.3} parent=75 // pred_region
          %p616 = scmp.lt.s32.totalorder %s36, 1
          %s617 = scalar_select %p616, %s36, 1
          %s618 = smul.addr %s617, 4
          %s619 = scalar_lea.vmem %s1, %s618
        $region84: #{deepseek_trainable_mtp_forward.3} parent=75 // pred_fallthru
          _
        // Predicated region
        $region85: #{deepseek_trainable_mtp_forward.3} parent=75 // pred_check
          %p620 = pneg %p176
        $region86: #{deepseek_trainable_mtp_forward.3} parent=75 // pred_check_branch
          %622 = sbr.rel (%p620) target = $region88
        $region87: #{deepseek_trainable_mtp_forward.3} parent=75 // pred_region
          %p623 = scmp.lt.s32.totalorder %s36, 1
          %s624 = scalar_select %p623, %s36, 1
          %s625 = smul.addr %s624, 8
          %s626 = scalar_lea.vmem %s5, %s625
        $region88: #{deepseek_trainable_mtp_forward.3} parent=75 // pred_fallthru
          _
      $region76: #{deepseek_trainable_mtp_forward.3} parent=5 // pred_fallthru
        _
      %p627 = scmp.le.s32.totalorder 1, %s29
      %p628 = scmp.lt.s32.totalorder %s29, 3
      %p629 = pnand %p627, %p628
      %p630 = pneg %p629
      // Predicated region
      $region89: #{deepseek_trainable_mtp_forward.3} parent=5 // pred_check
        _
      $region90: #{deepseek_trainable_mtp_forward.3} parent=5 // pred_check_branch
        %632 = sbr.rel (%p629) target = $region92
      $region91: #{deepseek_trainable_mtp_forward.3} parent=5 // pred_region
        %s633 = ssub.s32 %s29, 1
        %p634 = scmp.lt.s32.totalorder %s38, 1
        %s635 = scalar_select %p634, %s38, 1
        %s636 = smul.addr %s635, 4
        %s637 = scalar_lea.vmem %s0, %s636
        %p638 = pneg %p67
        %p639 = pneg %p64
        %p640 = scmp.lt.s32.totalorder %s38, 1
        %s641 = scalar_select %p640, %s38, 1
        %s642 = smul.addr %s641, 4
        %s643 = scalar_lea.vmem %s1, %s642
        %p644 = pneg %p93
        %p645 = pneg %p90
        %p646 = pneg %p114
        %p647 = pneg %p111
        %p648 = pneg %p135
        %p649 = pneg %p132
        %p650 = pneg %p156
        %p651 = pneg %p153
        %p652 = scmp.lt.s32.totalorder %s38, 1
        %s653 = scalar_select %p652, %s38, 1
        %s654 = smul.addr %s653, 8
        %s655 = scalar_lea.vmem %s5, %s654
        %p656 = pneg %p182
        %p657 = pneg %p179
        %p658 = pneg %p203
        %p659 = pneg %p200
        %p660 = pneg %p224
        %p661 = pneg %p221
        %p662 = pneg %p245
        %p663 = pneg %p242
        %p664 = pneg %p266
        %p665 = pneg %p263
        %p666 = scmp.lt.s32.totalorder %s39, 0
        %s667 = scalar_select %p666, %s39, 0
        %s668 = scalar_lea.vmem %s10, %s667
        %p669 = pneg %p292
        %p670 = pneg %p289
        %p671 = scmp.lt.s32.totalorder %s39, 0
        %s672 = scalar_select %p671, %s39, 0
        %s673 = scalar_lea.vmem %s11, %s672
        %p674 = pneg %p318
        %p675 = pneg %p315
        %p676 = scmp.lt.s32.totalorder %s39, 0
        %s677 = scalar_select %p676, %s39, 0
        %s678 = smul.addr %s677, 8
        %s679 = smul.addr %s678, 4
        %s680 = scalar_lea.vmem %s12, %s679
        %p681 = pneg %p344
        %p682 = pneg %p341
        %p683 = scmp.lt.s32.totalorder %s39, 0
        %s684 = scalar_select %p683, %s39, 0
        %s685 = smul.addr %s684, 4
        %s686 = smul.addr %s685, 4
        %s687 = scalar_lea.vmem %s13, %s686
        %p688 = pneg %p370
        %p689 = pneg %p367
        %p690 = scmp.lt.s32.totalorder %s39, 0
        %s691 = scalar_select %p690, %s39, 0
        %s692 = smul.addr %s691, 4
        %s693 = smul.addr %s692, 4
        %s694 = scalar_lea.vmem %s14, %s693
        %p695 = pneg %p396
        %p696 = pneg %p393
        %p697 = scmp.lt.s32.totalorder %s39, 0
        %s698 = scalar_select %p697, %s39, 0
        %s699 = smul.addr %s698, 8
        %s700 = smul.addr %s699, 4
        %s701 = scalar_lea.vmem %s15, %s700
        %p702 = pneg %p422
        %p703 = pneg %p419
        %p704 = pneg %p443
        %p705 = pneg %p440
        %p706 = pneg %p464
        %p707 = pneg %p461
        %p708 = pneg %p490
        %p709 = pneg %p487
        %s710 = sand.u32 %s477, 1
        %s711 = scalar_lea.sflag [#allocation4], %s710
        %s712 = sand.u32 %s477, 1
        %s713 = smul.addr %s712, 4
        %s714 = scalar_lea.vmem [#allocation3], %s713
        %p715 = pneg %p516
        %p716 = pneg %p513
        %p717 = scmp.lt.s32.totalorder %s38, 1
        %s718 = scalar_select %p717, %s38, 1
        %s719 = scalar_lea.vmem %s19, %s718
        %p720 = scmp.lt.s32.totalorder %s38, 1
        %s721 = scalar_select %p720, %s38, 1
        %s722 = smul.addr %s721, 4
        %s723 = scalar_lea.vmem %s0, %s722
        %p724 = scmp.lt.s32.totalorder %s38, 1
        %s725 = scalar_select %p724, %s38, 1
        %s726 = smul.addr %s725, 4
        %s727 = scalar_lea.vmem %s1, %s726
        %p728 = scmp.lt.s32.totalorder %s38, 1
        %s729 = scalar_select %p728, %s38, 1
        %s730 = smul.addr %s729, 8
        %s731 = scalar_lea.vmem %s5, %s730
        %p732 = scmp.lt.s32.totalorder %s39, 0
        %s733 = scalar_select %p732, %s39, 0
        %s734 = scalar_lea.vmem %s10, %s733
        %p735 = scmp.lt.s32.totalorder %s39, 0
        %s736 = scalar_select %p735, %s39, 0
        %s737 = scalar_lea.vmem %s11, %s736
        %p738 = scmp.lt.s32.totalorder %s39, 0
        %s739 = scalar_select %p738, %s39, 0
        %s740 = smul.addr %s739, 8
        %s741 = smul.addr %s740, 4
        %s742 = scalar_lea.vmem %s12, %s741
        %p743 = scmp.lt.s32.totalorder %s39, 0
        %s744 = scalar_select %p743, %s39, 0
        %s745 = smul.addr %s744, 4
        %s746 = smul.addr %s745, 4
        %s747 = scalar_lea.vmem %s13, %s746
        %p748 = scmp.lt.s32.totalorder %s39, 0
        %s749 = scalar_select %p748, %s39, 0
        %s750 = smul.addr %s749, 4
        %s751 = smul.addr %s750, 4
        %s752 = scalar_lea.vmem %s14, %s751
        %p753 = scmp.lt.s32.totalorder %s39, 0
        %s754 = scalar_select %p753, %s39, 0
        %s755 = smul.addr %s754, 8
        %s756 = smul.addr %s755, 4
        %s757 = scalar_lea.vmem %s15, %s756
        %p758 = scmp.lt.s32.totalorder %s38, 1
        %s759 = scalar_select %p758, %s38, 1
        %s760 = scalar_lea.vmem %s19, %s759
        %p762 = scmp.eq.s32.totalorder %s39, 0
        // Predicated region
        $region93: #{deepseek_trainable_mtp_forward.3} parent=91 // pred_check
          %p763 = pneg %p762
        $region94: #{deepseek_trainable_mtp_forward.3} parent=91 // pred_check_branch
          %765 = sbr.rel (%p763) target = $region96
        $region95: #{deepseek_trainable_mtp_forward.3} parent=91 // pred_region
          %v766 = vld [vmem:[%s723] sm:$0xf]
          %v767 = vunpack.c.l.bf16 %v766
          %v768 = vld [vmem:[%s727] sm:$0xf]
          %v769 = vunpack.c.l.bf16 %v768
          %v770 = vld [vmem:[%s6] sm:$0x1]
          %v771 = vmul.f32 %v767, %v767
          %vm772 = vcmask 260096
          %v773 = vsel %vm772, %v771, 0.0
          %774 = vadd.xlane.f32.xlu0 %v773
          %v775 = vpop.xlane.xlu0 %774
          %v776 = vrcp.pop 32.0
          %v777 = vmul.f32 32.0, %v776
          %v778 = vsub.f32 1.0, %v777
          %v779 = vmul.f32 %v776, %v778
          %v780 = vadd.f32 %v776, %v779
          %vm781 = vweird.f32 %v776
          %v782 = vsel %vm781, %v776, %v780
          %v783 = vmul.f32 %v775, %v782
          %v784 = vadd.f32 %v783, 1e-06
          %v785 = vrsqrt.pop %v784
          %v786 = vmul.f32 %v785, %v784
          %v787 = vmul.f32 %v786, %v785
          %v788 = vmul.f32 0.5, %v787
          %v789 = vsub.f32 1.5, %v788
          %v790 = vmul.f32 %v785, %v789
          %vm791 = vweird.f32 %v784
          %vm792 = vweird.f32 %v785
          %vm793 = vmor %vm791, %vm792
          %v794 = vsel %vm793, %v785, %v790
          %v795 = vmul.f32 %v767, %v794
          %v797 = vperm.slane %v770, 0
          %v799 = vmul.f32 %v795, %v797
          %v800 = vld [vmem:[%s7] sm:$0x1]
          %v801 = vmul.f32 %v769, %v769
          %v802 = vsel %vm772, %v801, 0.0
          %803 = vadd.xlane.f32.xlu0 %v802
          %v804 = vpop.xlane.xlu0 %803
          %v805 = vmul.f32 %v804, %v782
          %v806 = vadd.f32 %v805, 1e-06
          %v807 = vrsqrt.pop %v806
          %v808 = vmul.f32 %v807, %v806
          %v809 = vmul.f32 %v808, %v807
          %v810 = vmul.f32 0.5, %v809
          %v811 = vsub.f32 1.5, %v810
          %v812 = vmul.f32 %v807, %v811
          %vm813 = vweird.f32 %v806
          %vm814 = vweird.f32 %v807
          %vm815 = vmor %vm813, %vm814
          %v816 = vsel %vm815, %v807, %v812
          %v817 = vmul.f32 %v769, %v816
          %v819 = vperm.slane %v800, 0
          %v821 = vmul.f32 %v817, %v819
          %v822 = vpack.c.bf16 %v799, %v799
          %v823 = vld [vmem:[%s8] sm:$0xf]
          %v824 = vld [vmem:[%s8 + $0x4] sm:$0xf]
          %v825 = vld [vmem:[%s8 + $0x8] sm:$0xf]
          %v826 = vld [vmem:[%s8 + $0xc] sm:$0xf]
          %v827 = vpack.c.bf16 %v821, %v821
          %v828 = vld [vmem:[%s9] sm:$0xf]
          %v829 = vld [vmem:[%s9 + $0x4] sm:$0xf]
          %v830 = vld [vmem:[%s9 + $0x8] sm:$0xf]
          %v831 = vld [vmem:[%s9 + $0xc] sm:$0xf]
          %v836 = vunpack.c.l.b16 %v828
          %v837 = vunpack.c.l.b16 %v829
          %v838 = vunpack.c.l.b16 %v830
          %v839 = vunpack.c.l.b16 %v831
          %v840 = vpack.c.b16 %v837, %v836
          %v841 = vpack.c.b16 %v839, %v838
          %vm844 = vcmask 261120
          %v846 = vsel %vm844, %v827, 0
          %848 = vmatpush.bf16.msra.mxu0 0
          %849 = vmatpush.bf16.msra.mxu0 0
          %850 = vmatpush.bf16.msra.mxu0 0
          %851 = vmatpush.bf16.msra.mxu0 0
          %852 = vmatpush.bf16.msra.mxu0 0
          %853 = vmatpush.bf16.msra.mxu0 0
          %854 = vmatpush.bf16.msra.mxu0 %v841
          %855 = vmatpush.bf16.msra.mxu0 %v840
          %856 = vmatmul.bf16.gmra.mxu0 %v846
          %v857 = vpop.f32.mrf.mxu0
          %v858 = vadd.f32 0.0, %v857
          %v859 = vpop.f32.mrf.mxu0
          %860 = vdwg.mxu0
          %v865 = vunpack.c.l.b16 %v823
          %v866 = vunpack.c.l.b16 %v824
          %v867 = vunpack.c.l.b16 %v825
          %v868 = vunpack.c.l.b16 %v826
          %v869 = vpack.c.b16 %v866, %v865
          %v870 = vpack.c.b16 %v868, %v867
          %v874 = vsel %vm844, %v822, 0
          %876 = vmatpush.bf16.msra.mxu0 0
          %877 = vmatpush.bf16.msra.mxu0 0
          %878 = vmatpush.bf16.msra.mxu0 0
          %879 = vmatpush.bf16.msra.mxu0 0
          %880 = vmatpush.bf16.msra.mxu0 0
          %881 = vmatpush.bf16.msra.mxu0 0
          %882 = vmatpush.bf16.msra.mxu0 %v870
          %883 = vmatpush.bf16.msra.mxu0 %v869
          %884 = vmatmul.bf16.gmra.mxu0 %v874
          %v885 = vpop.f32.mrf.mxu0
          %v886 = vadd.f32 %v858, %v885
          %v887 = vpop.f32.mrf.mxu0
          %888 = vdwg.mxu0
          %889 = vst.msk [vmem:[#allocation2] sm:$0x7f] %vm772, %v886
        $region96: #{deepseek_trainable_mtp_forward.3} parent=91 // pred_fallthru
          _
        %v890 = vld [vmem:[#allocation2] sm:$0x7f]
        %v891 = vld [vmem:[%s2] sm:$0x7f]
        %v892 = vld [vmem:[%s3] sm:$0x7f]
        %v893 = vld [vmem:[%s4] sm:$0x7f]
        %v894 = vld [vmem:[%s734] sm:$0x1]
        %v895 = vld [vmem:[%s737] sm:$0x1]
        %v896 = vld [vmem:[%s742] sm:$0xff]
        %v897 = vld [vmem:[%s742 + $0x8] sm:$0xff]
        %v898 = vld [vmem:[%s742 + $0x10] sm:$0xff]
        %v899 = vld [vmem:[%s742 + $0x18] sm:$0xff]
        %v900 = vld [vmem:[%s747] sm:$0xf]
        %v901 = vld [vmem:[%s747 + $0x4] sm:$0xf]
        %v902 = vld [vmem:[%s747 + $0x8] sm:$0xf]
        %v903 = vld [vmem:[%s747 + $0xc] sm:$0xf]
        %v904 = vld [vmem:[%s752] sm:$0xf]
        %v905 = vld [vmem:[%s752 + $0x4] sm:$0xf]
        %v906 = vld [vmem:[%s752 + $0x8] sm:$0xf]
        %v907 = vld [vmem:[%s752 + $0xc] sm:$0xf]
        %v908 = vld [vmem:[%s757] sm:$0xf]
        %v909 = vld [vmem:[%s757 + $0x4] sm:$0xf]
        %v910 = vld [vmem:[%s757 + $0x8] sm:$0xf]
        %v911 = vld [vmem:[%s757 + $0xc] sm:$0xf]
        %v912 = vld [vmem:[%s757 + $0x10] sm:$0xf]
        %v913 = vld [vmem:[%s757 + $0x14] sm:$0xf]
        %v914 = vld [vmem:[%s757 + $0x18] sm:$0xf]
        %v915 = vld [vmem:[%s757 + $0x1c] sm:$0xf]
        %v916 = vmul.f32 %v890, %v890
        %vm917 = vcmask 260096
        %v918 = vsel %vm917, %v916, 0.0
        %919 = vadd.xlane.f32.xlu0 %v918
        %v920 = vpop.xlane.xlu0 %919
        %v921 = vrcp.pop 32.0
        %v922 = vmul.f32 32.0, %v921
        %v923 = vsub.f32 1.0, %v922
        %v924 = vmul.f32 %v921, %v923
        %v925 = vadd.f32 %v921, %v924
        %vm926 = vweird.f32 %v921
        %v927 = vsel %vm926, %v921, %v925
        %v928 = vmul.f32 %v920, %v927
        %v929 = vadd.f32 %v928, 1e-06
        %v930 = vrsqrt.pop %v929
        %v931 = vmul.f32 %v930, %v929
        %v932 = vmul.f32 %v931, %v930
        %v933 = vmul.f32 0.5, %v932
        %v934 = vsub.f32 1.5, %v933
        %v935 = vmul.f32 %v930, %v934
        %vm936 = vweird.f32 %v929
        %vm937 = vweird.f32 %v930
        %vm938 = vmor %vm936, %vm937
        %v939 = vsel %vm938, %v930, %v935
        %v940 = vmul.f32 %v890, %v939
        %v942 = vperm.slane %v894, 0
        %v944 = vmul.f32 %v940, %v942
        %v945 = vpack.c.bf16 %v944, %v944
        %v950 = vunpack.c.l.b16 %v896
        %v951 = vunpack.c.h.b16 %v896
        %v952 = vunpack.c.l.b16 %v897
        %v953 = vunpack.c.h.b16 %v897
        %v954 = vunpack.c.l.b16 %v898
        %v955 = vunpack.c.h.b16 %v898
        %v956 = vunpack.c.l.b16 %v899
        %v957 = vunpack.c.h.b16 %v899
        %v958 = vpack.c.b16 %v952, %v950
        %v959 = vpack.c.b16 %v953, %v951
        %v960 = vpack.c.b16 %v956, %v954
        %v961 = vpack.c.b16 %v957, %v955
        %vm966 = vcmask 261120
        %v968 = vsel %vm966, %v945, 0
        %970 = vmatpush.bf16.msra.mxu0 0
        %971 = vmatpush.bf16.msra.mxu0 0
        %972 = vmatpush.bf16.msra.mxu0 0
        %973 = vmatpush.bf16.msra.mxu0 0
        %974 = vmatpush.bf16.msra.mxu0 0
        %975 = vmatpush.bf16.msra.mxu0 0
        %976 = vmatpush.bf16.msra.mxu0 %v960
        %977 = vmatpush.bf16.msra.mxu0 %v958
        %978 = vmatmul.bf16.gmra.mxu0 %v968
        %v979 = vpop.f32.mrf.mxu0
        %v980 = vadd.f32 0.0, %v979
        %v981 = vpop.f32.mrf.mxu0
        %982 = vdwg.mxu0
        %983 = vmatpush.bf16.msra.mxu0 0
        %984 = vmatpush.bf16.msra.mxu0 0
        %985 = vmatpush.bf16.msra.mxu0 0
        %986 = vmatpush.bf16.msra.mxu0 0
        %987 = vmatpush.bf16.msra.mxu0 0
        %988 = vmatpush.bf16.msra.mxu0 0
        %989 = vmatpush.bf16.msra.mxu0 %v961
        %990 = vmatpush.bf16.msra.mxu0 %v959
        %991 = vmatmul.bf16.gmra.mxu0 %v968
        %v992 = vpop.f32.mrf.mxu0
        %v993 = vadd.f32 0.0, %v992
        %v994 = vpop.f32.mrf.mxu0
        %995 = vdwg.mxu0
        %v996 = vmul.f32 %v980, %v891
        %998 = vrot.lane.b32.xlu0 %v892, 32
        %v999 = vpop.permute.xlu0 %998
        %v1001 = vmul.f32 %v980, %v999
        %1003 = vrot.lane.b32.xlu0 %v1001, 96
        %v1004 = vpop.permute.xlu0 %1003
        %v1006 = vadd.f32 %v996, %v1004
        %1008 = vrot.lane.b32.xlu0 %v891, 64
        %v1009 = vpop.permute.xlu0 %1008
        %v1011 = vmul.f32 %v980, %v1009
        %1012 = vrot.lane.b32.xlu0 %v892, 96
        %v1013 = vpop.permute.xlu0 %1012
        %v1015 = vmul.f32 %v980, %v1013
        %1017 = vrot.lane.b32.xlu0 %v1015, 96
        %v1018 = vpop.permute.xlu0 %1017
        %v1020 = vadd.f32 %v1011, %v1018
        %v1021 = vpack.c.bf16 %v1006, %v1006
        %v1022 = vpack.c.bf16 %v1020, %v1020
        %v1023 = vpack.c.bf16 %v993, %v993
        %1025 = vrot.lane.b32.xlu0 %v1022, 64
        %v1026 = vpop.permute.xlu0 %1025
        %vm1027 = vcmask 64512
        %v1029 = vsel %vm1027, %v1021, 0
        %v1032 = vsel %vm1027, %v1026, 0
        %1034 = vmatpush.bf16.xpose.msra.mxu0 0
        %1035 = vmatpush.bf16.xpose.msra.mxu0 0
        %1036 = vmatpush.bf16.xpose.msra.mxu0 0
        %1037 = vmatpush.bf16.xpose.msra.mxu0 0
        %1038 = vmatpush.bf16.xpose.msra.mxu0 0
        %1039 = vmatpush.bf16.xpose.msra.mxu0 0
        %1040 = vmatpush.bf16.xpose.msra.mxu0 0
        %1041 = vmatpush.bf16.xpose.msra.mxu0 %v1032
        %1042 = vmatmul.bf16.gmra.mxu0 %v1029
        %v1043 = vpop.f32.mrf.mxu0
        %v1044 = vadd.f32 0.0, %v1043
        %v1045 = vpop.f32.mrf.mxu0
        %1046 = vdwg.mxu0
        %v1047 = vmul.f32 %v1044, 0.35355338
        %v1048 = vadd.f32 %v1047, %v893
        %vm1049 = vcmask 55296
        %v1050 = vsel %vm1049, %v1048, -inf
        %1051 = vmax.xlane.f32.xlu0 %v1050
        %v1052 = vpop.xlane.xlu0 %1051
        %v1053 = vsub.f32 %v1048, %v1052
        %v1054 = vmul.f32 %v1053, 1.442695
        %v1055 = vpow.pop %v1054
        %v1056 = vsel %vm1049, %v1055, 0.0
        %1057 = vadd.xlane.f32.xlu0 %v1056
        %v1058 = vpop.xlane.xlu0 %1057
        %v1059 = vrcp.pop %v1058
        %v1060 = vmul.f32 %v1055, %v1059
        %v1061 = vpack.c.bf16 %v1060, %v1060
        %vm1062 = vcmask 56320
        %v1064 = vsel %vm1062, %v1061, 0
        %vm1066 = vcmask 1042432
        %vm1067 = vcmask 1043456
        %v1068 = vsel %vm1066, 4294967295, 65535
        %v1069 = vsel %vm1067, %v1068, 0
        %v1071 = vand.u32 %v1023, %v1069
        %1073 = vmatpush.bf16.msra.mxu0 0
        %1074 = vmatpush.bf16.msra.mxu0 0
        %1075 = vmatpush.bf16.msra.mxu0 0
        %1076 = vmatpush.bf16.msra.mxu0 0
        %1077 = vmatpush.bf16.msra.mxu0 0
        %1078 = vmatpush.bf16.msra.mxu0 0
        %1079 = vmatpush.bf16.msra.mxu0 0
        %1080 = vmatpush.bf16.msra.mxu0 %v1071
        %1081 = vmatmul.bf16.gmra.mxu0 %v1064
        %v1082 = vpop.f32.mrf.mxu0
        %v1083 = vadd.f32 0.0, %v1082
        %v1084 = vpop.f32.mrf.mxu0
        %1085 = vdwg.mxu0
        %1087 = vrot.lane.b32.xlu0 %v1021, 120
        %v1088 = vpop.permute.xlu0 %1087
        %1089 = vrot.lane.b32.xlu0 %v1022, 56
        %v1090 = vpop.permute.xlu0 %1089
        %v1092 = vsel %vm1027, %v1088, 0
        %v1095 = vsel %vm1027, %v1090, 0
        %1097 = vmatpush.bf16.xpose.msra.mxu0 0
        %1098 = vmatpush.bf16.xpose.msra.mxu0 0
        %1099 = vmatpush.bf16.xpose.msra.mxu0 0
        %1100 = vmatpush.bf16.xpose.msra.mxu0 0
        %1101 = vmatpush.bf16.xpose.msra.mxu0 0
        %1102 = vmatpush.bf16.xpose.msra.mxu0 0
        %1103 = vmatpush.bf16.xpose.msra.mxu0 0
        %1104 = vmatpush.bf16.xpose.msra.mxu0 %v1095
        %1105 = vmatmul.bf16.gmra.mxu0 %v1092
        %v1106 = vpop.f32.mrf.mxu0
        %v1107 = vadd.f32 0.0, %v1106
        %v1108 = vpop.f32.mrf.mxu0
        %1109 = vdwg.mxu0
        %v1110 = vmul.f32 %v1107, 0.35355338
        %v1111 = vadd.f32 %v1110, %v893
        %v1112 = vsel %vm1049, %v1111, -inf
        %1113 = vmax.xlane.f32.xlu0 %v1112
        %v1114 = vpop.xlane.xlu0 %1113
        %v1115 = vsub.f32 %v1111, %v1114
        %v1116 = vmul.f32 %v1115, 1.442695
        %v1117 = vpow.pop %v1116
        %v1118 = vsel %vm1049, %v1117, 0.0
        %1119 = vadd.xlane.f32.xlu0 %v1118
        %v1120 = vpop.xlane.xlu0 %1119
        %v1121 = vrcp.pop %v1120
        %v1122 = vmul.f32 %v1117, %v1121
        %v1123 = vpack.c.bf16 %v1122, %v1122
        %1125 = vrot.lane.b32.xlu0 %v1023, 120
        %v1126 = vpop.permute.xlu0 %1125
        %v1128 = vsel %vm1062, %v1123, 0
        %v1131 = vand.u32 %v1126, %v1069
        %1133 = vmatpush.bf16.msra.mxu0 0
        %1134 = vmatpush.bf16.msra.mxu0 0
        %1135 = vmatpush.bf16.msra.mxu0 0
        %1136 = vmatpush.bf16.msra.mxu0 0
        %1137 = vmatpush.bf16.msra.mxu0 0
        %1138 = vmatpush.bf16.msra.mxu0 0
        %1139 = vmatpush.bf16.msra.mxu0 0
        %1140 = vmatpush.bf16.msra.mxu0 %v1131
        %1141 = vmatmul.bf16.gmra.mxu0 %v1128
        %v1142 = vpop.f32.mrf.mxu0
        %v1143 = vadd.f32 0.0, %v1142
        %v1144 = vpop.f32.mrf.mxu0
        %1145 = vdwg.mxu0
        %1146 = vrot.lane.b32.xlu0 %v1021, 112
        %v1147 = vpop.permute.xlu0 %1146
        %1148 = vrot.lane.b32.xlu0 %v1022, 48
        %v1149 = vpop.permute.xlu0 %1148
        %v1151 = vsel %vm1027, %v1147, 0
        %v1154 = vsel %vm1027, %v1149, 0
        %1156 = vmatpush.bf16.xpose.msra.mxu0 0
        %1157 = vmatpush.bf16.xpose.msra.mxu0 0
        %1158 = vmatpush.bf16.xpose.msra.mxu0 0
        %1159 = vmatpush.bf16.xpose.msra.mxu0 0
        %1160 = vmatpush.bf16.xpose.msra.mxu0 0
        %1161 = vmatpush.bf16.xpose.msra.mxu0 0
        %1162 = vmatpush.bf16.xpose.msra.mxu0 0
        %1163 = vmatpush.bf16.xpose.msra.mxu0 %v1154
        %1164 = vmatmul.bf16.gmra.mxu0 %v1151
        %v1165 = vpop.f32.mrf.mxu0
        %v1166 = vadd.f32 0.0, %v1165
        %v1167 = vpop.f32.mrf.mxu0
        %1168 = vdwg.mxu0
        %v1169 = vmul.f32 %v1166, 0.35355338
        %v1170 = vadd.f32 %v1169, %v893
        %v1171 = vsel %vm1049, %v1170, -inf
        %1172 = vmax.xlane.f32.xlu0 %v1171
        %v1173 = vpop.xlane.xlu0 %1172
        %v1174 = vsub.f32 %v1170, %v1173
        %v1175 = vmul.f32 %v1174, 1.442695
        %v1176 = vpow.pop %v1175
        %v1177 = vsel %vm1049, %v1176, 0.0
        %1178 = vadd.xlane.f32.xlu0 %v1177
        %v1179 = vpop.xlane.xlu0 %1178
        %v1180 = vrcp.pop %v1179
        %v1181 = vmul.f32 %v1176, %v1180
        %v1182 = vpack.c.bf16 %v1181, %v1181
        %1183 = vrot.lane.b32.xlu0 %v1023, 112
        %v1184 = vpop.permute.xlu0 %1183
        %v1186 = vsel %vm1062, %v1182, 0
        %v1189 = vand.u32 %v1184, %v1069
        %1191 = vmatpush.bf16.msra.mxu0 0
        %1192 = vmatpush.bf16.msra.mxu0 0
        %1193 = vmatpush.bf16.msra.mxu0 0
        %1194 = vmatpush.bf16.msra.mxu0 0
        %1195 = vmatpush.bf16.msra.mxu0 0
        %1196 = vmatpush.bf16.msra.mxu0 0
        %1197 = vmatpush.bf16.msra.mxu0 0
        %1198 = vmatpush.bf16.msra.mxu0 %v1189
        %1199 = vmatmul.bf16.gmra.mxu0 %v1186
        %v1200 = vpop.f32.mrf.mxu0
        %v1201 = vadd.f32 0.0, %v1200
        %v1202 = vpop.f32.mrf.mxu0
        %1203 = vdwg.mxu0
        %1204 = vrot.lane.b32.xlu0 %v1021, 104
        %v1205 = vpop.permute.xlu0 %1204
        %1206 = vrot.lane.b32.xlu0 %v1022, 40
        %v1207 = vpop.permute.xlu0 %1206
        %v1209 = vsel %vm1027, %v1205, 0
        %v1212 = vsel %vm1027, %v1207, 0
        %1214 = vmatpush.bf16.xpose.msra.mxu0 0
        %1215 = vmatpush.bf16.xpose.msra.mxu0 0
        %1216 = vmatpush.bf16.xpose.msra.mxu0 0
        %1217 = vmatpush.bf16.xpose.msra.mxu0 0
        %1218 = vmatpush.bf16.xpose.msra.mxu0 0
        %1219 = vmatpush.bf16.xpose.msra.mxu0 0
        %1220 = vmatpush.bf16.xpose.msra.mxu0 0
        %1221 = vmatpush.bf16.xpose.msra.mxu0 %v1212
        %1222 = vmatmul.bf16.gmra.mxu0 %v1209
        %v1223 = vpop.f32.mrf.mxu0
        %v1224 = vadd.f32 0.0, %v1223
        %v1225 = vpop.f32.mrf.mxu0
        %1226 = vdwg.mxu0
        %v1227 = vmul.f32 %v1224, 0.35355338
        %v1228 = vadd.f32 %v1227, %v893
        %v1229 = vsel %vm1049, %v1228, -inf
        %1230 = vmax.xlane.f32.xlu0 %v1229
        %v1231 = vpop.xlane.xlu0 %1230
        %v1232 = vsub.f32 %v1228, %v1231
        %v1233 = vmul.f32 %v1232, 1.442695
        %v1234 = vpow.pop %v1233
        %v1235 = vsel %vm1049, %v1234, 0.0
        %1236 = vadd.xlane.f32.xlu0 %v1235
        %v1237 = vpop.xlane.xlu0 %1236
        %v1238 = vrcp.pop %v1237
        %v1239 = vmul.f32 %v1234, %v1238
        %v1240 = vpack.c.bf16 %v1239, %v1239
        %1241 = vrot.lane.b32.xlu0 %v1023, 104
        %v1242 = vpop.permute.xlu0 %1241
        %v1244 = vsel %vm1062, %v1240, 0
        %v1247 = vand.u32 %v1242, %v1069
        %1249 = vmatpush.bf16.msra.mxu0 0
        %1250 = vmatpush.bf16.msra.mxu0 0
        %1251 = vmatpush.bf16.msra.mxu0 0
        %1252 = vmatpush.bf16.msra.mxu0 0
        %1253 = vmatpush.bf16.msra.mxu0 0
        %1254 = vmatpush.bf16.msra.mxu0 0
        %1255 = vmatpush.bf16.msra.mxu0 0
        %1256 = vmatpush.bf16.msra.mxu0 %v1247
        %1257 = vmatmul.bf16.gmra.mxu0 %v1244
        %v1258 = vpop.f32.mrf.mxu0
        %v1259 = vadd.f32 0.0, %v1258
        %v1260 = vpop.f32.mrf.mxu0
        %1261 = vdwg.mxu0
        %1263 = vrot.lane.b32.xlu0 %v1143, 8
        %v1264 = vpop.permute.xlu0 %1263
        %1267 = vrot.lane.b32.xlu0 %v1201, 16
        %v1268 = vpop.permute.xlu0 %1267
        %1271 = vrot.lane.b32.xlu0 %v1259, 24
        %v1272 = vpop.permute.xlu0 %1271
        %v1274 = vsel %vm1027, %v1083, %v1264
        %vm1275 = vcmask 130048
        %v1276 = vsel %vm1275, %v1274, %v1268
        %vm1277 = vcmask 195584
        %v1278 = vsel %vm1277, %v1276, %v1272
        %v1279 = vpack.c.bf16 %v1278, %v1278
        %v1284 = vunpack.c.l.b16 %v900
        %v1285 = vunpack.c.l.b16 %v901
        %v1286 = vunpack.c.l.b16 %v902
        %v1287 = vunpack.c.l.b16 %v903
        %v1288 = vpack.c.b16 %v1285, %v1284
        %v1289 = vpack.c.b16 %v1287, %v1286
        %v1293 = vsel %vm966, %v1279, 0
        %1295 = vmatpush.bf16.msra.mxu0 0
        %1296 = vmatpush.bf16.msra.mxu0 0
        %1297 = vmatpush.bf16.msra.mxu0 0
        %1298 = vmatpush.bf16.msra.mxu0 0
        %1299 = vmatpush.bf16.msra.mxu0 0
        %1300 = vmatpush.bf16.msra.mxu0 0
        %1301 = vmatpush.bf16.msra.mxu0 %v1289
        %1302 = vmatpush.bf16.msra.mxu0 %v1288
        %1303 = vmatmul.bf16.gmra.mxu0 %v1293
        %v1304 = vpop.f32.mrf.mxu0
        %v1305 = vadd.f32 0.0, %v1304
        %v1306 = vpop.f32.mrf.mxu0
        %1307 = vdwg.mxu0
        %v1308 = vadd.f32 %v890, %v1305
        %v1309 = vmul.f32 %v1308, %v1308
        %v1310 = vsel %vm917, %v1309, 0.0
        %1311 = vadd.xlane.f32.xlu0 %v1310
        %v1312 = vpop.xlane.xlu0 %1311
        %v1313 = vmul.f32 %v1312, %v927
        %v1314 = vadd.f32 %v1313, 1e-06
        %v1315 = vrsqrt.pop %v1314
        %v1316 = vmul.f32 %v1315, %v1314
        %v1317 = vmul.f32 %v1316, %v1315
        %v1318 = vmul.f32 0.5, %v1317
        %v1319 = vsub.f32 1.5, %v1318
        %v1320 = vmul.f32 %v1315, %v1319
        %vm1321 = vweird.f32 %v1314
        %vm1322 = vweird.f32 %v1315
        %vm1323 = vmor %vm1321, %vm1322
        %v1324 = vsel %vm1323, %v1315, %v1320
        %v1325 = vmul.f32 %v1308, %v1324
        %v1327 = vperm.slane %v895, 0
        %v1329 = vmul.f32 %v1325, %v1327
        %v1330 = vpack.c.bf16 %v1329, %v1329
        %v1335 = vunpack.c.l.b16 %v904
        %v1336 = vunpack.c.l.b16 %v905
        %v1337 = vunpack.c.l.b16 %v906
        %v1338 = vunpack.c.l.b16 %v907
        %v1339 = vpack.c.b16 %v1336, %v1335
        %v1340 = vpack.c.b16 %v1338, %v1337
        %v1344 = vsel %vm966, %v1330, 0
        %1346 = vmatpush.bf16.msra.mxu0 0
        %1347 = vmatpush.bf16.msra.mxu0 0
        %1348 = vmatpush.bf16.msra.mxu0 0
        %1349 = vmatpush.bf16.msra.mxu0 0
        %1350 = vmatpush.bf16.msra.mxu0 0
        %1351 = vmatpush.bf16.msra.mxu0 0
        %1352 = vmatpush.bf16.msra.mxu0 %v1340
        %1353 = vmatpush.bf16.msra.mxu0 %v1339
        %1354 = vmatmul.bf16.gmra.mxu0 %v1344
        %v1355 = vpop.f32.mrf.mxu0
        %v1356 = vadd.f32 0.0, %v1355
        %v1357 = vpop.f32.mrf.mxu0
        %1358 = vdwg.mxu0
        %v1359 = vxor.u32 %v1356, 2147483648
        %v1360 = vmul.f32 %v1359, 1.442695
        %v1361 = vpow.pop %v1360
        %v1362 = vadd.f32 %v1361, 1.0
        %v1363 = vrcp.pop %v1362
        %v1364 = vmul.f32 %v1362, %v1363
        %v1365 = vsub.f32 1.0, %v1364
        %v1366 = vmul.f32 %v1363, %v1365
        %v1367 = vadd.f32 %v1363, %v1366
        %vm1368 = vweird.f32 %v1362
        %vm1369 = vweird.f32 %v1363
        %vm1370 = vmor %vm1368, %vm1369
        %v1371 = vsel %vm1370, %v1363, %v1367
        %v1372 = vand.u32 2147483647, %v1362
        %vm1373 = vcmp.eq.f32.partialorder %v1372, 8.507059e+37
        %v1374 = vand.u32 %v1362, 2147483648
        %v1375 = vor.u32 1.1754944e-38, %v1374
        %v1376 = vsel %vm1373, %v1375, %v1371
        %v1377 = vmul.f32 1.0, %v1376
        %v1378 = vmul.f32 %v1356, %v1377
        %1380 = vrot.lane.b32.xlu0 %v1356, 64
        %v1381 = vpop.permute.xlu0 %1380
        %v1383 = vmul.f32 %v1378, %v1381
        %v1384 = vpack.c.bf16 %v1383, %v1383
        %v1393 = vunpack.c.l.b16 %v908
        %v1394 = vunpack.c.l.b16 %v909
        %v1395 = vunpack.c.l.b16 %v910
        %v1396 = vunpack.c.l.b16 %v911
        %v1397 = vunpack.c.l.b16 %v912
        %v1398 = vunpack.c.l.b16 %v913
        %v1399 = vunpack.c.l.b16 %v914
        %v1400 = vunpack.c.l.b16 %v915
        %v1401 = vpack.c.b16 %v1394, %v1393
        %v1402 = vpack.c.b16 %v1396, %v1395
        %v1403 = vpack.c.b16 %v1398, %v1397
        %v1404 = vpack.c.b16 %v1400, %v1399
        %vm1409 = vcmask 523264
        %v1411 = vsel %vm1409, %v1384, 0
        %1413 = vmatpush.bf16.msra.mxu0 0
        %1414 = vmatpush.bf16.msra.mxu0 0
        %1415 = vmatpush.bf16.msra.mxu0 0
        %1416 = vmatpush.bf16.msra.mxu0 0
        %1417 = vmatpush.bf16.msra.mxu0 %v1404
        %1418 = vmatpush.bf16.msra.mxu0 %v1403
        %1419 = vmatpush.bf16.msra.mxu0 %v1402
        %1420 = vmatpush.bf16.msra.mxu0 %v1401
        %1421 = vmatmul.bf16.gmra.mxu0 %v1411
        %v1422 = vpop.f32.mrf.mxu0
        %v1423 = vadd.f32 0.0, %v1422
        %v1424 = vpop.f32.mrf.mxu0
        %1425 = vdwg.mxu0
        %v1426 = vadd.f32 %v1308, %v1423
        %1427 = vst.msk [vmem:[#allocation2] sm:$0x7f] %vm917, %v1426
        // Predicated region
        $region97: #{deepseek_trainable_mtp_forward.3} parent=91 // pred_check
          %p1428 = pneg %p762
        $region98: #{deepseek_trainable_mtp_forward.3} parent=91 // pred_check_branch
          %1430 = sbr.rel (%p1428) target = $region100
        $region99: #{deepseek_trainable_mtp_forward.3} parent=91 // pred_region
          %v1431 = vpack.c.bf16 %v1426, %v1426
          %vm1432 = vcmask 257024
          %vm1433 = vsmask.f32 3328
          %vm1434 = vmand %vm1432, %vm1433
          %v1435 = vld [vmem:[%s714] sm:$0xf]
          %v1436 = vsel %vm1434, %v1431, %v1435
          %1437 = vst [vmem:[%s714] sm:$0xf] %v1436
          %v1438 = vld [vmem:[%s16] sm:$0x1]
          %v1439 = vld [vmem:[%s17] sm:$0xf]
          %v1440 = vld [vmem:[%s17 + $0x4] sm:$0xf]
          %v1441 = vld [vmem:[%s17 + $0x8] sm:$0xf]
          %v1442 = vld [vmem:[%s17 + $0xc] sm:$0xf]
          %v1443 = vld [vmem:[%s731] sm:$0x7f]
          %v1444 = vmul.f32 %v1426, %v1426
          %v1445 = vsel %vm917, %v1444, 0.0
          %1446 = vadd.xlane.f32.xlu0 %v1445
          %v1447 = vpop.xlane.xlu0 %1446
          %v1448 = vmul.f32 %v1447, %v927
          %v1449 = vadd.f32 %v1448, 1e-06
          %v1450 = vrsqrt.pop %v1449
          %v1451 = vmul.f32 %v1450, %v1449
          %v1452 = vmul.f32 %v1451, %v1450
          %v1453 = vmul.f32 0.5, %v1452
          %v1454 = vsub.f32 1.5, %v1453
          %v1455 = vmul.f32 %v1450, %v1454
          %vm1456 = vweird.f32 %v1449
          %vm1457 = vweird.f32 %v1450
          %vm1458 = vmor %vm1456, %vm1457
          %v1459 = vsel %vm1458, %v1450, %v1455
          %v1460 = vmul.f32 %v1426, %v1459
          %v1462 = vperm.slane %v1438, 0
          %v1464 = vmul.f32 %v1460, %v1462
          %v1465 = vpack.c.bf16 %v1464, %v1464
          %v1470 = vunpack.c.l.b16 %v1439
          %v1471 = vunpack.c.l.b16 %v1440
          %v1472 = vunpack.c.l.b16 %v1441
          %v1473 = vunpack.c.l.b16 %v1442
          %v1474 = vpack.c.b16 %v1471, %v1470
          %v1475 = vpack.c.b16 %v1473, %v1472
          %v1479 = vsel %vm966, %v1465, 0
          %1481 = vmatpush.bf16.msra.mxu0 0
          %1482 = vmatpush.bf16.msra.mxu0 0
          %1483 = vmatpush.bf16.msra.mxu0 0
          %1484 = vmatpush.bf16.msra.mxu0 0
          %1485 = vmatpush.bf16.msra.mxu0 0
          %1486 = vmatpush.bf16.msra.mxu0 0
          %1487 = vmatpush.bf16.msra.mxu0 %v1475
          %1488 = vmatpush.bf16.msra.mxu0 %v1474
          %1489 = vmatmul.bf16.gmra.mxu0 %v1479
          %v1490 = vpop.f32.mrf.mxu0
          %v1491 = vadd.f32 0.0, %v1490
          %v1492 = vpop.f32.mrf.mxu0
          %1493 = vdwg.mxu0
          %vm1494 = vcmask 522240
          %v1495 = vsel %vm1494, %v1491, -inf
          %1496 = vmax.xlane.f32.xlu0 %v1495
          %v1497 = vpop.xlane.xlu0 %1496
          %v1498 = vsub.f32 %v1491, %v1497
          %v1499 = vmul.f32 %v1498, 1.442695
          %v1500 = vpow.pop %v1499
          %v1501 = vsel %vm1494, %v1500, 0.0
          %1502 = vadd.xlane.f32.xlu0 %v1501
          %v1503 = vpop.xlane.xlu0 %1502
          %v1504 = vlog2.pop %v1503
          %v1505 = vmul.f32 %v1504, 0.6931472
          %v1506 = vadd.f32 %v1497, %v1505
          %v1507 = vlaneseq
          %v1508 = vand.u32 %v1507, 127
          %1509 = vset.pattern.permute.xlu0 0
          %1510 = vperm.xlu0 %1509, %v1443
          %v1511 = vpop.permute.xlu0 %1510
          %vm1512 = vcmp.eq.s32.totalorder %v1508, %v1511
          %v1513 = vsel %vm1512, %v1491, 0.0
          %v1514 = vsel %vm1494, %v1513, 0.0
          %1515 = vadd.xlane.f32.xlu0 %v1514
          %v1516 = vpop.xlane.xlu0 %1515
          %v1517 = vsub.f32 %v1506, %v1516
          %vm1518 = vcmask 1046528
          %v1519 = vsel %vm1518, %v1517, 0.0
          %v1520 = vrot.slane %v1519, 4
          %v1521 = vadd.f32 %v1519, %v1520
          %v1522 = vrot.slane %v1521, 2
          %v1523 = vadd.f32 %v1521, %v1522
          %v1524 = vrot.slane %v1523, 1
          %v1525 = vadd.f32 %v1523, %v1524
          %v1526 = vrcp.pop 7.0
          %v1527 = vmul.f32 7.0, %v1526
          %v1528 = vsub.f32 1.0, %v1527
          %v1529 = vmul.f32 %v1526, %v1528
          %v1530 = vadd.f32 %v1526, %v1529
          %vm1531 = vweird.f32 %v1526
          %v1532 = vsel %vm1531, %v1526, %v1530
          %v1533 = vmul.f32 %v1525, %v1532
          %vm1534 = vcmask 0
          %1535 = vst.msk [vmem:[%s760] sm:$0x1] %vm1534, %v1533
        $region100: #{deepseek_trainable_mtp_forward.3} parent=91 // pred_fallthru
          _
        %s1536 = sand.u32 %s477, 1
        %s1537 = scalar_lea.sflag [#allocation4], %s1536
        %s1538 = sand.u32 %s477, 1
        %s1539 = smul.addr %s1538, 4
        %s1540 = scalar_lea.vmem [#allocation3], %s1539
        %p1541 = scmp.lt.s32.totalorder %s38, 1
        %s1542 = scalar_select %p1541, %s38, 1
        %s1543 = scalar_lea.vmem %s19, %s1542
        // Predicated region
        $region101: #{deepseek_trainable_mtp_forward.3} parent=91 // pred_check
          %p1544 = pneg %p487
        $region102: #{deepseek_trainable_mtp_forward.3} parent=91 // pred_check_branch
          %1546 = sbr.rel (%p1544) target = $region104
        $region103: #{deepseek_trainable_mtp_forward.3} parent=91 // pred_region
          %1548 = vsyncadd %s1537, 0
          %s1549 = smul.addr %s38, 4
          %s1550 = scalar_lea.hbm %s18, %s1549
          %s1552 = sshll.u32 %s1540, 4
          %s1553 = int_to_ptr.vmem [resolvable:$true] %s1552
          %s1554 = sshll.u32 %s1550, 4
          %s1555 = int_to_ptr.hbm [resolvable:$true] %s1554
          %1557 = dma.vmem_to_hbm [thread:$0]  %s1553, 64, %s1555, %s1537
        $region104: #{deepseek_trainable_mtp_forward.3} parent=91 // pred_fallthru
          _
        // Predicated region
        $region105: #{deepseek_trainable_mtp_forward.3} parent=91 // pred_check
          %p1558 = pneg %p513
        $region106: #{deepseek_trainable_mtp_forward.3} parent=91 // pred_check_branch
          %1560 = sbr.rel (%p1558) target = $region108
        $region107: #{deepseek_trainable_mtp_forward.3} parent=91 // pred_region
          _
        $region108: #{deepseek_trainable_mtp_forward.3} parent=91 // pred_fallthru
          _
      $region92: #{deepseek_trainable_mtp_forward.3} parent=5 // pred_fallthru
        _
      %p1561 = scmp.le.s32.totalorder 2, %s29
      // Predicated region
      $region109: #{deepseek_trainable_mtp_forward.3} parent=5 // pred_check
        %p1562 = pneg %p1561
      $region110: #{deepseek_trainable_mtp_forward.3} parent=5 // pred_check_branch
        %1564 = sbr.rel (%p1562) target = $region112
      $region111: #{deepseek_trainable_mtp_forward.3} parent=5 // pred_region
        %s1565 = ssub.s32 %s29, 2
        // Predicated region
        $region113: #{deepseek_trainable_mtp_forward.3} parent=111 // pred_check
          %p1566 = pneg %p493
        $region114: #{deepseek_trainable_mtp_forward.3} parent=111 // pred_check_branch
          %1568 = sbr.rel (%p1566) target = $region116
        $region115: #{deepseek_trainable_mtp_forward.3} parent=111 // pred_region
          %s1569 = sand.u32 %s478, 1
          %s1570 = scalar_lea.sflag [#allocation4], %s1569
          %s1571 = sand.u32 %s478, 1
          %s1572 = smul.addr %s1571, 4
          %s1573 = scalar_lea.vmem [#allocation3], %s1572
          %1575 = dma.done %s1570, 64
        $region116: #{deepseek_trainable_mtp_forward.3} parent=111 // pred_fallthru
          _
        // Predicated region
        $region117: #{deepseek_trainable_mtp_forward.3} parent=111 // pred_check
          %p1576 = pneg %p519
        $region118: #{deepseek_trainable_mtp_forward.3} parent=111 // pred_check_branch
          %1578 = sbr.rel (%p1576) target = $region120
        $region119: #{deepseek_trainable_mtp_forward.3} parent=111 // pred_region
          %p1579 = scmp.lt.s32.totalorder %s40, 1
          %s1580 = scalar_select %p1579, %s40, 1
          %s1581 = scalar_lea.vmem %s19, %s1580
        $region120: #{deepseek_trainable_mtp_forward.3} parent=111 // pred_fallthru
          _
      $region112: #{deepseek_trainable_mtp_forward.3} parent=5 // pred_fallthru
        _
    $region6: #{deepseek_trainable_mtp_forward.3} parent=1 // loop_footer
      %s33 = sadd.s32 1, %s29
    $region7: #{deepseek_trainable_mtp_forward.3} parent=1 // loop_footer_branch
      %28 = sbr.rel target = $region3
    $region8: #{deepseek_trainable_mtp_forward.3} parent=1 // loop_exit
      _
    %1582 = vsyncpa [#allocation4], 1
    %s1583 = scalar_lea.sflag [#allocation4], 1
    %1584 = vsyncpa %s1583, 1

</llo_original>
